<compile_context>
chip_gen: v7x
topology: tpu7x:2x2x1
jax: 0.10.0
libtpu: 0.0.40
codegen_flags: <defaults>
</compile_context>

<pallas_src>
import functools

import jax
import jax.numpy as jnp
from jax.experimental import pallas as pl
from jax.experimental.pallas import tpu as pltpu


def _ct_regressor_kernel(x_ref, cw_ref, cb_ref, mask_ref, add_ref,
                         w1f_ref, w1a_ref, b1_ref,
                         w2_ref, b2_ref, w3_ref, b3_ref, w4_ref, b4_ref,
                         out_ref, feat_acc,
                         *, tile_h, width, inv_hw):
    f32 = jnp.float32
    t = pl.program_id(1)          # spatial row-tile index (reduction axis, last)
    wp = width + 2                # padded row width
    rows = tile_h * wp            # flattened conv-output rows for this tile
    fdim = cw_ref.shape[2]

    # ---- 3x3 'SAME' conv on this row slab: 9 shifted matmuls, f32 accumulate ----
    acc = jnp.zeros((rows, fdim), f32)
    for ky in range(3):
        for kx in range(3):
            off = ky * wp + kx                      # static offset into the slab
            acc = acc + jnp.dot(x_ref[off:off + rows, :],
                                cw_ref[ky * 3 + kx],
                                preferred_element_type=f32)
    conv = jnp.maximum(acc + cb_ref[...], 0.0)      # (rows, F); 2 junk cols / image row

    # ---- global average pool: mask junk columns, reduce, accumulate per batch ----
    contrib = jnp.sum(conv * mask_ref[...], axis=0, keepdims=True)   # (1, F)

    @pl.when(t == 0)
    def _():
        feat_acc[...] = jnp.zeros_like(feat_acc)

    feat_acc[...] = feat_acc[...] + contrib

    # ---- MLP head: once per batch, on its last tile (weights stay resident) ----
    @pl.when(t == pl.num_programs(1) - 1)
    def _():
        feat = feat_acc[...] * inv_hw                            # (1, F)
        # Linear(F + num_additional -> 128): split matmul == concat(feat, addl) @ W1
        h = (jnp.dot(feat, w1f_ref[...], preferred_element_type=f32)
             + jnp.dot(add_ref[...], w1a_ref[...], preferred_element_type=f32)
             + b1_ref[...])
        h = jnp.maximum(h, 0.0)
        h = jnp.maximum(jnp.dot(h, w2_ref[...], preferred_element_type=f32)
                        + b2_ref[...], 0.0)
        h = jnp.maximum(jnp.dot(h, w3_ref[...], preferred_element_type=f32)
                        + b3_ref[...], 0.0)
        out_ref[...] = jnp.dot(h, w4_ref[...], preferred_element_type=f32) + b4_ref[...]


def ct_weight_regressor_forward(x_nchw, additional_params, params, tile_h=None):
    """Forward pass. x_nchw: (B, Cin, H, W) f32; additional_params: (B, A) f32."""
    B, Cin, H, W = x_nchw.shape
    A = additional_params.shape[1]
    Fdim = params["conv_w"].shape[0]

    if tile_h is None:
        tile_h = H
        for cand in (128, 64, 32, 16, 8):
            if cand <= H and H % cand == 0:
                tile_h = cand
                break
    assert H % tile_h == 0, (H, tile_h)
    n_tiles = H // tile_h
    wp = W + 2
    rows = tile_h * wp
    slab_rows = (tile_h + 2) * wp + 2     # +2: tap (ky=2,kx=2) overrun on masked junk rows

    # ---- glue: NCHW -> zero-padded NHWC, flattened to row slabs with a 1-row halo ----
    x_nhwc = jnp.transpose(x_nchw, (0, 2, 3, 1)).astype(jnp.bfloat16)
    xp = jnp.pad(x_nhwc, ((0, 0), (1, 1), (1, 1), (0, 0)))          # (B, H+2, W+2, Cin)
    flat = xp.reshape(B, (H + 2) * wp, Cin)
    flat = jnp.pad(flat, ((0, 0), (0, 2), (0, 0)))                  # tail rows for tap overrun
    x_tiles = jnp.stack(
        [flat[:, t * tile_h * wp: t * tile_h * wp + slab_rows, :] for t in range(n_tiles)],
        axis=1)                                                     # (B, nT, slab_rows, Cin)

    # conv weight (F, Cin, 3, 3) -> (9, Cin, F), tap-major (ky, kx), bf16 for the MXU
    cw = jnp.transpose(params["conv_w"], (2, 3, 1, 0)).reshape(9, Cin, Fdim).astype(jnp.bfloat16)
    cb = params["conv_b"].reshape(1, Fdim).astype(jnp.float32)

    # valid-column mask for the flattened conv-output rows of one tile
    col = jnp.arange(rows, dtype=jnp.int32) % wp
    mask = (col < W).astype(jnp.float32).reshape(rows, 1)

    # fc weights: PyTorch stores (out, in); kernel consumes (in, out)
    w1 = params["fc1_w"].T.astype(jnp.float32)
    w1f, w1a = w1[:Fdim, :], w1[Fdim:, :]
    b1 = params["fc1_b"].reshape(1, -1).astype(jnp.float32)
    w2 = params["fc2_w"].T.astype(jnp.float32)
    b2 = params["fc2_b"].reshape(1, -1).astype(jnp.float32)
    w3 = params["fc3_w"].T.astype(jnp.float32)
    b3 = params["fc3_b"].reshape(1, -1).astype(jnp.float32)
    w4 = params["fc4_w"].T.astype(jnp.float32)
    b4 = params["fc4_b"].reshape(1, -1).astype(jnp.float32)
    # (B, 1, A) so the per-batch block keeps its last two dims == full array dims
    addl = additional_params.astype(jnp.float32).reshape(B, 1, A)

    resident = (cw, cb, mask)
    head = (w1f, w1a, b1, w2, b2, w3, b3, w4, b4)

    def const_spec(arr):
        zeros = (0,) * arr.ndim
        return pl.BlockSpec(arr.shape, lambda b_, t_, _z=zeros: _z)

    in_specs = [pl.BlockSpec((None, None, slab_rows, Cin), lambda b_, t_: (b_, t_, 0, 0))]
    in_specs += [const_spec(a) for a in resident]
    in_specs += [pl.BlockSpec((None, 1, A), lambda b_, t_: (b_, 0, 0))]   # per-batch addl
    in_specs += [const_spec(a) for a in head]

    kernel = functools.partial(_ct_regressor_kernel,
                               tile_h=tile_h, width=W, inv_hw=1.0 / float(H * W))

    out = pl.pallas_call(
        kernel,
        out_shape=jax.ShapeDtypeStruct((B, 1, 1), jnp.float32),
        grid_spec=pltpu.PrefetchScalarGridSpec(
            num_scalar_prefetch=0,
            grid=(B, n_tiles),
            in_specs=in_specs,
            out_specs=pl.BlockSpec((None, 1, 1), lambda b_, t_: (b_, 0, 0)),
            scratch_shapes=[pltpu.VMEM((1, Fdim), jnp.float32)]),
        # batch axis fully independent -> "parallel" (megacore sharding on v7x);
        # spatial accumulation axis carried in scratch -> "arbitrary".
        compiler_params=pltpu.CompilerParams(
            dimension_semantics=("parallel", "arbitrary")),
    )(x_tiles, cw, cb, mask, addl, w1f, w1a, b1, w2, b2, w3, b3, w4, b4)
    return out.reshape(B, 1)


def init_params(key, cin, feature_dim, num_additional, fc_layers=(128, 64, 32)):
    """Deterministic PyTorch-style uniform(-1/sqrt(fan_in), 1/sqrt(fan_in)) init."""
    params = {}
    keys = jax.random.split(key, 16)
    ki = iter(range(16))

    def u(k, shape, fan_in):
        bound = 1.0 / jnp.sqrt(float(fan_in))
        return jax.random.uniform(k, shape, jnp.float32, -bound, bound)

    params["conv_w"] = u(keys[next(ki)], (feature_dim, cin, 3, 3), cin * 9)
    params["conv_b"] = u(keys[next(ki)], (feature_dim,), cin * 9)

    dims = [feature_dim + num_additional] + list(fc_layers) + [1]
    for li in range(len(dims) - 1):
        fi, fo = dims[li], dims[li + 1]
        params[f"fc{li + 1}_w"] = u(keys[next(ki)], (fo, fi), fi)
        params[f"fc{li + 1}_b"] = u(keys[next(ki)], (fo,), fi)
    return params


def reference_forward(x_nchw, addl, params):
    """Pure-JAX reference reproducing the PyTorch semantics (conv operands
    quantized to bf16 exactly as the kernel does; accumulation in f32)."""
    hp = jax.lax.Precision.HIGHEST
    xq = x_nchw.astype(jnp.bfloat16).astype(jnp.float32)
    cwq = params["conv_w"].astype(jnp.bfloat16).astype(jnp.float32)
    conv = jax.lax.conv_general_dilated(
        xq, cwq, (1, 1), "SAME",
        dimension_numbers=("NCHW", "OIHW", "NCHW"), precision=hp)
    conv = jax.nn.relu(conv + params["conv_b"][None, :, None, None])
    feat = conv.mean(axis=(2, 3))                        # backend features (B, F)
    h = jnp.concatenate([feat, addl], axis=1)            # torch.cat(..., dim=1)
    for li, act in ((1, True), (2, True), (3, True), (4, False)):
        h = jnp.dot(h, params[f"fc{li}_w"].T, precision=hp) + params[f"fc{li}_b"]
        if act:
            h = jax.nn.relu(h)
    return h


if __name__ == "__main__":
    B, Cin, H, W = 2, 4, 16, 16
    FEATURE_DIM = 32          # backend feature dim (its fc.in_features)
    NUM_ADDITIONAL = 4

    root = jax.random.PRNGKey(0)
    kx, ka, kp = jax.random.split(root, 3)
    x = jax.random.normal(kx, (B, Cin, H, W), jnp.float32)
    addl = jax.random.normal(ka, (B, NUM_ADDITIONAL), jnp.float32)
    params = init_params(kp, Cin, FEATURE_DIM, NUM_ADDITIONAL)

    # tile_h=8 -> 2 spatial tiles per image, exercising the pipelined
    # accumulate-over-tiles path even at this toy size.
    out = ct_weight_regressor_forward(x, addl, params, tile_h=8)
    out = jax.block_until_ready(out)

    ref = reference_forward(x, addl, params)
    assert out.shape == (B, 1), out.shape
    assert jnp.allclose(out, ref, rtol=1e-3, atol=1e-3), (out, ref)
    print("KERNEL_OK")
</pallas_src>

<mosaic_0001>
module attributes {stable_mosaic.version = 11 : i64} {
  func.func @_ct_regressor_kernel(%arg0: i32, %arg1: i32, %arg2: memref<1x1x182x4xbf16, #tpu.memory_space<vmem>>, %arg3: memref<9x4x32xbf16, #tpu.memory_space<vmem>>, %arg4: memref<1x32xf32, #tpu.memory_space<vmem>>, %arg5: memref<144x1xf32, #tpu.memory_space<vmem>>, %arg6: memref<1x1x4xf32, #tpu.memory_space<vmem>>, %arg7: memref<32x128xf32, #tpu.memory_space<vmem>>, %arg8: memref<4x128xf32, #tpu.memory_space<vmem>>, %arg9: memref<1x128xf32, #tpu.memory_space<vmem>>, %arg10: memref<128x64xf32, #tpu.memory_space<vmem>>, %arg11: memref<1x64xf32, #tpu.memory_space<vmem>>, %arg12: memref<64x32xf32, #tpu.memory_space<vmem>>, %arg13: memref<1x32xf32, #tpu.memory_space<vmem>>, %arg14: memref<32x1xf32, #tpu.memory_space<vmem>>, %arg15: memref<1x1xf32, #tpu.memory_space<vmem>>, %arg16: memref<1x1x1xf32, #tpu.memory_space<vmem>>, %arg17: memref<1x32xf32, #tpu.memory_space<vmem>>) attributes {dimension_semantics = [#tpu.dimension_semantics<parallel>, #tpu.dimension_semantics<arbitrary>], iteration_bounds = array<i64: 2, 2>, scalar_prefetch = 0 : i64, scratch_operands = 1 : i64, tpu.core_type = #tpu.core_type<tc>, window_params = [{transform_indices = @transform_0, window_bounds = array<i64: 1, 1, 182, 4>}, {pipeline_mode = #tpu.pipeline_mode<synchronous>, transform_indices = @transform_1, window_bounds = array<i64: 9, 4, 32>}, {pipeline_mode = #tpu.pipeline_mode<synchronous>, transform_indices = @transform_2, window_bounds = array<i64: 1, 32>}, {pipeline_mode = #tpu.pipeline_mode<synchronous>, transform_indices = @transform_3, window_bounds = array<i64: 144, 1>}, {transform_indices = @transform_4, window_bounds = array<i64: 1, 1, 4>}, {pipeline_mode = #tpu.pipeline_mode<synchronous>, transform_indices = @transform_5, window_bounds = array<i64: 32, 128>}, {pipeline_mode = #tpu.pipeline_mode<synchronous>, transform_indices = @transform_6, window_bounds = array<i64: 4, 128>}, {pipeline_mode = #tpu.pipeline_mode<synchronous>, transform_indices = @transform_7, window_bounds = array<i64: 1, 128>}, {pipeline_mode = #tpu.pipeline_mode<synchronous>, transform_indices = @transform_8, window_bounds = array<i64: 128, 64>}, {pipeline_mode = #tpu.pipeline_mode<synchronous>, transform_indices = @transform_9, window_bounds = array<i64: 1, 64>}, {pipeline_mode = #tpu.pipeline_mode<synchronous>, transform_indices = @transform_10, window_bounds = array<i64: 64, 32>}, {pipeline_mode = #tpu.pipeline_mode<synchronous>, transform_indices = @transform_11, window_bounds = array<i64: 1, 32>}, {pipeline_mode = #tpu.pipeline_mode<synchronous>, transform_indices = @transform_12, window_bounds = array<i64: 32, 1>}, {pipeline_mode = #tpu.pipeline_mode<synchronous>, transform_indices = @transform_13, window_bounds = array<i64: 1, 1>}, {transform_indices = @transform_14, window_bounds = array<i64: 1, 1, 1>}]} {
    %cst = arith.constant 0.000000e+00 : f32
    %0 = vector.broadcast %cst : f32 to vector<144x32xf32>
    %c0 = arith.constant 0 : index
    %c0_0 = arith.constant 0 : index
    %c0_1 = arith.constant 0 : index
    %c0_2 = arith.constant 0 : index
    %1 = vector.load %arg2[%c0, %c0_0, %c0_1, %c0_2] : memref<1x1x182x4xbf16, #tpu.memory_space<vmem>>, vector<1x1x144x4xbf16>
    %2 = vector.shape_cast %1 : vector<1x1x144x4xbf16> to vector<144x4xbf16>
    %c0_3 = arith.constant 0 : index
    %c0_4 = arith.constant 0 : index
    %c0_5 = arith.constant 0 : index
    %3 = vector.load %arg3[%c0_3, %c0_4, %c0_5] : memref<9x4x32xbf16, #tpu.memory_space<vmem>>, vector<1x4x32xbf16>
    %4 = vector.shape_cast %3 : vector<1x4x32xbf16> to vector<4x32xbf16>
    %cst_6 = arith.constant dense<0.000000e+00> : vector<144x32xf32>
    %5 = tpu.matmul %2, %4, %cst_6 {dimension_numbers = #tpu.dot_dimension_numbers<[1], [0], [0], [1], [0, 0, 1, 1], [], []>} : vector<144x4xbf16>, vector<4x32xbf16>, vector<144x32xf32> -> vector<144x32xf32>
    %6 = arith.addf %0, %5 : vector<144x32xf32>
    %c0_7 = arith.constant 0 : index
    %c0_8 = arith.constant 0 : index
    %c1 = arith.constant 1 : index
    %c0_9 = arith.constant 0 : index
    %7 = vector.load %arg2[%c0_7, %c0_8, %c1, %c0_9] : memref<1x1x182x4xbf16, #tpu.memory_space<vmem>>, vector<1x1x144x4xbf16>
    %8 = vector.shape_cast %7 : vector<1x1x144x4xbf16> to vector<144x4xbf16>
    %c1_10 = arith.constant 1 : index
    %c0_11 = arith.constant 0 : index
    %c0_12 = arith.constant 0 : index
    %9 = vector.load %arg3[%c1_10, %c0_11, %c0_12] : memref<9x4x32xbf16, #tpu.memory_space<vmem>>, vector<1x4x32xbf16>
    %10 = vector.shape_cast %9 : vector<1x4x32xbf16> to vector<4x32xbf16>
    %cst_13 = arith.constant dense<0.000000e+00> : vector<144x32xf32>
    %11 = tpu.matmul %8, %10, %cst_13 {dimension_numbers = #tpu.dot_dimension_numbers<[1], [0], [0], [1], [0, 0, 1, 1], [], []>} : vector<144x4xbf16>, vector<4x32xbf16>, vector<144x32xf32> -> vector<144x32xf32>
    %12 = arith.addf %6, %11 : vector<144x32xf32>
    %c0_14 = arith.constant 0 : index
    %c0_15 = arith.constant 0 : index
    %c2 = arith.constant 2 : index
    %c0_16 = arith.constant 0 : index
    %13 = vector.load %arg2[%c0_14, %c0_15, %c2, %c0_16] : memref<1x1x182x4xbf16, #tpu.memory_space<vmem>>, vector<1x1x144x4xbf16>
    %14 = vector.shape_cast %13 : vector<1x1x144x4xbf16> to vector<144x4xbf16>
    %c2_17 = arith.constant 2 : index
    %c0_18 = arith.constant 0 : index
    %c0_19 = arith.constant 0 : index
    %15 = vector.load %arg3[%c2_17, %c0_18, %c0_19] : memref<9x4x32xbf16, #tpu.memory_space<vmem>>, vector<1x4x32xbf16>
    %16 = vector.shape_cast %15 : vector<1x4x32xbf16> to vector<4x32xbf16>
    %cst_20 = arith.constant dense<0.000000e+00> : vector<144x32xf32>
    %17 = tpu.matmul %14, %16, %cst_20 {dimension_numbers = #tpu.dot_dimension_numbers<[1], [0], [0], [1], [0, 0, 1, 1], [], []>} : vector<144x4xbf16>, vector<4x32xbf16>, vector<144x32xf32> -> vector<144x32xf32>
    %18 = arith.addf %12, %17 : vector<144x32xf32>
    %c0_21 = arith.constant 0 : index
    %c0_22 = arith.constant 0 : index
    %c18 = arith.constant 18 : index
    %c0_23 = arith.constant 0 : index
    %19 = vector.load %arg2[%c0_21, %c0_22, %c18, %c0_23] : memref<1x1x182x4xbf16, #tpu.memory_space<vmem>>, vector<1x1x144x4xbf16>
    %20 = vector.shape_cast %19 : vector<1x1x144x4xbf16> to vector<144x4xbf16>
    %c3 = arith.constant 3 : index
    %c0_24 = arith.constant 0 : index
    %c0_25 = arith.constant 0 : index
    %21 = vector.load %arg3[%c3, %c0_24, %c0_25] : memref<9x4x32xbf16, #tpu.memory_space<vmem>>, vector<1x4x32xbf16>
    %22 = vector.shape_cast %21 : vector<1x4x32xbf16> to vector<4x32xbf16>
    %cst_26 = arith.constant dense<0.000000e+00> : vector<144x32xf32>
    %23 = tpu.matmul %20, %22, %cst_26 {dimension_numbers = #tpu.dot_dimension_numbers<[1], [0], [0], [1], [0, 0, 1, 1], [], []>} : vector<144x4xbf16>, vector<4x32xbf16>, vector<144x32xf32> -> vector<144x32xf32>
    %24 = arith.addf %18, %23 : vector<144x32xf32>
    %c0_27 = arith.constant 0 : index
    %c0_28 = arith.constant 0 : index
    %c19 = arith.constant 19 : index
    %c0_29 = arith.constant 0 : index
    %25 = vector.load %arg2[%c0_27, %c0_28, %c19, %c0_29] : memref<1x1x182x4xbf16, #tpu.memory_space<vmem>>, vector<1x1x144x4xbf16>
    %26 = vector.shape_cast %25 : vector<1x1x144x4xbf16> to vector<144x4xbf16>
    %c4 = arith.constant 4 : index
    %c0_30 = arith.constant 0 : index
    %c0_31 = arith.constant 0 : index
    %27 = vector.load %arg3[%c4, %c0_30, %c0_31] : memref<9x4x32xbf16, #tpu.memory_space<vmem>>, vector<1x4x32xbf16>
    %28 = vector.shape_cast %27 : vector<1x4x32xbf16> to vector<4x32xbf16>
    %cst_32 = arith.constant dense<0.000000e+00> : vector<144x32xf32>
    %29 = tpu.matmul %26, %28, %cst_32 {dimension_numbers = #tpu.dot_dimension_numbers<[1], [0], [0], [1], [0, 0, 1, 1], [], []>} : vector<144x4xbf16>, vector<4x32xbf16>, vector<144x32xf32> -> vector<144x32xf32>
    %30 = arith.addf %24, %29 : vector<144x32xf32>
    %c0_33 = arith.constant 0 : index
    %c0_34 = arith.constant 0 : index
    %c20 = arith.constant 20 : index
    %c0_35 = arith.constant 0 : index
    %31 = vector.load %arg2[%c0_33, %c0_34, %c20, %c0_35] : memref<1x1x182x4xbf16, #tpu.memory_space<vmem>>, vector<1x1x144x4xbf16>
    %32 = vector.shape_cast %31 : vector<1x1x144x4xbf16> to vector<144x4xbf16>
    %c5 = arith.constant 5 : index
    %c0_36 = arith.constant 0 : index
    %c0_37 = arith.constant 0 : index
    %33 = vector.load %arg3[%c5, %c0_36, %c0_37] : memref<9x4x32xbf16, #tpu.memory_space<vmem>>, vector<1x4x32xbf16>
    %34 = vector.shape_cast %33 : vector<1x4x32xbf16> to vector<4x32xbf16>
    %cst_38 = arith.constant dense<0.000000e+00> : vector<144x32xf32>
    %35 = tpu.matmul %32, %34, %cst_38 {dimension_numbers = #tpu.dot_dimension_numbers<[1], [0], [0], [1], [0, 0, 1, 1], [], []>} : vector<144x4xbf16>, vector<4x32xbf16>, vector<144x32xf32> -> vector<144x32xf32>
    %36 = arith.addf %30, %35 : vector<144x32xf32>
    %c0_39 = arith.constant 0 : index
    %c0_40 = arith.constant 0 : index
    %c36 = arith.constant 36 : index
    %c0_41 = arith.constant 0 : index
    %37 = vector.load %arg2[%c0_39, %c0_40, %c36, %c0_41] : memref<1x1x182x4xbf16, #tpu.memory_space<vmem>>, vector<1x1x144x4xbf16>
    %38 = vector.shape_cast %37 : vector<1x1x144x4xbf16> to vector<144x4xbf16>
    %c6 = arith.constant 6 : index
    %c0_42 = arith.constant 0 : index
    %c0_43 = arith.constant 0 : index
    %39 = vector.load %arg3[%c6, %c0_42, %c0_43] : memref<9x4x32xbf16, #tpu.memory_space<vmem>>, vector<1x4x32xbf16>
    %40 = vector.shape_cast %39 : vector<1x4x32xbf16> to vector<4x32xbf16>
    %cst_44 = arith.constant dense<0.000000e+00> : vector<144x32xf32>
    %41 = tpu.matmul %38, %40, %cst_44 {dimension_numbers = #tpu.dot_dimension_numbers<[1], [0], [0], [1], [0, 0, 1, 1], [], []>} : vector<144x4xbf16>, vector<4x32xbf16>, vector<144x32xf32> -> vector<144x32xf32>
    %42 = arith.addf %36, %41 : vector<144x32xf32>
    %c0_45 = arith.constant 0 : index
    %c0_46 = arith.constant 0 : index
    %c37 = arith.constant 37 : index
    %c0_47 = arith.constant 0 : index
    %43 = vector.load %arg2[%c0_45, %c0_46, %c37, %c0_47] : memref<1x1x182x4xbf16, #tpu.memory_space<vmem>>, vector<1x1x144x4xbf16>
    %44 = vector.shape_cast %43 : vector<1x1x144x4xbf16> to vector<144x4xbf16>
    %c7 = arith.constant 7 : index
    %c0_48 = arith.constant 0 : index
    %c0_49 = arith.constant 0 : index
    %45 = vector.load %arg3[%c7, %c0_48, %c0_49] : memref<9x4x32xbf16, #tpu.memory_space<vmem>>, vector<1x4x32xbf16>
    %46 = vector.shape_cast %45 : vector<1x4x32xbf16> to vector<4x32xbf16>
    %cst_50 = arith.constant dense<0.000000e+00> : vector<144x32xf32>
    %47 = tpu.matmul %44, %46, %cst_50 {dimension_numbers = #tpu.dot_dimension_numbers<[1], [0], [0], [1], [0, 0, 1, 1], [], []>} : vector<144x4xbf16>, vector<4x32xbf16>, vector<144x32xf32> -> vector<144x32xf32>
    %48 = arith.addf %42, %47 : vector<144x32xf32>
    %c0_51 = arith.constant 0 : index
    %c0_52 = arith.constant 0 : index
    %c38 = arith.constant 38 : index
    %c0_53 = arith.constant 0 : index
    %49 = vector.load %arg2[%c0_51, %c0_52, %c38, %c0_53] : memref<1x1x182x4xbf16, #tpu.memory_space<vmem>>, vector<1x1x144x4xbf16>
    %50 = vector.shape_cast %49 : vector<1x1x144x4xbf16> to vector<144x4xbf16>
    %c8 = arith.constant 8 : index
    %c0_54 = arith.constant 0 : index
    %c0_55 = arith.constant 0 : index
    %51 = vector.load %arg3[%c8, %c0_54, %c0_55] : memref<9x4x32xbf16, #tpu.memory_space<vmem>>, vector<1x4x32xbf16>
    %52 = vector.shape_cast %51 : vector<1x4x32xbf16> to vector<4x32xbf16>
    %cst_56 = arith.constant dense<0.000000e+00> : vector<144x32xf32>
    %53 = tpu.matmul %50, %52, %cst_56 {dimension_numbers = #tpu.dot_dimension_numbers<[1], [0], [0], [1], [0, 0, 1, 1], [], []>} : vector<144x4xbf16>, vector<4x32xbf16>, vector<144x32xf32> -> vector<144x32xf32>
    %54 = arith.addf %48, %53 : vector<144x32xf32>
    %c0_57 = arith.constant 0 : index
    %c0_58 = arith.constant 0 : index
    %55 = vector.load %arg4[%c0_57, %c0_58] : memref<1x32xf32, #tpu.memory_space<vmem>>, vector<1x32xf32>
    %56 = vector.broadcast %55 : vector<1x32xf32> to vector<144x32xf32>
    %57 = arith.addf %54, %56 : vector<144x32xf32>
    %cst_59 = arith.constant 0.000000e+00 : f32
    %58 = vector.broadcast %cst_59 : f32 to vector<144x32xf32>
    %59 = arith.maximumf %57, %58 : vector<144x32xf32>
    %c0_60 = arith.constant 0 : index
    %c0_61 = arith.constant 0 : index
    %60 = vector.load %arg5[%c0_60, %c0_61] : memref<144x1xf32, #tpu.memory_space<vmem>>, vector<144x1xf32>
    %61 = vector.broadcast %60 : vector<144x1xf32> to vector<144x32xf32>
    %62 = arith.mulf %59, %61 : vector<144x32xf32>
    %cst_62 = arith.constant dense<0.000000e+00> : vector<32xf32>
    %63 = vector.multi_reduction <add>, %62, %cst_62 [0] : vector<144x32xf32> to vector<32xf32>
    %64 = vector.shape_cast %63 : vector<32xf32> to vector<1x32xf32>
    %c0_i32 = arith.constant 0 : i32
    %65 = arith.cmpi eq, %arg1, %c0_i32 : i32
    %66 = arith.extui %65 : i1 to i32
    %c0_i32_63 = arith.constant 0 : i32
    %67 = arith.cmpi ne, %66, %c0_i32_63 : i32
    scf.if %67 {
      %cst_69 = arith.constant 0.000000e+00 : f32
      %74 = vector.broadcast %cst_69 : f32 to vector<1x32xf32>
      %c0_70 = arith.constant 0 : index
      %c0_71 = arith.constant 0 : index
      %75 = vector.load %arg17[%c0_70, %c0_71] : memref<1x32xf32, #tpu.memory_space<vmem>>, vector<1x32xf32>
      tpu.vector_store %arg17[%c0_70, %c0_71], %74 {strides = array<i32>} : memref<1x32xf32, #tpu.memory_space<vmem>>, vector<1x32xf32>,
    } else {
    }
    %c0_64 = arith.constant 0 : index
    %c0_65 = arith.constant 0 : index
    %68 = vector.load %arg17[%c0_64, %c0_65] : memref<1x32xf32, #tpu.memory_space<vmem>>, vector<1x32xf32>
    %69 = arith.addf %68, %64 : vector<1x32xf32>
    %c0_66 = arith.constant 0 : index
    %c0_67 = arith.constant 0 : index
    %70 = vector.load %arg17[%c0_66, %c0_67] : memref<1x32xf32, #tpu.memory_space<vmem>>, vector<1x32xf32>
    tpu.vector_store %arg17[%c0_66, %c0_67], %69 {strides = array<i32>} : memref<1x32xf32, #tpu.memory_space<vmem>>, vector<1x32xf32>,
    %c1_i32 = arith.constant 1 : i32
    %71 = arith.cmpi eq, %arg1, %c1_i32 : i32
    %72 = arith.extui %71 : i1 to i32
    %c0_i32_68 = arith.constant 0 : i32
    %73 = arith.cmpi ne, %72, %c0_i32_68 : i32
    scf.if %73 {
      %c0_69 = arith.constant 0 : index
      %c0_70 = arith.constant 0 : index
      %74 = vector.load %arg17[%c0_69, %c0_70] : memref<1x32xf32, #tpu.memory_space<vmem>>, vector<1x32xf32>
      %cst_71 = arith.constant 3.906250e-03 : f32
      %75 = vector.broadcast %cst_71 : f32 to vector<1x32xf32>
      %76 = arith.mulf %74, %75 : vector<1x32xf32>
      %c0_72 = arith.constant 0 : index
      %c0_73 = arith.constant 0 : index
      %77 = vector.load %arg7[%c0_72, %c0_73] : memref<32x128xf32, #tpu.memory_space<vmem>>, vector<32x128xf32>
      %cst_74 = arith.constant dense<0.000000e+00> : vector<1x128xf32>
      %78 = tpu.matmul %76, %77, %cst_74 {dimension_numbers = #tpu.dot_dimension_numbers<[1], [0], [0], [1], [0, 0, 1, 1], [], []>} : vector<1x32xf32>, vector<32x128xf32>, vector<1x128xf32> -> vector<1x128xf32>
      %c0_75 = arith.constant 0 : index
      %c0_76 = arith.constant 0 : index
      %c0_77 = arith.constant 0 : index
      %79 = vector.load %arg6[%c0_75, %c0_76, %c0_77] : memref<1x1x4xf32, #tpu.memory_space<vmem>>, vector<1x1x4xf32>
      %80 = vector.shape_cast %79 : vector<1x1x4xf32> to vector<1x4xf32>
      %c0_78 = arith.constant 0 : index
      %c0_79 = arith.constant 0 : index
      %81 = vector.load %arg8[%c0_78, %c0_79] : memref<4x128xf32, #tpu.memory_space<vmem>>, vector<4x128xf32>
      %cst_80 = arith.constant dense<0.000000e+00> : vector<1x128xf32>
      %82 = tpu.matmul %80, %81, %cst_80 {dimension_numbers = #tpu.dot_dimension_numbers<[1], [0], [0], [1], [0, 0, 1, 1], [], []>} : vector<1x4xf32>, vector<4x128xf32>, vector<1x128xf32> -> vector<1x128xf32>
      %83 = arith.addf %78, %82 : vector<1x128xf32>
      %c0_81 = arith.constant 0 : index
      %c0_82 = arith.constant 0 : index
      %84 = vector.load %arg9[%c0_81, %c0_82] : memref<1x128xf32, #tpu.memory_space<vmem>>, vector<1x128xf32>
      %85 = arith.addf %83, %84 : vector<1x128xf32>
      %cst_83 = arith.constant 0.000000e+00 : f32
      %86 = vector.broadcast %cst_83 : f32 to vector<1x128xf32>
      %87 = arith.maximumf %85, %86 : vector<1x128xf32>
      %c0_84 = arith.constant 0 : index
      %c0_85 = arith.constant 0 : index
      %88 = vector.load %arg10[%c0_84, %c0_85] : memref<128x64xf32, #tpu.memory_space<vmem>>, vector<128x64xf32>
      %cst_86 = arith.constant dense<0.000000e+00> : vector<1x64xf32>
      %89 = tpu.matmul %87, %88, %cst_86 {dimension_numbers = #tpu.dot_dimension_numbers<[1], [0], [0], [1], [0, 0, 1, 1], [], []>} : vector<1x128xf32>, vector<128x64xf32>, vector<1x64xf32> -> vector<1x64xf32>
      %c0_87 = arith.constant 0 : index
      %c0_88 = arith.constant 0 : index
      %90 = vector.load %arg11[%c0_87, %c0_88] : memref<1x64xf32, #tpu.memory_space<vmem>>, vector<1x64xf32>
      %91 = arith.addf %89, %90 : vector<1x64xf32>
      %cst_89 = arith.constant 0.000000e+00 : f32
      %92 = vector.broadcast %cst_89 : f32 to vector<1x64xf32>
      %93 = arith.maximumf %91, %92 : vector<1x64xf32>
      %c0_90 = arith.constant 0 : index
      %c0_91 = arith.constant 0 : index
      %94 = vector.load %arg12[%c0_90, %c0_91] : memref<64x32xf32, #tpu.memory_space<vmem>>, vector<64x32xf32>
      %cst_92 = arith.constant dense<0.000000e+00> : vector<1x32xf32>
      %95 = tpu.matmul %93, %94, %cst_92 {dimension_numbers = #tpu.dot_dimension_numbers<[1], [0], [0], [1], [0, 0, 1, 1], [], []>} : vector<1x64xf32>, vector<64x32xf32>, vector<1x32xf32> -> vector<1x32xf32>
      %c0_93 = arith.constant 0 : index
      %c0_94 = arith.constant 0 : index
      %96 = vector.load %arg13[%c0_93, %c0_94] : memref<1x32xf32, #tpu.memory_space<vmem>>, vector<1x32xf32>
      %97 = arith.addf %95, %96 : vector<1x32xf32>
      %cst_95 = arith.constant 0.000000e+00 : f32
      %98 = vector.broadcast %cst_95 : f32 to vector<1x32xf32>
      %99 = arith.maximumf %97, %98 : vector<1x32xf32>
      %c0_96 = arith.constant 0 : index
      %c0_97 = arith.constant 0 : index
      %100 = vector.load %arg14[%c0_96, %c0_97] : memref<32x1xf32, #tpu.memory_space<vmem>>, vector<32x1xf32>
      %cst_98 = arith.constant dense<0.000000e+00> : vector<1x1xf32>
      %101 = tpu.matmul %99, %100, %cst_98 {dimension_numbers = #tpu.dot_dimension_numbers<[1], [0], [0], [1], [0, 0, 1, 1], [], []>} : vector<1x32xf32>, vector<32x1xf32>, vector<1x1xf32> -> vector<1x1xf32>
      %c0_99 = arith.constant 0 : index
      %c0_100 = arith.constant 0 : index
      %102 = vector.load %arg15[%c0_99, %c0_100] : memref<1x1xf32, #tpu.memory_space<vmem>>, vector<1x1xf32>
      %103 = arith.addf %101, %102 : vector<1x1xf32>
      %c0_101 = arith.constant 0 : index
      %c0_102 = arith.constant 0 : index
      %c0_103 = arith.constant 0 : index
      %104 = vector.load %arg16[%c0_101, %c0_102, %c0_103] : memref<1x1x1xf32, #tpu.memory_space<vmem>>, vector<1x1x1xf32>
      %105 = vector.shape_cast %104 : vector<1x1x1xf32> to vector<1x1xf32>
      %106 = vector.shape_cast %103 : vector<1x1xf32> to vector<1x1x1xf32>
      tpu.vector_store %arg16[%c0_101, %c0_102, %c0_103], %106 {strides = array<i32>} : memref<1x1x1xf32, #tpu.memory_space<vmem>>, vector<1x1x1xf32>,
    } else {
    }
    return
  }
  func.func @transform_0(%arg0: i32, %arg1: i32) -> (i32, i32, i32, i32) {
    %c0_i32 = arith.constant 0 : i32
    %c0_i32_0 = arith.constant 0 : i32
    %c0_i32_1 = arith.constant 0 : i32
    return %arg0, %arg1, %c0_i32, %c0_i32_0 : i32, i32, i32, i32
  }
  func.func @transform_1(%arg0: i32, %arg1: i32) -> (i32, i32, i32) {
    %c0_i32 = arith.constant 0 : i32
    %c0_i32_0 = arith.constant 0 : i32
    %c0_i32_1 = arith.constant 0 : i32
    %c0_i32_2 = arith.constant 0 : i32
    return %c0_i32, %c0_i32_0, %c0_i32_1 : i32, i32, i32
  }
  func.func @transform_2(%arg0: i32, %arg1: i32) -> (i32, i32) {
    %c0_i32 = arith.constant 0 : i32
    %c0_i32_0 = arith.constant 0 : i32
    %c0_i32_1 = arith.constant 0 : i32
    return %c0_i32, %c0_i32_0 : i32, i32
  }
  func.func @transform_3(%arg0: i32, %arg1: i32) -> (i32, i32) {
    %c0_i32 = arith.constant 0 : i32
    %c0_i32_0 = arith.constant 0 : i32
    %c0_i32_1 = arith.constant 0 : i32
    return %c0_i32, %c0_i32_0 : i32, i32
  }
  func.func @transform_4(%arg0: i32, %arg1: i32) -> (i32, i32, i32) {
    %c0_i32 = arith.constant 0 : i32
    %c0_i32_0 = arith.constant 0 : i32
    %c0_i32_1 = arith.constant 0 : i32
    return %arg0, %c0_i32, %c0_i32_0 : i32, i32, i32
  }
  func.func @transform_5(%arg0: i32, %arg1: i32) -> (i32, i32) {
    %c0_i32 = arith.constant 0 : i32
    %c0_i32_0 = arith.constant 0 : i32
    %c0_i32_1 = arith.constant 0 : i32
    return %c0_i32, %c0_i32_0 : i32, i32
  }
  func.func @transform_6(%arg0: i32, %arg1: i32) -> (i32, i32) {
    %c0_i32 = arith.constant 0 : i32
    %c0_i32_0 = arith.constant 0 : i32
    %c0_i32_1 = arith.constant 0 : i32
    return %c0_i32, %c0_i32_0 : i32, i32
  }
  func.func @transform_7(%arg0: i32, %arg1: i32) -> (i32, i32) {
    %c0_i32 = arith.constant 0 : i32
    %c0_i32_0 = arith.constant 0 : i32
    %c0_i32_1 = arith.constant 0 : i32
    return %c0_i32, %c0_i32_0 : i32, i32
  }
  func.func @transform_8(%arg0: i32, %arg1: i32) -> (i32, i32) {
    %c0_i32 = arith.constant 0 : i32
    %c0_i32_0 = arith.constant 0 : i32
    %c0_i32_1 = arith.constant 0 : i32
    return %c0_i32, %c0_i32_0 : i32, i32
  }
  func.func @transform_9(%arg0: i32, %arg1: i32) -> (i32, i32) {
    %c0_i32 = arith.constant 0 : i32
    %c0_i32_0 = arith.constant 0 : i32
    %c0_i32_1 = arith.constant 0 : i32
    return %c0_i32, %c0_i32_0 : i32, i32
  }
  func.func @transform_10(%arg0: i32, %arg1: i32) -> (i32, i32) {
    %c0_i32 = arith.constant 0 : i32
    %c0_i32_0 = arith.constant 0 : i32
    %c0_i32_1 = arith.constant 0 : i32
    return %c0_i32, %c0_i32_0 : i32, i32
  }
  func.func @transform_11(%arg0: i32, %arg1: i32) -> (i32, i32) {
    %c0_i32 = arith.constant 0 : i32
    %c0_i32_0 = arith.constant 0 : i32
    %c0_i32_1 = arith.constant 0 : i32
    return %c0_i32, %c0_i32_0 : i32, i32
  }
  func.func @transform_12(%arg0: i32, %arg1: i32) -> (i32, i32) {
    %c0_i32 = arith.constant 0 : i32
    %c0_i32_0 = arith.constant 0 : i32
    %c0_i32_1 = arith.constant 0 : i32
    return %c0_i32, %c0_i32_0 : i32, i32
  }
  func.func @transform_13(%arg0: i32, %arg1: i32) -> (i32, i32) {
    %c0_i32 = arith.constant 0 : i32
    %c0_i32_0 = arith.constant 0 : i32
    %c0_i32_1 = arith.constant 0 : i32
    return %c0_i32, %c0_i32_0 : i32, i32
  }
  func.func @transform_14(%arg0: i32, %arg1: i32) -> (i32, i32, i32) {
    %c0_i32 = arith.constant 0 : i32
    %c0_i32_0 = arith.constant 0 : i32
    %c0_i32_1 = arith.constant 0 : i32
    return %arg0, %c0_i32, %c0_i32_0 : i32, i32, i32
  }
}

</mosaic_0001>

<llo_original>
// kernel: tpu_custom_call.1
$region0: #{tpu_custom_call.1}
  #allocation0 [shape = 'u32[]', space=smem, size = 0x4, offset = 0x4, fixed_abs, tag = 'smem constant byte address 0x4 - core index']
  #allocation1 [shape = 'u32[144,128]{1,0:T(1,128)}', space=vmem, size = 0x12000, scoped, tag = 'internal scratch']
  #allocation2 [shape = 'f32[1,32]{1,0:T(1,128)}', space=vmem, size = 0x200, scoped, tag = 'scratch operand']
  #allocation3 [shape = 'f32[1,1]{1,0:T(1,128)S(1)}', space=vmem, size = 0x200, scoped, tag = 'scoped memory for tpu_custom_call.1']
  %s0 = inlined_call_operand.vmem [shape: bf16[2,2,182,4], index: 0, kind: input, shape index: {}]
  %s1 = inlined_call_operand.vmem [shape: bf16[9,4,32], index: 1, kind: input, shape index: {}]
  %s2 = inlined_call_operand.vmem [shape: f32[1,32], index: 2, kind: input, shape index: {}]
  %s3 = inlined_call_operand.vmem [shape: f32[144,1], index: 3, kind: input, shape index: {}]
  %s4 = inlined_call_operand.vmem [shape: f32[2,1,4], index: 4, kind: input, shape index: {}]
  %s5 = inlined_call_operand.vmem [shape: f32[32,128], index: 5, kind: input, shape index: {}]
  %s6 = inlined_call_operand.vmem [shape: f32[4,128], index: 6, kind: input, shape index: {}]
  %s7 = inlined_call_operand.vmem [shape: f32[1,128], index: 7, kind: input, shape index: {}]
  %s8 = inlined_call_operand.vmem [shape: f32[128,64], index: 8, kind: input, shape index: {}]
  %s9 = inlined_call_operand.vmem [shape: f32[1,64], index: 9, kind: input, shape index: {}]
  %s10 = inlined_call_operand.vmem [shape: f32[64,32], index: 10, kind: input, shape index: {}]
  %s11 = inlined_call_operand.vmem [shape: f32[1,32], index: 11, kind: input, shape index: {}]
  %s12 = inlined_call_operand.vmem [shape: f32[32,1], index: 12, kind: input, shape index: {}]
  %s13 = inlined_call_operand.<no memory space> [shape: f32[1,1], index: 13, kind: input, shape index: {}]
  %s14 = inlined_call_operand.vmem [shape: f32[2,1,1], index: 14, kind: output, shape index: {}]
  %s15 = sld [smem:[#allocation0]]
  $region97: #{tpu_custom_call.1} parent=0
    _
  %s17 = ssub.s32 1, %s15
  %s18 = scalar_select 0, %s17, %s15
  %v19 = vstv %s13
  %20 = vst [vmem:[#allocation3] sm:$0x1] %v19
  loop: start=0, step=1, limit=6
  $region2: #{tpu_custom_call.1} parent=0 // loop_pre_header
    _
  $region3: #{tpu_custom_call.1} parent=0 // loop_header
    %s22 = sphi 0, %s26
    %p23 = scmp.ge.s32.totalorder %s22, 6
    %s29 = sphi 0, %s41
    %s30 = sphi 0, %s37
    %s31 = sphi 0, %s29
    %s32 = sphi 0, %s30
    %s33 = sphi 0, %s31
    %s34 = sphi 0, %s32
    %s46 = sphi 0, %s48
    %s49 = sphi 0, %s46
    %s50 = sphi 0, %s49
    %s66 = sphi 0, %s50
    %s70 = sphi 0, %s70
    %s72 = sphi 0, %s70
    %s73 = sphi 0, %s72
    %s87 = sphi 0, %s73
    %s91 = sphi 0, %s91
    %s93 = sphi 0, %s91
    %s94 = sphi 0, %s93
    %s108 = sphi 0, %s94
    %s112 = sphi 0, %s112
    %s114 = sphi 0, %s112
    %s115 = sphi 0, %s114
    %s129 = sphi 0, %s115
    %s135 = sphi 0, %s137
    %s138 = sphi 0, %s135
    %s139 = sphi 0, %s138
    %s155 = sphi 0, %s139
    %s159 = sphi 0, %s159
    %s161 = sphi 0, %s159
    %s162 = sphi 0, %s161
    %s176 = sphi 0, %s162
    %s180 = sphi 0, %s180
    %s182 = sphi 0, %s180
    %s183 = sphi 0, %s182
    %s197 = sphi 0, %s183
    %s201 = sphi 0, %s201
    %s203 = sphi 0, %s201
    %s204 = sphi 0, %s203
    %s218 = sphi 0, %s204
    %s222 = sphi 0, %s222
    %s224 = sphi 0, %s222
    %s225 = sphi 0, %s224
    %s239 = sphi 0, %s225
    %s243 = sphi 0, %s243
    %s245 = sphi 0, %s243
    %s246 = sphi 0, %s245
    %s260 = sphi 0, %s246
    %s264 = sphi 0, %s264
    %s266 = sphi 0, %s264
    %s267 = sphi 0, %s266
    %s281 = sphi 0, %s267
    %s285 = sphi 0, %s285
    %s287 = sphi 0, %s285
    %s288 = sphi 0, %s287
    %s302 = sphi 0, %s288
    %s306 = sphi 0, %s306
    %s308 = sphi 0, %s306
    %s309 = sphi 0, %s308
    %s323 = sphi 0, %s309
    %s327 = sphi 0, %s327
    %s329 = sphi 0, %s327
    %s330 = sphi 0, %s329
    %s344 = sphi 0, %s330
    %s350 = sphi 0, %s352
    %s353 = sphi 0, %s350
    %s354 = sphi 0, %s353
    %s370 = sphi 0, %s354
  $region4: #{tpu_custom_call.1} parent=0 // loop_header_branch
    %25 = sbr.rel (%p23) target = $region8
  $region5: #{tpu_custom_call.1} parent=0 // loop_body
    %s27 = ssub.s32 %s22, 1
    %s28 = ssub.s32 %s22, 2
    %s35 = sadd.s32 1, %s30
    %p36 = scmp.ge.s32.totalorder %s35, 2
    %s37 = scalar_select %p36, 0, %s35
    %s38 = sadd.s32 1, %s29
    %s39 = scalar_select %p36, %s38, %s29
    %p40 = scmp.ge.s32.totalorder %s39, 2
    %s41 = scalar_select %p40, 0, %s39
    %s42 = ssub.s32 %s29, %s41
    %s43 = ssub.s32 %s30, %s37
    %s44 = sor.u32 %s42, %s43
    %p45 = scmp.eq.s32.totalorder %s44, 0
    %s47 = sadd.s32 %s46, 1
    %s48 = scalar_select %p45, %s46, %s47
    %p51 = pneg %p45
    %p52 = scmp.eq.s32.totalorder %s22, 3
    %p53 = por %p51, %p52
    %p54 = scmp.ne.s32.totalorder %s46, %s49
    %p55 = scmp.eq.s32.totalorder %s22, 0
    %p56 = por %p54, %p55
    %p57 = scmp.ne.s32.totalorder %s46, %s49
    %p58 = scmp.eq.s32.totalorder %s27, 3
    %p59 = por %p57, %p58
    %p60 = scmp.ne.s32.totalorder %s49, %s50
    %p61 = scmp.eq.s32.totalorder %s27, 0
    %p62 = por %p60, %p61
    %p63 = scmp.ne.s32.totalorder %s49, %s50
    %p64 = scmp.eq.s32.totalorder %s28, 3
    %p65 = por %p63, %p64
    %p67 = scmp.ne.s32.totalorder %s50, %s66
    %p68 = scmp.eq.s32.totalorder %s28, 0
    %p69 = por %p67, %p68
    %s71 = sadd.s32 %s70, 1
    %p74 = scmp.eq.s32.totalorder %s22, 3
    %p75 = scmp.ne.s32.totalorder %s70, %s72
    %p76 = scmp.eq.s32.totalorder %s22, 0
    %p77 = por %p75, %p76
    %p78 = scmp.ne.s32.totalorder %s70, %s72
    %p79 = scmp.eq.s32.totalorder %s27, 3
    %p80 = por %p78, %p79
    %p81 = scmp.ne.s32.totalorder %s72, %s73
    %p82 = scmp.eq.s32.totalorder %s27, 0
    %p83 = por %p81, %p82
    %p84 = scmp.ne.s32.totalorder %s72, %s73
    %p85 = scmp.eq.s32.totalorder %s28, 3
    %p86 = por %p84, %p85
    %p88 = scmp.ne.s32.totalorder %s73, %s87
    %p89 = scmp.eq.s32.totalorder %s28, 0
    %p90 = por %p88, %p89
    %s92 = sadd.s32 %s91, 1
    %p95 = scmp.eq.s32.totalorder %s22, 3
    %p96 = scmp.ne.s32.totalorder %s91, %s93
    %p97 = scmp.eq.s32.totalorder %s22, 0
    %p98 = por %p96, %p97
    %p99 = scmp.ne.s32.totalorder %s91, %s93
    %p100 = scmp.eq.s32.totalorder %s27, 3
    %p101 = por %p99, %p100
    %p102 = scmp.ne.s32.totalorder %s93, %s94
    %p103 = scmp.eq.s32.totalorder %s27, 0
    %p104 = por %p102, %p103
    %p105 = scmp.ne.s32.totalorder %s93, %s94
    %p106 = scmp.eq.s32.totalorder %s28, 3
    %p107 = por %p105, %p106
    %p109 = scmp.ne.s32.totalorder %s94, %s108
    %p110 = scmp.eq.s32.totalorder %s28, 0
    %p111 = por %p109, %p110
    %s113 = sadd.s32 %s112, 1
    %p116 = scmp.eq.s32.totalorder %s22, 3
    %p117 = scmp.ne.s32.totalorder %s112, %s114
    %p118 = scmp.eq.s32.totalorder %s22, 0
    %p119 = por %p117, %p118
    %p120 = scmp.ne.s32.totalorder %s112, %s114
    %p121 = scmp.eq.s32.totalorder %s27, 3
    %p122 = por %p120, %p121
    %p123 = scmp.ne.s32.totalorder %s114, %s115
    %p124 = scmp.eq.s32.totalorder %s27, 0
    %p125 = por %p123, %p124
    %p126 = scmp.ne.s32.totalorder %s114, %s115
    %p127 = scmp.eq.s32.totalorder %s28, 3
    %p128 = por %p126, %p127
    %p130 = scmp.ne.s32.totalorder %s115, %s129
    %p131 = scmp.eq.s32.totalorder %s28, 0
    %p132 = por %p130, %p131
    %s133 = ssub.s32 %s29, %s41
    %p134 = scmp.eq.s32.totalorder %s133, 0
    %s136 = sadd.s32 %s135, 1
    %s137 = scalar_select %p134, %s135, %s136
    %p140 = pneg %p134
    %p141 = scmp.eq.s32.totalorder %s22, 3
    %p142 = por %p140, %p141
    %p143 = scmp.ne.s32.totalorder %s135, %s138
    %p144 = scmp.eq.s32.totalorder %s22, 0
    %p145 = por %p143, %p144
    %p146 = scmp.ne.s32.totalorder %s135, %s138
    %p147 = scmp.eq.s32.totalorder %s27, 3
    %p148 = por %p146, %p147
    %p149 = scmp.ne.s32.totalorder %s138, %s139
    %p150 = scmp.eq.s32.totalorder %s27, 0
    %p151 = por %p149, %p150
    %p152 = scmp.ne.s32.totalorder %s138, %s139
    %p153 = scmp.eq.s32.totalorder %s28, 3
    %p154 = por %p152, %p153
    %p156 = scmp.ne.s32.totalorder %s139, %s155
    %p157 = scmp.eq.s32.totalorder %s28, 0
    %p158 = por %p156, %p157
    %s160 = sadd.s32 %s159, 1
    %p163 = scmp.eq.s32.totalorder %s22, 3
    %p164 = scmp.ne.s32.totalorder %s159, %s161
    %p165 = scmp.eq.s32.totalorder %s22, 0
    %p166 = por %p164, %p165
    %p167 = scmp.ne.s32.totalorder %s159, %s161
    %p168 = scmp.eq.s32.totalorder %s27, 3
    %p169 = por %p167, %p168
    %p170 = scmp.ne.s32.totalorder %s161, %s162
    %p171 = scmp.eq.s32.totalorder %s27, 0
    %p172 = por %p170, %p171
    %p173 = scmp.ne.s32.totalorder %s161, %s162
    %p174 = scmp.eq.s32.totalorder %s28, 3
    %p175 = por %p173, %p174
    %p177 = scmp.ne.s32.totalorder %s162, %s176
    %p178 = scmp.eq.s32.totalorder %s28, 0
    %p179 = por %p177, %p178
    %s181 = sadd.s32 %s180, 1
    %p184 = scmp.eq.s32.totalorder %s22, 3
    %p185 = scmp.ne.s32.totalorder %s180, %s182
    %p186 = scmp.eq.s32.totalorder %s22, 0
    %p187 = por %p185, %p186
    %p188 = scmp.ne.s32.totalorder %s180, %s182
    %p189 = scmp.eq.s32.totalorder %s27, 3
    %p190 = por %p188, %p189
    %p191 = scmp.ne.s32.totalorder %s182, %s183
    %p192 = scmp.eq.s32.totalorder %s27, 0
    %p193 = por %p191, %p192
    %p194 = scmp.ne.s32.totalorder %s182, %s183
    %p195 = scmp.eq.s32.totalorder %s28, 3
    %p196 = por %p194, %p195
    %p198 = scmp.ne.s32.totalorder %s183, %s197
    %p199 = scmp.eq.s32.totalorder %s28, 0
    %p200 = por %p198, %p199
    %s202 = sadd.s32 %s201, 1
    %p205 = scmp.eq.s32.totalorder %s22, 3
    %p206 = scmp.ne.s32.totalorder %s201, %s203
    %p207 = scmp.eq.s32.totalorder %s22, 0
    %p208 = por %p206, %p207
    %p209 = scmp.ne.s32.totalorder %s201, %s203
    %p210 = scmp.eq.s32.totalorder %s27, 3
    %p211 = por %p209, %p210
    %p212 = scmp.ne.s32.totalorder %s203, %s204
    %p213 = scmp.eq.s32.totalorder %s27, 0
    %p214 = por %p212, %p213
    %p215 = scmp.ne.s32.totalorder %s203, %s204
    %p216 = scmp.eq.s32.totalorder %s28, 3
    %p217 = por %p215, %p216
    %p219 = scmp.ne.s32.totalorder %s204, %s218
    %p220 = scmp.eq.s32.totalorder %s28, 0
    %p221 = por %p219, %p220
    %s223 = sadd.s32 %s222, 1
    %p226 = scmp.eq.s32.totalorder %s22, 3
    %p227 = scmp.ne.s32.totalorder %s222, %s224
    %p228 = scmp.eq.s32.totalorder %s22, 0
    %p229 = por %p227, %p228
    %p230 = scmp.ne.s32.totalorder %s222, %s224
    %p231 = scmp.eq.s32.totalorder %s27, 3
    %p232 = por %p230, %p231
    %p233 = scmp.ne.s32.totalorder %s224, %s225
    %p234 = scmp.eq.s32.totalorder %s27, 0
    %p235 = por %p233, %p234
    %p236 = scmp.ne.s32.totalorder %s224, %s225
    %p237 = scmp.eq.s32.totalorder %s28, 3
    %p238 = por %p236, %p237
    %p240 = scmp.ne.s32.totalorder %s225, %s239
    %p241 = scmp.eq.s32.totalorder %s28, 0
    %p242 = por %p240, %p241
    %s244 = sadd.s32 %s243, 1
    %p247 = scmp.eq.s32.totalorder %s22, 3
    %p248 = scmp.ne.s32.totalorder %s243, %s245
    %p249 = scmp.eq.s32.totalorder %s22, 0
    %p250 = por %p248, %p249
    %p251 = scmp.ne.s32.totalorder %s243, %s245
    %p252 = scmp.eq.s32.totalorder %s27, 3
    %p253 = por %p251, %p252
    %p254 = scmp.ne.s32.totalorder %s245, %s246
    %p255 = scmp.eq.s32.totalorder %s27, 0
    %p256 = por %p254, %p255
    %p257 = scmp.ne.s32.totalorder %s245, %s246
    %p258 = scmp.eq.s32.totalorder %s28, 3
    %p259 = por %p257, %p258
    %p261 = scmp.ne.s32.totalorder %s246, %s260
    %p262 = scmp.eq.s32.totalorder %s28, 0
    %p263 = por %p261, %p262
    %s265 = sadd.s32 %s264, 1
    %p268 = scmp.eq.s32.totalorder %s22, 3
    %p269 = scmp.ne.s32.totalorder %s264, %s266
    %p270 = scmp.eq.s32.totalorder %s22, 0
    %p271 = por %p269, %p270
    %p272 = scmp.ne.s32.totalorder %s264, %s266
    %p273 = scmp.eq.s32.totalorder %s27, 3
    %p274 = por %p272, %p273
    %p275 = scmp.ne.s32.totalorder %s266, %s267
    %p276 = scmp.eq.s32.totalorder %s27, 0
    %p277 = por %p275, %p276
    %p278 = scmp.ne.s32.totalorder %s266, %s267
    %p279 = scmp.eq.s32.totalorder %s28, 3
    %p280 = por %p278, %p279
    %p282 = scmp.ne.s32.totalorder %s267, %s281
    %p283 = scmp.eq.s32.totalorder %s28, 0
    %p284 = por %p282, %p283
    %s286 = sadd.s32 %s285, 1
    %p289 = scmp.eq.s32.totalorder %s22, 3
    %p290 = scmp.ne.s32.totalorder %s285, %s287
    %p291 = scmp.eq.s32.totalorder %s22, 0
    %p292 = por %p290, %p291
    %p293 = scmp.ne.s32.totalorder %s285, %s287
    %p294 = scmp.eq.s32.totalorder %s27, 3
    %p295 = por %p293, %p294
    %p296 = scmp.ne.s32.totalorder %s287, %s288
    %p297 = scmp.eq.s32.totalorder %s27, 0
    %p298 = por %p296, %p297
    %p299 = scmp.ne.s32.totalorder %s287, %s288
    %p300 = scmp.eq.s32.totalorder %s28, 3
    %p301 = por %p299, %p300
    %p303 = scmp.ne.s32.totalorder %s288, %s302
    %p304 = scmp.eq.s32.totalorder %s28, 0
    %p305 = por %p303, %p304
    %s307 = sadd.s32 %s306, 1
    %p310 = scmp.eq.s32.totalorder %s22, 3
    %p311 = scmp.ne.s32.totalorder %s306, %s308
    %p312 = scmp.eq.s32.totalorder %s22, 0
    %p313 = por %p311, %p312
    %p314 = scmp.ne.s32.totalorder %s306, %s308
    %p315 = scmp.eq.s32.totalorder %s27, 3
    %p316 = por %p314, %p315
    %p317 = scmp.ne.s32.totalorder %s308, %s309
    %p318 = scmp.eq.s32.totalorder %s27, 0
    %p319 = por %p317, %p318
    %p320 = scmp.ne.s32.totalorder %s308, %s309
    %p321 = scmp.eq.s32.totalorder %s28, 3
    %p322 = por %p320, %p321
    %p324 = scmp.ne.s32.totalorder %s309, %s323
    %p325 = scmp.eq.s32.totalorder %s28, 0
    %p326 = por %p324, %p325
    %s328 = sadd.s32 %s327, 1
    %p331 = scmp.eq.s32.totalorder %s22, 3
    %p332 = scmp.ne.s32.totalorder %s327, %s329
    %p333 = scmp.eq.s32.totalorder %s22, 0
    %p334 = por %p332, %p333
    %p335 = scmp.ne.s32.totalorder %s327, %s329
    %p336 = scmp.eq.s32.totalorder %s27, 3
    %p337 = por %p335, %p336
    %p338 = scmp.ne.s32.totalorder %s329, %s330
    %p339 = scmp.eq.s32.totalorder %s27, 0
    %p340 = por %p338, %p339
    %p341 = scmp.ne.s32.totalorder %s329, %s330
    %p342 = scmp.eq.s32.totalorder %s28, 3
    %p343 = por %p341, %p342
    %p345 = scmp.ne.s32.totalorder %s330, %s344
    %p346 = scmp.eq.s32.totalorder %s28, 0
    %p347 = por %p345, %p346
    %s348 = ssub.s32 %s29, %s41
    %p349 = scmp.eq.s32.totalorder %s348, 0
    %s351 = sadd.s32 %s350, 1
    %s352 = scalar_select %p349, %s350, %s351
    %p355 = pneg %p349
    %p356 = scmp.eq.s32.totalorder %s22, 3
    %p357 = por %p355, %p356
    %p358 = scmp.ne.s32.totalorder %s350, %s353
    %p359 = scmp.eq.s32.totalorder %s22, 0
    %p360 = por %p358, %p359
    %p361 = scmp.ne.s32.totalorder %s350, %s353
    %p362 = scmp.eq.s32.totalorder %s27, 3
    %p363 = por %p361, %p362
    %p364 = scmp.ne.s32.totalorder %s353, %s354
    %p365 = scmp.eq.s32.totalorder %s27, 0
    %p366 = por %p364, %p365
    %p367 = scmp.ne.s32.totalorder %s353, %s354
    %p368 = scmp.eq.s32.totalorder %s28, 3
    %p369 = por %p367, %p368
    %p371 = scmp.ne.s32.totalorder %s354, %s370
    %p372 = scmp.eq.s32.totalorder %s28, 0
    %p373 = por %p371, %p372
    %p374 = scmp.le.s32.totalorder 1, %s22
    %p375 = scmp.lt.s32.totalorder %s22, 5
    %p376 = pnand %p374, %p375
    %p377 = pneg %p376
    // Predicated region
    $region9: #{tpu_custom_call.1} parent=5 // pred_check
      _
    $region10: #{tpu_custom_call.1} parent=5 // pred_check_branch
      %379 = sbr.rel (%p376) target = $region12
    $region11: #{tpu_custom_call.1} parent=5 // pred_region
      %s380 = ssub.s32 %s22, 1
      // Predicated region
      $region13: #{tpu_custom_call.1} parent=11 // pred_check
        %p381 = pneg %p83
      $region14: #{tpu_custom_call.1} parent=11 // pred_check_branch
        %383 = sbr.rel (%p381) target = $region16
      $region15: #{tpu_custom_call.1} parent=11 // pred_region
        _
      $region16: #{tpu_custom_call.1} parent=11 // pred_fallthru
        _
      // Predicated region
      $region17: #{tpu_custom_call.1} parent=11 // pred_check
        %p384 = pneg %p104
      $region18: #{tpu_custom_call.1} parent=11 // pred_check_branch
        %386 = sbr.rel (%p384) target = $region20
      $region19: #{tpu_custom_call.1} parent=11 // pred_region
        _
      $region20: #{tpu_custom_call.1} parent=11 // pred_fallthru
        _
      // Predicated region
      $region21: #{tpu_custom_call.1} parent=11 // pred_check
        %p387 = pneg %p125
      $region22: #{tpu_custom_call.1} parent=11 // pred_check_branch
        %389 = sbr.rel (%p387) target = $region24
      $region23: #{tpu_custom_call.1} parent=11 // pred_region
        _
      $region24: #{tpu_custom_call.1} parent=11 // pred_fallthru
        _
      // Predicated region
      $region25: #{tpu_custom_call.1} parent=11 // pred_check
        %p390 = pneg %p172
      $region26: #{tpu_custom_call.1} parent=11 // pred_check_branch
        %392 = sbr.rel (%p390) target = $region28
      $region27: #{tpu_custom_call.1} parent=11 // pred_region
        _
      $region28: #{tpu_custom_call.1} parent=11 // pred_fallthru
        _
      // Predicated region
      $region29: #{tpu_custom_call.1} parent=11 // pred_check
        %p393 = pneg %p193
      $region30: #{tpu_custom_call.1} parent=11 // pred_check_branch
        %395 = sbr.rel (%p393) target = $region32
      $region31: #{tpu_custom_call.1} parent=11 // pred_region
        _
      $region32: #{tpu_custom_call.1} parent=11 // pred_fallthru
        _
      // Predicated region
      $region33: #{tpu_custom_call.1} parent=11 // pred_check
        %p396 = pneg %p214
      $region34: #{tpu_custom_call.1} parent=11 // pred_check_branch
        %398 = sbr.rel (%p396) target = $region36
      $region35: #{tpu_custom_call.1} parent=11 // pred_region
        _
      $region36: #{tpu_custom_call.1} parent=11 // pred_fallthru
        _
      // Predicated region
      $region37: #{tpu_custom_call.1} parent=11 // pred_check
        %p399 = pneg %p235
      $region38: #{tpu_custom_call.1} parent=11 // pred_check_branch
        %401 = sbr.rel (%p399) target = $region40
      $region39: #{tpu_custom_call.1} parent=11 // pred_region
        _
      $region40: #{tpu_custom_call.1} parent=11 // pred_fallthru
        _
      // Predicated region
      $region41: #{tpu_custom_call.1} parent=11 // pred_check
        %p402 = pneg %p256
      $region42: #{tpu_custom_call.1} parent=11 // pred_check_branch
        %404 = sbr.rel (%p402) target = $region44
      $region43: #{tpu_custom_call.1} parent=11 // pred_region
        _
      $region44: #{tpu_custom_call.1} parent=11 // pred_fallthru
        _
      // Predicated region
      $region45: #{tpu_custom_call.1} parent=11 // pred_check
        %p405 = pneg %p277
      $region46: #{tpu_custom_call.1} parent=11 // pred_check_branch
        %407 = sbr.rel (%p405) target = $region48
      $region47: #{tpu_custom_call.1} parent=11 // pred_region
        _
      $region48: #{tpu_custom_call.1} parent=11 // pred_fallthru
        _
      // Predicated region
      $region49: #{tpu_custom_call.1} parent=11 // pred_check
        %p408 = pneg %p298
      $region50: #{tpu_custom_call.1} parent=11 // pred_check_branch
        %410 = sbr.rel (%p408) target = $region52
      $region51: #{tpu_custom_call.1} parent=11 // pred_region
        _
      $region52: #{tpu_custom_call.1} parent=11 // pred_fallthru
        _
      // Predicated region
      $region53: #{tpu_custom_call.1} parent=11 // pred_check
        %p411 = pneg %p319
      $region54: #{tpu_custom_call.1} parent=11 // pred_check_branch
        %413 = sbr.rel (%p411) target = $region56
      $region55: #{tpu_custom_call.1} parent=11 // pred_region
        _
      $region56: #{tpu_custom_call.1} parent=11 // pred_fallthru
        _
      // Predicated region
      $region57: #{tpu_custom_call.1} parent=11 // pred_check
        %p414 = pneg %p340
      $region58: #{tpu_custom_call.1} parent=11 // pred_check_branch
        %416 = sbr.rel (%p414) target = $region60
      $region59: #{tpu_custom_call.1} parent=11 // pred_region
        _
      $region60: #{tpu_custom_call.1} parent=11 // pred_fallthru
        _
    $region12: #{tpu_custom_call.1} parent=5 // pred_fallthru
      _
    %p417 = scmp.lt.s32.totalorder %s22, 4
    // Predicated region
    $region61: #{tpu_custom_call.1} parent=5 // pred_check
      %p418 = pneg %p417
    $region62: #{tpu_custom_call.1} parent=5 // pred_check_branch
      %420 = sbr.rel (%p418) target = $region64
    $region63: #{tpu_custom_call.1} parent=5 // pred_region
      // Predicated region
      $region65: #{tpu_custom_call.1} parent=63 // pred_check
        %p421 = pneg %p56
      $region66: #{tpu_custom_call.1} parent=63 // pred_check_branch
        %423 = sbr.rel (%p421) target = $region68
      $region67: #{tpu_custom_call.1} parent=63 // pred_region
        %p424 = scmp.lt.s32.totalorder %s29, 1
        %s425 = scalar_select %p424, %s29, 1
        %p426 = scmp.lt.s32.totalorder %s30, 1
        %s427 = scalar_select %p426, %s30, 1
        %s428 = smul.addr %s427, 23
        %s429 = smul.addr %s425, 46
        %s430 = sadd.s32 %s428, %s429
        %s431 = smul.addr %s430, 4
        %s432 = scalar_lea.vmem %s0, %s431
      $region68: #{tpu_custom_call.1} parent=63 // pred_fallthru
        _
      // Predicated region
      $region69: #{tpu_custom_call.1} parent=63 // pred_check
        %p433 = pneg %p145
      $region70: #{tpu_custom_call.1} parent=63 // pred_check_branch
        %435 = sbr.rel (%p433) target = $region72
      $region71: #{tpu_custom_call.1} parent=63 // pred_region
        %p436 = scmp.lt.s32.totalorder %s29, 1
        %s437 = scalar_select %p436, %s29, 1
        %s438 = scalar_lea.vmem %s4, %s437
      $region72: #{tpu_custom_call.1} parent=63 // pred_fallthru
        _
    $region64: #{tpu_custom_call.1} parent=5 // pred_fallthru
      _
    %p439 = scmp.le.s32.totalorder 1, %s22
    %p440 = scmp.lt.s32.totalorder %s22, 5
    %p441 = pnand %p439, %p440
    %p442 = pneg %p441
    // Predicated region
    $region73: #{tpu_custom_call.1} parent=5 // pred_check
      _
    $region74: #{tpu_custom_call.1} parent=5 // pred_check_branch
      %444 = sbr.rel (%p441) target = $region76
    $region75: #{tpu_custom_call.1} parent=5 // pred_region
      %s445 = ssub.s32 %s22, 1
      %p446 = scmp.lt.s32.totalorder %s31, 1
      %s447 = scalar_select %p446, %s31, 1
      %p448 = scmp.lt.s32.totalorder %s32, 1
      %s449 = scalar_select %p448, %s32, 1
      %s450 = smul.addr %s449, 23
      %s451 = smul.addr %s447, 46
      %s452 = sadd.s32 %s450, %s451
      %s453 = smul.addr %s452, 4
      %s454 = scalar_lea.vmem %s0, %s453
      %p455 = pneg %p62
      %p456 = pneg %p59
      %p457 = pneg %p83
      %p458 = pneg %p80
      %p459 = pneg %p104
      %p460 = pneg %p101
      %p461 = pneg %p125
      %p462 = pneg %p122
      %p463 = scmp.lt.s32.totalorder %s31, 1
      %s464 = scalar_select %p463, %s31, 1
      %s465 = scalar_lea.vmem %s4, %s464
      %p466 = pneg %p151
      %p467 = pneg %p148
      %p468 = pneg %p172
      %p469 = pneg %p169
      %p470 = pneg %p193
      %p471 = pneg %p190
      %p472 = pneg %p214
      %p473 = pneg %p211
      %p474 = pneg %p235
      %p475 = pneg %p232
      %p476 = pneg %p256
      %p477 = pneg %p253
      %p478 = pneg %p277
      %p479 = pneg %p274
      %p480 = pneg %p298
      %p481 = pneg %p295
      %p482 = pneg %p319
      %p483 = pneg %p316
      %p484 = pneg %p340
      %p485 = pneg %p337
      %p486 = pneg %p366
      %p487 = pneg %p363
      %p488 = scmp.lt.s32.totalorder %s31, 1
      %s489 = scalar_select %p488, %s31, 1
      %s490 = scalar_lea.vmem %s14, %s489
      %p491 = scmp.lt.s32.totalorder %s31, 1
      %s492 = scalar_select %p491, %s31, 1
      %p493 = scmp.lt.s32.totalorder %s32, 1
      %s494 = scalar_select %p493, %s32, 1
      %s495 = smul.addr %s494, 23
      %s496 = smul.addr %s492, 46
      %s497 = sadd.s32 %s495, %s496
      %s498 = smul.addr %s497, 4
      %s499 = scalar_lea.vmem %s0, %s498
      %p500 = scmp.lt.s32.totalorder %s31, 1
      %s501 = scalar_select %p500, %s31, 1
      %s502 = scalar_lea.vmem %s4, %s501
      %p503 = scmp.lt.s32.totalorder %s31, 1
      %s504 = scalar_select %p503, %s31, 1
      %s505 = scalar_lea.vmem %s14, %s504
      %v507 = vld [vmem:[%s499] sm:$0xf]
      %v508 = vld [vmem:[%s499 + $0x4] sm:$0xf]
      %v509 = vld [vmem:[%s499 + $0x8] sm:$0xf]
      %v510 = vld [vmem:[%s499 + $0xc] sm:$0xf]
      %v511 = vld [vmem:[%s499 + $0x10] sm:$0xf]
      %v512 = vld [vmem:[%s499 + $0x14] sm:$0xf]
      %v513 = vld [vmem:[%s499 + $0x18] sm:$0xf]
      %v514 = vld [vmem:[%s499 + $0x1c] sm:$0xf]
      %v515 = vld [vmem:[%s499 + $0x20] sm:$0xf]
      %v516 = vld [vmem:[%s499 + $0x24] sm:$0xf]
      %v517 = vld [vmem:[%s499 + $0x28] sm:$0xf]
      %v518 = vld [vmem:[%s499 + $0x2c] sm:$0xf]
      %v519 = vld [vmem:[%s499 + $0x30] sm:$0xf]
      %v520 = vld [vmem:[%s499 + $0x34] sm:$0xf]
      %v521 = vld [vmem:[%s499 + $0x38] sm:$0xf]
      %v522 = vld [vmem:[%s499 + $0x3c] sm:$0xf]
      %v523 = vld [vmem:[%s499 + $0x40] sm:$0xf]
      %v524 = vld [vmem:[%s499 + $0x44] sm:$0xf]
      %v525 = vld [vmem:[%s1] sm:$0x3]
      %v526 = vld [vmem:[%s499 + $0x48] sm:$0x1]
      %s527 = scalar_lea.vmem %s1, 2
      %v528 = vld [vmem:[%s527] sm:$0x3]
      %v548 = vunpack.c.l.b16 %v507
      %v549 = vunpack.c.l.b16 %v508
      %v550 = vunpack.c.l.b16 %v509
      %v551 = vunpack.c.l.b16 %v510
      %v552 = vunpack.c.l.b16 %v511
      %v553 = vunpack.c.l.b16 %v512
      %v554 = vunpack.c.l.b16 %v513
      %v555 = vunpack.c.l.b16 %v514
      %v556 = vunpack.c.l.b16 %v515
      %v557 = vunpack.c.l.b16 %v516
      %v558 = vunpack.c.l.b16 %v517
      %v559 = vunpack.c.l.b16 %v518
      %v560 = vunpack.c.l.b16 %v519
      %v561 = vunpack.c.l.b16 %v520
      %v562 = vunpack.c.l.b16 %v521
      %v563 = vunpack.c.l.b16 %v522
      %v564 = vunpack.c.l.b16 %v523
      %v565 = vunpack.c.l.b16 %v524
      %v566 = vunpack.c.l.b16 %v526
      %v567 = vpack.c.b16 %v549, %v548
      %v568 = vpack.c.b16 %v551, %v550
      %v569 = vpack.c.b16 %v553, %v552
      %v570 = vpack.c.b16 %v555, %v554
      %v571 = vpack.c.b16 %v557, %v556
      %v572 = vpack.c.b16 %v559, %v558
      %v573 = vpack.c.b16 %v561, %v560
      %v574 = vpack.c.b16 %v563, %v562
      %v575 = vpack.c.b16 %v565, %v564
      %v576 = vpack.c.b16 %v566, %v566
      %vm577 = vsmask.f32 7424
      %v579 = vshrl.u32 %v567, 16
      %v581 = vshll.u32 %v567, 16
      %v583 = vrot.slane %v581, 1
      %v584 = vor.u32 %v579, %v583
      %v586 = vshll.u32 %v568, 16
      %v588 = vrot.slane %v586, 1
      %v589 = vsel %vm577, %v584, %v588
      %v590 = vshrl.u32 %v568, 16
      %v592 = vor.u32 %v590, %v588
      %v594 = vshll.u32 %v569, 16
      %v596 = vrot.slane %v594, 1
      %v597 = vsel %vm577, %v592, %v596
      %v598 = vshrl.u32 %v569, 16
      %v600 = vor.u32 %v598, %v596
      %v602 = vshll.u32 %v570, 16
      %v604 = vrot.slane %v602, 1
      %v605 = vsel %vm577, %v600, %v604
      %v606 = vshrl.u32 %v570, 16
      %v608 = vor.u32 %v606, %v604
      %v610 = vshll.u32 %v571, 16
      %v612 = vrot.slane %v610, 1
      %v613 = vsel %vm577, %v608, %v612
      %v614 = vshrl.u32 %v571, 16
      %v616 = vor.u32 %v614, %v612
      %v618 = vshll.u32 %v572, 16
      %v620 = vrot.slane %v618, 1
      %v621 = vsel %vm577, %v616, %v620
      %v622 = vshrl.u32 %v572, 16
      %v624 = vor.u32 %v622, %v620
      %v626 = vshll.u32 %v573, 16
      %v628 = vrot.slane %v626, 1
      %v629 = vsel %vm577, %v624, %v628
      %v630 = vshrl.u32 %v573, 16
      %v632 = vor.u32 %v630, %v628
      %v634 = vshll.u32 %v574, 16
      %v636 = vrot.slane %v634, 1
      %v637 = vsel %vm577, %v632, %v636
      %v638 = vshrl.u32 %v574, 16
      %v640 = vor.u32 %v638, %v636
      %v642 = vshll.u32 %v575, 16
      %v644 = vrot.slane %v642, 1
      %v645 = vsel %vm577, %v640, %v644
      %v646 = vshrl.u32 %v575, 16
      %v648 = vor.u32 %v646, %v644
      %v650 = vshll.u32 %v576, 16
      %v652 = vrot.slane %v650, 1
      %v653 = vsel %vm577, %v648, %v652
      %vm654 = vcmask 31744
      %v656 = vsel %vm654, %v589, 0
      %v659 = vsel %vm654, %v597, 0
      %v662 = vsel %vm654, %v605, 0
      %v665 = vsel %vm654, %v613, 0
      %v668 = vsel %vm654, %v621, 0
      %v671 = vsel %vm654, %v629, 0
      %v674 = vsel %vm654, %v637, 0
      %v677 = vsel %vm654, %v645, 0
      %v680 = vsel %vm654, %v653, 0
      %vm682 = vcmask 1041408
      %v684 = vsel %vm682, %v528, 0
      %686 = vmatprep.subr.bf16.mxu0 0
      %687 = vmatpush1.bf16.msra.mxu0 %v684
      %688 = vmatprep.subr.bf16.mxu0 0
      %689 = vmatpush1.bf16.msra.mxu0 0
      %690 = vmatprep.subr.bf16.mxu0 0
      %691 = vmatpush1.bf16.msra.mxu0 0
      %692 = vmatprep.subr.bf16.mxu0 0
      %693 = vmatpush1.bf16.msra.mxu0 0
      %694 = vmatprep.subr.bf16.mxu0 0
      %695 = vmatpush1.bf16.msra.mxu0 0
      %696 = vmatprep.subr.bf16.mxu0 0
      %697 = vmatpush1.bf16.msra.mxu0 0
      %698 = vmatprep.subr.bf16.mxu0 0
      %699 = vmatpush1.bf16.msra.mxu0 0
      %700 = vmatprep.subr.bf16.mxu0 0
      %701 = vmatpush1.bf16.msra.mxu0 0
      %702 = vmatprep.subr.bf16.mxu0 0
      %703 = vmatpush1.bf16.msra.mxu0 0
      %704 = vmatprep.subr.bf16.mxu0 0
      %705 = vmatpush1.bf16.msra.mxu0 0
      %706 = vmatprep.subr.bf16.mxu0 0
      %707 = vmatpush1.bf16.msra.mxu0 0
      %708 = vmatprep.subr.bf16.mxu0 0
      %709 = vmatpush1.bf16.msra.mxu0 0
      %710 = vmatprep.subr.bf16.mxu0 0
      %711 = vmatpush1.bf16.msra.mxu0 0
      %712 = vmatprep.subr.bf16.mxu0 0
      %713 = vmatpush1.bf16.msra.mxu0 0
      %714 = vmatprep.subr.bf16.mxu0 0
      %715 = vmatpush1.bf16.msra.mxu0 0
      %716 = vmatprep.subr.bf16.mxu0 0
      %717 = vmatpush1.bf16.msra.mxu0 0
      %718 = vmatprep.mubr.bf16.mxu0 0
      %719 = vmatmul.mubr.bf16.gmra.mrb[0].mxu0 %v656
      %v720 = vpop.f32.mrb[0].mxu0
      %v721 = vadd.f32 0.0, %v720
      %v722 = vpop.f32.mrb[0].mxu0
      %v723 = vpop.f32.mrb[0].mxu0
      %v724 = vadd.f32 0.0, %v723
      %v725 = vpop.f32.mrb[0].mxu0
      %726 = vmatprep.mubr.bf16.mxu0 0
      %727 = vmatmul.mubr.bf16.gmra.mrb[0].mxu0 %v659
      %v728 = vpop.f32.mrb[0].mxu0
      %v729 = vadd.f32 0.0, %v728
      %v730 = vpop.f32.mrb[0].mxu0
      %v731 = vpop.f32.mrb[0].mxu0
      %v732 = vadd.f32 0.0, %v731
      %v733 = vpop.f32.mrb[0].mxu0
      %734 = vmatprep.mubr.bf16.mxu0 0
      %735 = vmatmul.mubr.bf16.gmra.mrb[0].mxu0 %v662
      %v736 = vpop.f32.mrb[0].mxu0
      %v737 = vadd.f32 0.0, %v736
      %v738 = vpop.f32.mrb[0].mxu0
      %v739 = vpop.f32.mrb[0].mxu0
      %v740 = vadd.f32 0.0, %v739
      %v741 = vpop.f32.mrb[0].mxu0
      %742 = vmatprep.mubr.bf16.mxu0 0
      %743 = vmatmul.mubr.bf16.gmra.mrb[0].mxu0 %v665
      %v744 = vpop.f32.mrb[0].mxu0
      %v745 = vadd.f32 0.0, %v744
      %v746 = vpop.f32.mrb[0].mxu0
      %v747 = vpop.f32.mrb[0].mxu0
      %v748 = vadd.f32 0.0, %v747
      %v749 = vpop.f32.mrb[0].mxu0
      %750 = vmatprep.mubr.bf16.mxu0 0
      %751 = vmatmul.mubr.bf16.gmra.mrb[0].mxu0 %v668
      %v752 = vpop.f32.mrb[0].mxu0
      %v753 = vadd.f32 0.0, %v752
      %v754 = vpop.f32.mrb[0].mxu0
      %v755 = vpop.f32.mrb[0].mxu0
      %v756 = vadd.f32 0.0, %v755
      %v757 = vpop.f32.mrb[0].mxu0
      %758 = vmatprep.mubr.bf16.mxu0 0
      %759 = vmatmul.mubr.bf16.gmra.mrb[0].mxu0 %v671
      %v760 = vpop.f32.mrb[0].mxu0
      %v761 = vadd.f32 0.0, %v760
      %v762 = vpop.f32.mrb[0].mxu0
      %v763 = vpop.f32.mrb[0].mxu0
      %v764 = vadd.f32 0.0, %v763
      %v765 = vpop.f32.mrb[0].mxu0
      %766 = vmatprep.mubr.bf16.mxu0 0
      %767 = vmatmul.mubr.bf16.gmra.mrb[0].mxu0 %v674
      %v768 = vpop.f32.mrb[0].mxu0
      %v769 = vadd.f32 0.0, %v768
      %v770 = vpop.f32.mrb[0].mxu0
      %v771 = vpop.f32.mrb[0].mxu0
      %v772 = vadd.f32 0.0, %v771
      %v773 = vpop.f32.mrb[0].mxu0
      %774 = vmatprep.mubr.bf16.mxu0 0
      %775 = vmatmul.mubr.bf16.gmra.mrb[0].mxu0 %v677
      %v776 = vpop.f32.mrb[0].mxu0
      %v777 = vadd.f32 0.0, %v776
      %v778 = vpop.f32.mrb[0].mxu0
      %v779 = vpop.f32.mrb[0].mxu0
      %v780 = vadd.f32 0.0, %v779
      %v781 = vpop.f32.mrb[0].mxu0
      %782 = vmatprep.mubr.bf16.mxu0 0
      %783 = vmatmul.mubr.bf16.gmra.mrb[0].mxu0 %v680
      %v784 = vpop.f32.mrb[0].mxu0
      %v785 = vadd.f32 0.0, %v784
      %v786 = vpop.f32.mrb[0].mxu0
      %v787 = vpop.f32.mrb[0].mxu0
      %v788 = vadd.f32 0.0, %v787
      %v789 = vpop.f32.mrb[0].mxu0
      %790 = vdwg.mxu0
      %v791 = vsel %vm654, %v567, 0
      %v793 = vsel %vm654, %v568, 0
      %v795 = vsel %vm654, %v569, 0
      %v797 = vsel %vm654, %v570, 0
      %v799 = vsel %vm654, %v571, 0
      %v801 = vsel %vm654, %v572, 0
      %v803 = vsel %vm654, %v573, 0
      %v805 = vsel %vm654, %v574, 0
      %v807 = vsel %vm654, %v575, 0
      %v810 = vsel %vm682, %v525, 0
      %812 = vmatprep.subr.bf16.mxu0 0
      %813 = vmatpush1.bf16.msra.mxu0 %v810
      %814 = vmatprep.subr.bf16.mxu0 0
      %815 = vmatpush1.bf16.msra.mxu0 0
      %816 = vmatprep.subr.bf16.mxu0 0
      %817 = vmatpush1.bf16.msra.mxu0 0
      %818 = vmatprep.subr.bf16.mxu0 0
      %819 = vmatpush1.bf16.msra.mxu0 0
      %820 = vmatprep.subr.bf16.mxu0 0
      %821 = vmatpush1.bf16.msra.mxu0 0
      %822 = vmatprep.subr.bf16.mxu0 0
      %823 = vmatpush1.bf16.msra.mxu0 0
      %824 = vmatprep.subr.bf16.mxu0 0
      %825 = vmatpush1.bf16.msra.mxu0 0
      %826 = vmatprep.subr.bf16.mxu0 0
      %827 = vmatpush1.bf16.msra.mxu0 0
      %828 = vmatprep.subr.bf16.mxu0 0
      %829 = vmatpush1.bf16.msra.mxu0 0
      %830 = vmatprep.subr.bf16.mxu0 0
      %831 = vmatpush1.bf16.msra.mxu0 0
      %832 = vmatprep.subr.bf16.mxu0 0
      %833 = vmatpush1.bf16.msra.mxu0 0
      %834 = vmatprep.subr.bf16.mxu0 0
      %835 = vmatpush1.bf16.msra.mxu0 0
      %836 = vmatprep.subr.bf16.mxu0 0
      %837 = vmatpush1.bf16.msra.mxu0 0
      %838 = vmatprep.subr.bf16.mxu0 0
      %839 = vmatpush1.bf16.msra.mxu0 0
      %840 = vmatprep.subr.bf16.mxu0 0
      %841 = vmatpush1.bf16.msra.mxu0 0
      %842 = vmatprep.subr.bf16.mxu0 0
      %843 = vmatpush1.bf16.msra.mxu0 0
      %844 = vmatprep.mubr.bf16.mxu0 0
      %845 = vmatmul.mubr.bf16.gmra.mrb[0].mxu0 %v791
      %v846 = vpop.f32.mrb[0].mxu0
      %v847 = vadd.f32 %v721, %v846
      %v848 = vpop.f32.mrb[0].mxu0
      %v849 = vpop.f32.mrb[0].mxu0
      %v850 = vadd.f32 %v724, %v849
      %v851 = vpop.f32.mrb[0].mxu0
      %852 = vmatprep.mubr.bf16.mxu0 0
      %853 = vmatmul.mubr.bf16.gmra.mrb[0].mxu0 %v793
      %v854 = vpop.f32.mrb[0].mxu0
      %v855 = vadd.f32 %v729, %v854
      %v856 = vpop.f32.mrb[0].mxu0
      %v857 = vpop.f32.mrb[0].mxu0
      %v858 = vadd.f32 %v732, %v857
      %v859 = vpop.f32.mrb[0].mxu0
      %860 = vmatprep.mubr.bf16.mxu0 0
      %861 = vmatmul.mubr.bf16.gmra.mrb[0].mxu0 %v795
      %v862 = vpop.f32.mrb[0].mxu0
      %v863 = vadd.f32 %v737, %v862
      %v864 = vpop.f32.mrb[0].mxu0
      %v865 = vpop.f32.mrb[0].mxu0
      %v866 = vadd.f32 %v740, %v865
      %v867 = vpop.f32.mrb[0].mxu0
      %868 = vmatprep.mubr.bf16.mxu0 0
      %869 = vmatmul.mubr.bf16.gmra.mrb[0].mxu0 %v797
      %v870 = vpop.f32.mrb[0].mxu0
      %v871 = vadd.f32 %v745, %v870
      %v872 = vpop.f32.mrb[0].mxu0
      %v873 = vpop.f32.mrb[0].mxu0
      %v874 = vadd.f32 %v748, %v873
      %v875 = vpop.f32.mrb[0].mxu0
      %876 = vmatprep.mubr.bf16.mxu0 0
      %877 = vmatmul.mubr.bf16.gmra.mrb[0].mxu0 %v799
      %v878 = vpop.f32.mrb[0].mxu0
      %v879 = vadd.f32 %v753, %v878
      %v880 = vpop.f32.mrb[0].mxu0
      %v881 = vpop.f32.mrb[0].mxu0
      %v882 = vadd.f32 %v756, %v881
      %v883 = vpop.f32.mrb[0].mxu0
      %884 = vmatprep.mubr.bf16.mxu0 0
      %885 = vmatmul.mubr.bf16.gmra.mrb[0].mxu0 %v801
      %v886 = vpop.f32.mrb[0].mxu0
      %v887 = vadd.f32 %v761, %v886
      %v888 = vpop.f32.mrb[0].mxu0
      %v889 = vpop.f32.mrb[0].mxu0
      %v890 = vadd.f32 %v764, %v889
      %v891 = vpop.f32.mrb[0].mxu0
      %892 = vmatprep.mubr.bf16.mxu0 0
      %893 = vmatmul.mubr.bf16.gmra.mrb[0].mxu0 %v803
      %v894 = vpop.f32.mrb[0].mxu0
      %v895 = vadd.f32 %v769, %v894
      %v896 = vpop.f32.mrb[0].mxu0
      %v897 = vpop.f32.mrb[0].mxu0
      %v898 = vadd.f32 %v772, %v897
      %v899 = vpop.f32.mrb[0].mxu0
      %900 = vmatprep.mubr.bf16.mxu0 0
      %901 = vmatmul.mubr.bf16.gmra.mrb[0].mxu0 %v805
      %v902 = vpop.f32.mrb[0].mxu0
      %v903 = vadd.f32 %v777, %v902
      %v904 = vpop.f32.mrb[0].mxu0
      %v905 = vpop.f32.mrb[0].mxu0
      %v906 = vadd.f32 %v780, %v905
      %v907 = vpop.f32.mrb[0].mxu0
      %908 = vmatprep.mubr.bf16.mxu0 0
      %909 = vmatmul.mubr.bf16.gmra.mrb[0].mxu0 %v807
      %v910 = vpop.f32.mrb[0].mxu0
      %v911 = vadd.f32 %v785, %v910
      %v912 = vpop.f32.mrb[0].mxu0
      %v913 = vpop.f32.mrb[0].mxu0
      %v914 = vadd.f32 %v788, %v913
      %v915 = vpop.f32.mrb[0].mxu0
      %916 = vdwg.mxu0
      %v917 = vld [vmem:[%s499] sm:$0xe]
      %s918 = scalar_lea.vmem %s1, 4
      %v919 = vld [vmem:[%s918] sm:$0x3]
      %v921 = vunpack.c.l.b16 %v917
      %v922 = vpack.c.b16 %v549, %v921
      %vm923 = vcmask 1046528
      %v924 = vrot.slane %v922, 1
      %v925 = vrot.slane %v568, 1
      %v926 = vsel %vm923, %v924, %v925
      %v927 = vrot.slane %v569, 1
      %v928 = vsel %vm923, %v925, %v927
      %v929 = vrot.slane %v570, 1
      %v930 = vsel %vm923, %v927, %v929
      %v931 = vrot.slane %v571, 1
      %v932 = vsel %vm923, %v929, %v931
      %v933 = vrot.slane %v572, 1
      %v934 = vsel %vm923, %v931, %v933
      %v935 = vrot.slane %v573, 1
      %v936 = vsel %vm923, %v933, %v935
      %v937 = vrot.slane %v574, 1
      %v938 = vsel %vm923, %v935, %v937
      %v939 = vrot.slane %v575, 1
      %v940 = vsel %vm923, %v937, %v939
      %v941 = vrot.slane %v576, 1
      %v942 = vsel %vm923, %v939, %v941
      %v944 = vsel %vm654, %v926, 0
      %v947 = vsel %vm654, %v928, 0
      %v950 = vsel %vm654, %v930, 0
      %v953 = vsel %vm654, %v932, 0
      %v956 = vsel %vm654, %v934, 0
      %v959 = vsel %vm654, %v936, 0
      %v962 = vsel %vm654, %v938, 0
      %v965 = vsel %vm654, %v940, 0
      %v968 = vsel %vm654, %v942, 0
      %v971 = vsel %vm682, %v919, 0
      %973 = vmatprep.subr.bf16.mxu0 0
      %974 = vmatpush1.bf16.msra.mxu0 %v971
      %975 = vmatprep.subr.bf16.mxu0 0
      %976 = vmatpush1.bf16.msra.mxu0 0
      %977 = vmatprep.subr.bf16.mxu0 0
      %978 = vmatpush1.bf16.msra.mxu0 0
      %979 = vmatprep.subr.bf16.mxu0 0
      %980 = vmatpush1.bf16.msra.mxu0 0
      %981 = vmatprep.subr.bf16.mxu0 0
      %982 = vmatpush1.bf16.msra.mxu0 0
      %983 = vmatprep.subr.bf16.mxu0 0
      %984 = vmatpush1.bf16.msra.mxu0 0
      %985 = vmatprep.subr.bf16.mxu0 0
      %986 = vmatpush1.bf16.msra.mxu0 0
      %987 = vmatprep.subr.bf16.mxu0 0
      %988 = vmatpush1.bf16.msra.mxu0 0
      %989 = vmatprep.subr.bf16.mxu0 0
      %990 = vmatpush1.bf16.msra.mxu0 0
      %991 = vmatprep.subr.bf16.mxu0 0
      %992 = vmatpush1.bf16.msra.mxu0 0
      %993 = vmatprep.subr.bf16.mxu0 0
      %994 = vmatpush1.bf16.msra.mxu0 0
      %995 = vmatprep.subr.bf16.mxu0 0
      %996 = vmatpush1.bf16.msra.mxu0 0
      %997 = vmatprep.subr.bf16.mxu0 0
      %998 = vmatpush1.bf16.msra.mxu0 0
      %999 = vmatprep.subr.bf16.mxu0 0
      %1000 = vmatpush1.bf16.msra.mxu0 0
      %1001 = vmatprep.subr.bf16.mxu0 0
      %1002 = vmatpush1.bf16.msra.mxu0 0
      %1003 = vmatprep.subr.bf16.mxu0 0
      %1004 = vmatpush1.bf16.msra.mxu0 0
      %1005 = vmatprep.mubr.bf16.mxu0 0
      %1006 = vmatmul.mubr.bf16.gmra.mrb[0].mxu0 %v944
      %v1007 = vpop.f32.mrb[0].mxu0
      %v1008 = vadd.f32 0.0, %v1007
      %v1009 = vpop.f32.mrb[0].mxu0
      %v1010 = vpop.f32.mrb[0].mxu0
      %v1011 = vadd.f32 0.0, %v1010
      %v1012 = vpop.f32.mrb[0].mxu0
      %1013 = vmatprep.mubr.bf16.mxu0 0
      %1014 = vmatmul.mubr.bf16.gmra.mrb[0].mxu0 %v947
      %v1015 = vpop.f32.mrb[0].mxu0
      %v1016 = vadd.f32 0.0, %v1015
      %v1017 = vpop.f32.mrb[0].mxu0
      %v1018 = vpop.f32.mrb[0].mxu0
      %v1019 = vadd.f32 0.0, %v1018
      %v1020 = vpop.f32.mrb[0].mxu0
      %1021 = vmatprep.mubr.bf16.mxu0 0
      %1022 = vmatmul.mubr.bf16.gmra.mrb[0].mxu0 %v950
      %v1023 = vpop.f32.mrb[0].mxu0
      %v1024 = vadd.f32 0.0, %v1023
      %v1025 = vpop.f32.mrb[0].mxu0
      %v1026 = vpop.f32.mrb[0].mxu0
      %v1027 = vadd.f32 0.0, %v1026
      %v1028 = vpop.f32.mrb[0].mxu0
      %1029 = vmatprep.mubr.bf16.mxu0 0
      %1030 = vmatmul.mubr.bf16.gmra.mrb[0].mxu0 %v953
      %v1031 = vpop.f32.mrb[0].mxu0
      %v1032 = vadd.f32 0.0, %v1031
      %v1033 = vpop.f32.mrb[0].mxu0
      %v1034 = vpop.f32.mrb[0].mxu0
      %v1035 = vadd.f32 0.0, %v1034
      %v1036 = vpop.f32.mrb[0].mxu0
      %1037 = vmatprep.mubr.bf16.mxu0 0
      %1038 = vmatmul.mubr.bf16.gmra.mrb[0].mxu0 %v956
      %v1039 = vpop.f32.mrb[0].mxu0
      %v1040 = vadd.f32 0.0, %v1039
      %v1041 = vpop.f32.mrb[0].mxu0
      %v1042 = vpop.f32.mrb[0].mxu0
      %v1043 = vadd.f32 0.0, %v1042
      %v1044 = vpop.f32.mrb[0].mxu0
      %1045 = vmatprep.mubr.bf16.mxu0 0
      %1046 = vmatmul.mubr.bf16.gmra.mrb[0].mxu0 %v959
      %v1047 = vpop.f32.mrb[0].mxu0
      %v1048 = vadd.f32 0.0, %v1047
      %v1049 = vpop.f32.mrb[0].mxu0
      %v1050 = vpop.f32.mrb[0].mxu0
      %v1051 = vadd.f32 0.0, %v1050
      %v1052 = vpop.f32.mrb[0].mxu0
      %1053 = vmatprep.mubr.bf16.mxu0 0
      %1054 = vmatmul.mubr.bf16.gmra.mrb[0].mxu0 %v962
      %v1055 = vpop.f32.mrb[0].mxu0
      %v1056 = vadd.f32 0.0, %v1055
      %v1057 = vpop.f32.mrb[0].mxu0
      %v1058 = vpop.f32.mrb[0].mxu0
      %v1059 = vadd.f32 0.0, %v1058
      %v1060 = vpop.f32.mrb[0].mxu0
      %1061 = vmatprep.mubr.bf16.mxu0 0
      %1062 = vmatmul.mubr.bf16.gmra.mrb[0].mxu0 %v965
      %v1063 = vpop.f32.mrb[0].mxu0
      %v1064 = vadd.f32 0.0, %v1063
      %v1065 = vpop.f32.mrb[0].mxu0
      %v1066 = vpop.f32.mrb[0].mxu0
      %v1067 = vadd.f32 0.0, %v1066
      %v1068 = vpop.f32.mrb[0].mxu0
      %1069 = vmatprep.mubr.bf16.mxu0 0
      %1070 = vmatmul.mubr.bf16.gmra.mrb[0].mxu0 %v968
      %v1071 = vpop.f32.mrb[0].mxu0
      %v1072 = vadd.f32 0.0, %v1071
      %v1073 = vpop.f32.mrb[0].mxu0
      %v1074 = vpop.f32.mrb[0].mxu0
      %v1075 = vadd.f32 0.0, %v1074
      %v1076 = vpop.f32.mrb[0].mxu0
      %1077 = vdwg.mxu0
      %v1078 = vadd.f32 %v847, %v1008
      %v1079 = vadd.f32 %v850, %v1011
      %v1080 = vadd.f32 %v855, %v1016
      %v1081 = vadd.f32 %v858, %v1019
      %v1082 = vadd.f32 %v863, %v1024
      %v1083 = vadd.f32 %v866, %v1027
      %v1084 = vadd.f32 %v871, %v1032
      %v1085 = vadd.f32 %v874, %v1035
      %v1086 = vadd.f32 %v879, %v1040
      %v1087 = vadd.f32 %v882, %v1043
      %v1088 = vadd.f32 %v887, %v1048
      %v1089 = vadd.f32 %v890, %v1051
      %v1090 = vadd.f32 %v895, %v1056
      %v1091 = vadd.f32 %v898, %v1059
      %v1092 = vadd.f32 %v903, %v1064
      %v1093 = vadd.f32 %v906, %v1067
      %v1094 = vadd.f32 %v911, %v1072
      %v1095 = vadd.f32 %v914, %v1075
      %v1096 = vld [vmem:[%s499 + $0x8] sm:$0xe]
      %v1097 = vld [vmem:[%s499 + $0xc] sm:$0xf]
      %v1098 = vld [vmem:[%s499 + $0x10] sm:$0xf]
      %v1099 = vld [vmem:[%s499 + $0x14] sm:$0xf]
      %v1100 = vld [vmem:[%s499 + $0x18] sm:$0xf]
      %v1101 = vld [vmem:[%s499 + $0x1c] sm:$0xf]
      %v1102 = vld [vmem:[%s499 + $0x20] sm:$0xf]
      %v1103 = vld [vmem:[%s499 + $0x24] sm:$0xf]
      %v1104 = vld [vmem:[%s499 + $0x28] sm:$0xf]
      %v1105 = vld [vmem:[%s499 + $0x2c] sm:$0xf]
      %v1106 = vld [vmem:[%s499 + $0x30] sm:$0xf]
      %v1107 = vld [vmem:[%s499 + $0x34] sm:$0xf]
      %v1108 = vld [vmem:[%s499 + $0x38] sm:$0xf]
      %v1109 = vld [vmem:[%s499 + $0x3c] sm:$0xf]
      %v1110 = vld [vmem:[%s499 + $0x40] sm:$0xf]
      %v1111 = vld [vmem:[%s499 + $0x44] sm:$0xf]
      %v1112 = vld [vmem:[%s499 + $0x48] sm:$0xf]
      %v1113 = vld [vmem:[%s499 + $0x4c] sm:$0xf]
      %v1114 = vld [vmem:[%s499 + $0x50] sm:$0x1]
      %s1115 = scalar_lea.vmem %s1, 6
      %v1116 = vld [vmem:[%s1115] sm:$0x3]
      %v1136 = vunpack.c.l.b16 %v1096
      %v1137 = vunpack.c.l.b16 %v1097
      %v1138 = vunpack.c.l.b16 %v1098
      %v1139 = vunpack.c.l.b16 %v1099
      %v1140 = vunpack.c.l.b16 %v1100
      %v1141 = vunpack.c.l.b16 %v1101
      %v1142 = vunpack.c.l.b16 %v1102
      %v1143 = vunpack.c.l.b16 %v1103
      %v1144 = vunpack.c.l.b16 %v1104
      %v1145 = vunpack.c.l.b16 %v1105
      %v1146 = vunpack.c.l.b16 %v1106
      %v1147 = vunpack.c.l.b16 %v1107
      %v1148 = vunpack.c.l.b16 %v1108
      %v1149 = vunpack.c.l.b16 %v1109
      %v1150 = vunpack.c.l.b16 %v1110
      %v1151 = vunpack.c.l.b16 %v1111
      %v1152 = vunpack.c.l.b16 %v1112
      %v1153 = vunpack.c.l.b16 %v1113
      %v1154 = vunpack.c.l.b16 %v1114
      %v1155 = vpack.c.b16 %v1137, %v1136
      %v1156 = vpack.c.b16 %v1139, %v1138
      %v1157 = vpack.c.b16 %v1141, %v1140
      %v1158 = vpack.c.b16 %v1143, %v1142
      %v1159 = vpack.c.b16 %v1145, %v1144
      %v1160 = vpack.c.b16 %v1147, %v1146
      %v1161 = vpack.c.b16 %v1149, %v1148
      %v1162 = vpack.c.b16 %v1151, %v1150
      %v1163 = vpack.c.b16 %v1153, %v1152
      %v1164 = vpack.c.b16 %v1154, %v1154
      %v1165 = vrot.slane %v1155, 1
      %v1166 = vrot.slane %v1156, 1
      %v1167 = vsel %vm923, %v1165, %v1166
      %v1168 = vrot.slane %v1157, 1
      %v1169 = vsel %vm923, %v1166, %v1168
      %v1170 = vrot.slane %v1158, 1
      %v1171 = vsel %vm923, %v1168, %v1170
      %v1172 = vrot.slane %v1159, 1
      %v1173 = vsel %vm923, %v1170, %v1172
      %v1174 = vrot.slane %v1160, 1
      %v1175 = vsel %vm923, %v1172, %v1174
      %v1176 = vrot.slane %v1161, 1
      %v1177 = vsel %vm923, %v1174, %v1176
      %v1178 = vrot.slane %v1162, 1
      %v1179 = vsel %vm923, %v1176, %v1178
      %v1180 = vrot.slane %v1163, 1
      %v1181 = vsel %vm923, %v1178, %v1180
      %v1182 = vrot.slane %v1164, 1
      %v1183 = vsel %vm923, %v1180, %v1182
      %v1185 = vsel %vm654, %v1167, 0
      %v1188 = vsel %vm654, %v1169, 0
      %v1191 = vsel %vm654, %v1171, 0
      %v1194 = vsel %vm654, %v1173, 0
      %v1197 = vsel %vm654, %v1175, 0
      %v1200 = vsel %vm654, %v1177, 0
      %v1203 = vsel %vm654, %v1179, 0
      %v1206 = vsel %vm654, %v1181, 0
      %v1209 = vsel %vm654, %v1183, 0
      %v1212 = vsel %vm682, %v1116, 0
      %1214 = vmatprep.subr.bf16.mxu0 0
      %1215 = vmatpush1.bf16.msra.mxu0 %v1212
      %1216 = vmatprep.subr.bf16.mxu0 0
      %1217 = vmatpush1.bf16.msra.mxu0 0
      %1218 = vmatprep.subr.bf16.mxu0 0
      %1219 = vmatpush1.bf16.msra.mxu0 0
      %1220 = vmatprep.subr.bf16.mxu0 0
      %1221 = vmatpush1.bf16.msra.mxu0 0
      %1222 = vmatprep.subr.bf16.mxu0 0
      %1223 = vmatpush1.bf16.msra.mxu0 0
      %1224 = vmatprep.subr.bf16.mxu0 0
      %1225 = vmatpush1.bf16.msra.mxu0 0
      %1226 = vmatprep.subr.bf16.mxu0 0
      %1227 = vmatpush1.bf16.msra.mxu0 0
      %1228 = vmatprep.subr.bf16.mxu0 0
      %1229 = vmatpush1.bf16.msra.mxu0 0
      %1230 = vmatprep.subr.bf16.mxu0 0
      %1231 = vmatpush1.bf16.msra.mxu0 0
      %1232 = vmatprep.subr.bf16.mxu0 0
      %1233 = vmatpush1.bf16.msra.mxu0 0
      %1234 = vmatprep.subr.bf16.mxu0 0
      %1235 = vmatpush1.bf16.msra.mxu0 0
      %1236 = vmatprep.subr.bf16.mxu0 0
      %1237 = vmatpush1.bf16.msra.mxu0 0
      %1238 = vmatprep.subr.bf16.mxu0 0
      %1239 = vmatpush1.bf16.msra.mxu0 0
      %1240 = vmatprep.subr.bf16.mxu0 0
      %1241 = vmatpush1.bf16.msra.mxu0 0
      %1242 = vmatprep.subr.bf16.mxu0 0
      %1243 = vmatpush1.bf16.msra.mxu0 0
      %1244 = vmatprep.subr.bf16.mxu0 0
      %1245 = vmatpush1.bf16.msra.mxu0 0
      %1246 = vmatprep.mubr.bf16.mxu0 0
      %1247 = vmatmul.mubr.bf16.gmra.mrb[0].mxu0 %v1185
      %v1248 = vpop.f32.mrb[0].mxu0
      %v1249 = vadd.f32 0.0, %v1248
      %v1250 = vpop.f32.mrb[0].mxu0
      %v1251 = vpop.f32.mrb[0].mxu0
      %v1252 = vadd.f32 0.0, %v1251
      %v1253 = vpop.f32.mrb[0].mxu0
      %1254 = vmatprep.mubr.bf16.mxu0 0
      %1255 = vmatmul.mubr.bf16.gmra.mrb[0].mxu0 %v1188
      %v1256 = vpop.f32.mrb[0].mxu0
      %v1257 = vadd.f32 0.0, %v1256
      %v1258 = vpop.f32.mrb[0].mxu0
      %v1259 = vpop.f32.mrb[0].mxu0
      %v1260 = vadd.f32 0.0, %v1259
      %v1261 = vpop.f32.mrb[0].mxu0
      %1262 = vmatprep.mubr.bf16.mxu0 0
      %1263 = vmatmul.mubr.bf16.gmra.mrb[0].mxu0 %v1191
      %v1264 = vpop.f32.mrb[0].mxu0
      %v1265 = vadd.f32 0.0, %v1264
      %v1266 = vpop.f32.mrb[0].mxu0
      %v1267 = vpop.f32.mrb[0].mxu0
      %v1268 = vadd.f32 0.0, %v1267
      %v1269 = vpop.f32.mrb[0].mxu0
      %1270 = vmatprep.mubr.bf16.mxu0 0
      %1271 = vmatmul.mubr.bf16.gmra.mrb[0].mxu0 %v1194
      %v1272 = vpop.f32.mrb[0].mxu0
      %v1273 = vadd.f32 0.0, %v1272
      %v1274 = vpop.f32.mrb[0].mxu0
      %v1275 = vpop.f32.mrb[0].mxu0
      %v1276 = vadd.f32 0.0, %v1275
      %v1277 = vpop.f32.mrb[0].mxu0
      %1278 = vmatprep.mubr.bf16.mxu0 0
      %1279 = vmatmul.mubr.bf16.gmra.mrb[0].mxu0 %v1197
      %v1280 = vpop.f32.mrb[0].mxu0
      %v1281 = vadd.f32 0.0, %v1280
      %v1282 = vpop.f32.mrb[0].mxu0
      %v1283 = vpop.f32.mrb[0].mxu0
      %v1284 = vadd.f32 0.0, %v1283
      %v1285 = vpop.f32.mrb[0].mxu0
      %1286 = vmatprep.mubr.bf16.mxu0 0
      %1287 = vmatmul.mubr.bf16.gmra.mrb[0].mxu0 %v1200
      %v1288 = vpop.f32.mrb[0].mxu0
      %v1289 = vadd.f32 0.0, %v1288
      %v1290 = vpop.f32.mrb[0].mxu0
      %v1291 = vpop.f32.mrb[0].mxu0
      %v1292 = vadd.f32 0.0, %v1291
      %v1293 = vpop.f32.mrb[0].mxu0
      %1294 = vmatprep.mubr.bf16.mxu0 0
      %1295 = vmatmul.mubr.bf16.gmra.mrb[0].mxu0 %v1203
      %v1296 = vpop.f32.mrb[0].mxu0
      %v1297 = vadd.f32 0.0, %v1296
      %v1298 = vpop.f32.mrb[0].mxu0
      %v1299 = vpop.f32.mrb[0].mxu0
      %v1300 = vadd.f32 0.0, %v1299
      %v1301 = vpop.f32.mrb[0].mxu0
      %1302 = vmatprep.mubr.bf16.mxu0 0
      %1303 = vmatmul.mubr.bf16.gmra.mrb[0].mxu0 %v1206
      %v1304 = vpop.f32.mrb[0].mxu0
      %v1305 = vadd.f32 0.0, %v1304
      %v1306 = vpop.f32.mrb[0].mxu0
      %v1307 = vpop.f32.mrb[0].mxu0
      %v1308 = vadd.f32 0.0, %v1307
      %v1309 = vpop.f32.mrb[0].mxu0
      %1310 = vmatprep.mubr.bf16.mxu0 0
      %1311 = vmatmul.mubr.bf16.gmra.mrb[0].mxu0 %v1209
      %v1312 = vpop.f32.mrb[0].mxu0
      %v1313 = vadd.f32 0.0, %v1312
      %v1314 = vpop.f32.mrb[0].mxu0
      %v1315 = vpop.f32.mrb[0].mxu0
      %v1316 = vadd.f32 0.0, %v1315
      %v1317 = vpop.f32.mrb[0].mxu0
      %1318 = vdwg.mxu0
      %v1319 = vadd.f32 %v1078, %v1249
      %v1320 = vadd.f32 %v1079, %v1252
      %v1321 = vadd.f32 %v1080, %v1257
      %v1322 = vadd.f32 %v1081, %v1260
      %v1323 = vadd.f32 %v1082, %v1265
      %v1324 = vadd.f32 %v1083, %v1268
      %v1325 = vadd.f32 %v1084, %v1273
      %v1326 = vadd.f32 %v1085, %v1276
      %v1327 = vadd.f32 %v1086, %v1281
      %v1328 = vadd.f32 %v1087, %v1284
      %v1329 = vadd.f32 %v1088, %v1289
      %v1330 = vadd.f32 %v1089, %v1292
      %v1331 = vadd.f32 %v1090, %v1297
      %v1332 = vadd.f32 %v1091, %v1300
      %v1333 = vadd.f32 %v1092, %v1305
      %v1334 = vadd.f32 %v1093, %v1308
      %v1335 = vadd.f32 %v1094, %v1313
      %v1336 = vadd.f32 %v1095, %v1316
      %v1337 = vld [vmem:[%s499 + $0x50] sm:$0x3]
      %s1338 = scalar_lea.vmem %s1, 8
      %v1339 = vld [vmem:[%s1338] sm:$0x3]
      %v1341 = vunpack.c.l.b16 %v1337
      %v1342 = vpack.c.b16 %v1341, %v1341
      %vm1343 = vsmask.f32 6400
      %v1345 = vshrl.u32 %v1155, 16
      %v1347 = vrot.slane %v1345, 1
      %v1348 = vshll.u32 %v1155, 16
      %v1350 = vrot.slane %v1348, 2
      %v1351 = vor.u32 %v1347, %v1350
      %v1353 = vshrl.u32 %v1156, 16
      %v1355 = vrot.slane %v1353, 1
      %v1356 = vshll.u32 %v1156, 16
      %v1358 = vrot.slane %v1356, 2
      %v1359 = vor.u32 %v1355, %v1358
      %v1360 = vsel %vm1343, %v1351, %v1359
      %v1362 = vshrl.u32 %v1157, 16
      %v1364 = vrot.slane %v1362, 1
      %v1365 = vshll.u32 %v1157, 16
      %v1367 = vrot.slane %v1365, 2
      %v1368 = vor.u32 %v1364, %v1367
      %v1369 = vsel %vm1343, %v1359, %v1368
      %v1371 = vshrl.u32 %v1158, 16
      %v1373 = vrot.slane %v1371, 1
      %v1374 = vshll.u32 %v1158, 16
      %v1376 = vrot.slane %v1374, 2
      %v1377 = vor.u32 %v1373, %v1376
      %v1378 = vsel %vm1343, %v1368, %v1377
      %v1380 = vshrl.u32 %v1159, 16
      %v1382 = vrot.slane %v1380, 1
      %v1383 = vshll.u32 %v1159, 16
      %v1385 = vrot.slane %v1383, 2
      %v1386 = vor.u32 %v1382, %v1385
      %v1387 = vsel %vm1343, %v1377, %v1386
      %v1389 = vshrl.u32 %v1160, 16
      %v1391 = vrot.slane %v1389, 1
      %v1392 = vshll.u32 %v1160, 16
      %v1394 = vrot.slane %v1392, 2
      %v1395 = vor.u32 %v1391, %v1394
      %v1396 = vsel %vm1343, %v1386, %v1395
      %v1398 = vshrl.u32 %v1161, 16
      %v1400 = vrot.slane %v1398, 1
      %v1401 = vshll.u32 %v1161, 16
      %v1403 = vrot.slane %v1401, 2
      %v1404 = vor.u32 %v1400, %v1403
      %v1405 = vsel %vm1343, %v1395, %v1404
      %v1407 = vshrl.u32 %v1162, 16
      %v1409 = vrot.slane %v1407, 1
      %v1410 = vshll.u32 %v1162, 16
      %v1412 = vrot.slane %v1410, 2
      %v1413 = vor.u32 %v1409, %v1412
      %v1414 = vsel %vm1343, %v1404, %v1413
      %v1416 = vshrl.u32 %v1163, 16
      %v1418 = vrot.slane %v1416, 1
      %v1419 = vshll.u32 %v1163, 16
      %v1421 = vrot.slane %v1419, 2
      %v1422 = vor.u32 %v1418, %v1421
      %v1423 = vsel %vm1343, %v1413, %v1422
      %v1425 = vshrl.u32 %v1342, 16
      %v1427 = vrot.slane %v1425, 1
      %v1428 = vshll.u32 %v1342, 16
      %v1430 = vrot.slane %v1428, 2
      %v1431 = vor.u32 %v1427, %v1430
      %v1432 = vsel %vm1343, %v1422, %v1431
      %v1434 = vsel %vm654, %v1360, 0
      %v1437 = vsel %vm654, %v1369, 0
      %v1440 = vsel %vm654, %v1378, 0
      %v1443 = vsel %vm654, %v1387, 0
      %v1446 = vsel %vm654, %v1396, 0
      %v1449 = vsel %vm654, %v1405, 0
      %v1452 = vsel %vm654, %v1414, 0
      %v1455 = vsel %vm654, %v1423, 0
      %v1458 = vsel %vm654, %v1432, 0
      %v1461 = vsel %vm682, %v1339, 0
      %1463 = vmatprep.subr.bf16.mxu0 0
      %1464 = vmatpush1.bf16.msra.mxu0 %v1461
      %1465 = vmatprep.subr.bf16.mxu0 0
      %1466 = vmatpush1.bf16.msra.mxu0 0
      %1467 = vmatprep.subr.bf16.mxu0 0
      %1468 = vmatpush1.bf16.msra.mxu0 0
      %1469 = vmatprep.subr.bf16.mxu0 0
      %1470 = vmatpush1.bf16.msra.mxu0 0
      %1471 = vmatprep.subr.bf16.mxu0 0
      %1472 = vmatpush1.bf16.msra.mxu0 0
      %1473 = vmatprep.subr.bf16.mxu0 0
      %1474 = vmatpush1.bf16.msra.mxu0 0
      %1475 = vmatprep.subr.bf16.mxu0 0
      %1476 = vmatpush1.bf16.msra.mxu0 0
      %1477 = vmatprep.subr.bf16.mxu0 0
      %1478 = vmatpush1.bf16.msra.mxu0 0
      %1479 = vmatprep.subr.bf16.mxu0 0
      %1480 = vmatpush1.bf16.msra.mxu0 0
      %1481 = vmatprep.subr.bf16.mxu0 0
      %1482 = vmatpush1.bf16.msra.mxu0 0
      %1483 = vmatprep.subr.bf16.mxu0 0
      %1484 = vmatpush1.bf16.msra.mxu0 0
      %1485 = vmatprep.subr.bf16.mxu0 0
      %1486 = vmatpush1.bf16.msra.mxu0 0
      %1487 = vmatprep.subr.bf16.mxu0 0
      %1488 = vmatpush1.bf16.msra.mxu0 0
      %1489 = vmatprep.subr.bf16.mxu0 0
      %1490 = vmatpush1.bf16.msra.mxu0 0
      %1491 = vmatprep.subr.bf16.mxu0 0
      %1492 = vmatpush1.bf16.msra.mxu0 0
      %1493 = vmatprep.subr.bf16.mxu0 0
      %1494 = vmatpush1.bf16.msra.mxu0 0
      %1495 = vmatprep.mubr.bf16.mxu0 0
      %1496 = vmatmul.mubr.bf16.gmra.mrb[0].mxu0 %v1434
      %v1497 = vpop.f32.mrb[0].mxu0
      %v1498 = vadd.f32 0.0, %v1497
      %v1499 = vpop.f32.mrb[0].mxu0
      %v1500 = vpop.f32.mrb[0].mxu0
      %v1501 = vadd.f32 0.0, %v1500
      %v1502 = vpop.f32.mrb[0].mxu0
      %1503 = vmatprep.mubr.bf16.mxu0 0
      %1504 = vmatmul.mubr.bf16.gmra.mrb[0].mxu0 %v1437
      %v1505 = vpop.f32.mrb[0].mxu0
      %v1506 = vadd.f32 0.0, %v1505
      %v1507 = vpop.f32.mrb[0].mxu0
      %v1508 = vpop.f32.mrb[0].mxu0
      %v1509 = vadd.f32 0.0, %v1508
      %v1510 = vpop.f32.mrb[0].mxu0
      %1511 = vmatprep.mubr.bf16.mxu0 0
      %1512 = vmatmul.mubr.bf16.gmra.mrb[0].mxu0 %v1440
      %v1513 = vpop.f32.mrb[0].mxu0
      %v1514 = vadd.f32 0.0, %v1513
      %v1515 = vpop.f32.mrb[0].mxu0
      %v1516 = vpop.f32.mrb[0].mxu0
      %v1517 = vadd.f32 0.0, %v1516
      %v1518 = vpop.f32.mrb[0].mxu0
      %1519 = vmatprep.mubr.bf16.mxu0 0
      %1520 = vmatmul.mubr.bf16.gmra.mrb[0].mxu0 %v1443
      %v1521 = vpop.f32.mrb[0].mxu0
      %v1522 = vadd.f32 0.0, %v1521
      %v1523 = vpop.f32.mrb[0].mxu0
      %v1524 = vpop.f32.mrb[0].mxu0
      %v1525 = vadd.f32 0.0, %v1524
      %v1526 = vpop.f32.mrb[0].mxu0
      %1527 = vmatprep.mubr.bf16.mxu0 0
      %1528 = vmatmul.mubr.bf16.gmra.mrb[0].mxu0 %v1446
      %v1529 = vpop.f32.mrb[0].mxu0
      %v1530 = vadd.f32 0.0, %v1529
      %v1531 = vpop.f32.mrb[0].mxu0
      %v1532 = vpop.f32.mrb[0].mxu0
      %v1533 = vadd.f32 0.0, %v1532
      %v1534 = vpop.f32.mrb[0].mxu0
      %1535 = vmatprep.mubr.bf16.mxu0 0
      %1536 = vmatmul.mubr.bf16.gmra.mrb[0].mxu0 %v1449
      %v1537 = vpop.f32.mrb[0].mxu0
      %v1538 = vadd.f32 0.0, %v1537
      %v1539 = vpop.f32.mrb[0].mxu0
      %v1540 = vpop.f32.mrb[0].mxu0
      %v1541 = vadd.f32 0.0, %v1540
      %v1542 = vpop.f32.mrb[0].mxu0
      %1543 = vmatprep.mubr.bf16.mxu0 0
      %1544 = vmatmul.mubr.bf16.gmra.mrb[0].mxu0 %v1452
      %v1545 = vpop.f32.mrb[0].mxu0
      %v1546 = vadd.f32 0.0, %v1545
      %v1547 = vpop.f32.mrb[0].mxu0
      %v1548 = vpop.f32.mrb[0].mxu0
      %v1549 = vadd.f32 0.0, %v1548
      %v1550 = vpop.f32.mrb[0].mxu0
      %1551 = vmatprep.mubr.bf16.mxu0 0
      %1552 = vmatmul.mubr.bf16.gmra.mrb[0].mxu0 %v1455
      %v1553 = vpop.f32.mrb[0].mxu0
      %v1554 = vadd.f32 0.0, %v1553
      %v1555 = vpop.f32.mrb[0].mxu0
      %v1556 = vpop.f32.mrb[0].mxu0
      %v1557 = vadd.f32 0.0, %v1556
      %v1558 = vpop.f32.mrb[0].mxu0
      %1559 = vmatprep.mubr.bf16.mxu0 0
      %1560 = vmatmul.mubr.bf16.gmra.mrb[0].mxu0 %v1458
      %v1561 = vpop.f32.mrb[0].mxu0
      %v1562 = vadd.f32 0.0, %v1561
      %v1563 = vpop.f32.mrb[0].mxu0
      %v1564 = vpop.f32.mrb[0].mxu0
      %v1565 = vadd.f32 0.0, %v1564
      %v1566 = vpop.f32.mrb[0].mxu0
      %1567 = vdwg.mxu0
      %v1568 = vadd.f32 %v1319, %v1498
      %v1569 = vadd.f32 %v1320, %v1501
      %v1570 = vadd.f32 %v1321, %v1506
      %v1571 = vadd.f32 %v1322, %v1509
      %v1572 = vadd.f32 %v1323, %v1514
      %v1573 = vadd.f32 %v1324, %v1517
      %v1574 = vadd.f32 %v1325, %v1522
      %v1575 = vadd.f32 %v1326, %v1525
      %v1576 = vadd.f32 %v1327, %v1530
      %v1577 = vadd.f32 %v1328, %v1533
      %v1578 = vadd.f32 %v1329, %v1538
      %v1579 = vadd.f32 %v1330, %v1541
      %v1580 = vadd.f32 %v1331, %v1546
      %v1581 = vadd.f32 %v1332, %v1549
      %v1582 = vadd.f32 %v1333, %v1554
      %v1583 = vadd.f32 %v1334, %v1557
      %v1584 = vadd.f32 %v1335, %v1562
      %v1585 = vadd.f32 %v1336, %v1565
      %v1586 = vld [vmem:[%s499 + $0x8] sm:$0xc]
      %s1587 = scalar_lea.vmem %s1, 10
      %v1588 = vld [vmem:[%s1587] sm:$0x3]
      %v1590 = vunpack.c.l.b16 %v1586
      %v1591 = vpack.c.b16 %v1137, %v1590
      %vm1592 = vcmask 1045504
      %v1593 = vrot.slane %v1591, 2
      %v1594 = vrot.slane %v1156, 2
      %v1595 = vsel %vm1592, %v1593, %v1594
      %v1596 = vrot.slane %v1157, 2
      %v1597 = vsel %vm1592, %v1594, %v1596
      %v1598 = vrot.slane %v1158, 2
      %v1599 = vsel %vm1592, %v1596, %v1598
      %v1600 = vrot.slane %v1159, 2
      %v1601 = vsel %vm1592, %v1598, %v1600
      %v1602 = vrot.slane %v1160, 2
      %v1603 = vsel %vm1592, %v1600, %v1602
      %v1604 = vrot.slane %v1161, 2
      %v1605 = vsel %vm1592, %v1602, %v1604
      %v1606 = vrot.slane %v1162, 2
      %v1607 = vsel %vm1592, %v1604, %v1606
      %v1608 = vrot.slane %v1163, 2
      %v1609 = vsel %vm1592, %v1606, %v1608
      %v1610 = vrot.slane %v1342, 2
      %v1611 = vsel %vm1592, %v1608, %v1610
      %v1613 = vsel %vm654, %v1595, 0
      %v1616 = vsel %vm654, %v1597, 0
      %v1619 = vsel %vm654, %v1599, 0
      %v1622 = vsel %vm654, %v1601, 0
      %v1625 = vsel %vm654, %v1603, 0
      %v1628 = vsel %vm654, %v1605, 0
      %v1631 = vsel %vm654, %v1607, 0
      %v1634 = vsel %vm654, %v1609, 0
      %v1637 = vsel %vm654, %v1611, 0
      %v1640 = vsel %vm682, %v1588, 0
      %1642 = vmatprep.subr.bf16.mxu0 0
      %1643 = vmatpush1.bf16.msra.mxu0 %v1640
      %1644 = vmatprep.subr.bf16.mxu0 0
      %1645 = vmatpush1.bf16.msra.mxu0 0
      %1646 = vmatprep.subr.bf16.mxu0 0
      %1647 = vmatpush1.bf16.msra.mxu0 0
      %1648 = vmatprep.subr.bf16.mxu0 0
      %1649 = vmatpush1.bf16.msra.mxu0 0
      %1650 = vmatprep.subr.bf16.mxu0 0
      %1651 = vmatpush1.bf16.msra.mxu0 0
      %1652 = vmatprep.subr.bf16.mxu0 0
      %1653 = vmatpush1.bf16.msra.mxu0 0
      %1654 = vmatprep.subr.bf16.mxu0 0
      %1655 = vmatpush1.bf16.msra.mxu0 0
      %1656 = vmatprep.subr.bf16.mxu0 0
      %1657 = vmatpush1.bf16.msra.mxu0 0
      %1658 = vmatprep.subr.bf16.mxu0 0
      %1659 = vmatpush1.bf16.msra.mxu0 0
      %1660 = vmatprep.subr.bf16.mxu0 0
      %1661 = vmatpush1.bf16.msra.mxu0 0
      %1662 = vmatprep.subr.bf16.mxu0 0
      %1663 = vmatpush1.bf16.msra.mxu0 0
      %1664 = vmatprep.subr.bf16.mxu0 0
      %1665 = vmatpush1.bf16.msra.mxu0 0
      %1666 = vmatprep.subr.bf16.mxu0 0
      %1667 = vmatpush1.bf16.msra.mxu0 0
      %1668 = vmatprep.subr.bf16.mxu0 0
      %1669 = vmatpush1.bf16.msra.mxu0 0
      %1670 = vmatprep.subr.bf16.mxu0 0
      %1671 = vmatpush1.bf16.msra.mxu0 0
      %1672 = vmatprep.subr.bf16.mxu0 0
      %1673 = vmatpush1.bf16.msra.mxu0 0
      %1674 = vmatprep.mubr.bf16.mxu0 0
      %1675 = vmatmul.mubr.bf16.gmra.mrb[0].mxu0 %v1613
      %v1676 = vpop.f32.mrb[0].mxu0
      %v1677 = vadd.f32 0.0, %v1676
      %v1678 = vpop.f32.mrb[0].mxu0
      %v1679 = vpop.f32.mrb[0].mxu0
      %v1680 = vadd.f32 0.0, %v1679
      %v1681 = vpop.f32.mrb[0].mxu0
      %1682 = vmatprep.mubr.bf16.mxu0 0
      %1683 = vmatmul.mubr.bf16.gmra.mrb[0].mxu0 %v1616
      %v1684 = vpop.f32.mrb[0].mxu0
      %v1685 = vadd.f32 0.0, %v1684
      %v1686 = vpop.f32.mrb[0].mxu0
      %v1687 = vpop.f32.mrb[0].mxu0
      %v1688 = vadd.f32 0.0, %v1687
      %v1689 = vpop.f32.mrb[0].mxu0
      %1690 = vmatprep.mubr.bf16.mxu0 0
      %1691 = vmatmul.mubr.bf16.gmra.mrb[0].mxu0 %v1619
      %v1692 = vpop.f32.mrb[0].mxu0
      %v1693 = vadd.f32 0.0, %v1692
      %v1694 = vpop.f32.mrb[0].mxu0
      %v1695 = vpop.f32.mrb[0].mxu0
      %v1696 = vadd.f32 0.0, %v1695
      %v1697 = vpop.f32.mrb[0].mxu0
      %1698 = vmatprep.mubr.bf16.mxu0 0
      %1699 = vmatmul.mubr.bf16.gmra.mrb[0].mxu0 %v1622
      %v1700 = vpop.f32.mrb[0].mxu0
      %v1701 = vadd.f32 0.0, %v1700
      %v1702 = vpop.f32.mrb[0].mxu0
      %v1703 = vpop.f32.mrb[0].mxu0
      %v1704 = vadd.f32 0.0, %v1703
      %v1705 = vpop.f32.mrb[0].mxu0
      %1706 = vmatprep.mubr.bf16.mxu0 0
      %1707 = vmatmul.mubr.bf16.gmra.mrb[0].mxu0 %v1625
      %v1708 = vpop.f32.mrb[0].mxu0
      %v1709 = vadd.f32 0.0, %v1708
      %v1710 = vpop.f32.mrb[0].mxu0
      %v1711 = vpop.f32.mrb[0].mxu0
      %v1712 = vadd.f32 0.0, %v1711
      %v1713 = vpop.f32.mrb[0].mxu0
      %1714 = vmatprep.mubr.bf16.mxu0 0
      %1715 = vmatmul.mubr.bf16.gmra.mrb[0].mxu0 %v1628
      %v1716 = vpop.f32.mrb[0].mxu0
      %v1717 = vadd.f32 0.0, %v1716
      %v1718 = vpop.f32.mrb[0].mxu0
      %v1719 = vpop.f32.mrb[0].mxu0
      %v1720 = vadd.f32 0.0, %v1719
      %v1721 = vpop.f32.mrb[0].mxu0
      %1722 = vmatprep.mubr.bf16.mxu0 0
      %1723 = vmatmul.mubr.bf16.gmra.mrb[0].mxu0 %v1631
      %v1724 = vpop.f32.mrb[0].mxu0
      %v1725 = vadd.f32 0.0, %v1724
      %v1726 = vpop.f32.mrb[0].mxu0
      %v1727 = vpop.f32.mrb[0].mxu0
      %v1728 = vadd.f32 0.0, %v1727
      %v1729 = vpop.f32.mrb[0].mxu0
      %1730 = vmatprep.mubr.bf16.mxu0 0
      %1731 = vmatmul.mubr.bf16.gmra.mrb[0].mxu0 %v1634
      %v1732 = vpop.f32.mrb[0].mxu0
      %v1733 = vadd.f32 0.0, %v1732
      %v1734 = vpop.f32.mrb[0].mxu0
      %v1735 = vpop.f32.mrb[0].mxu0
      %v1736 = vadd.f32 0.0, %v1735
      %v1737 = vpop.f32.mrb[0].mxu0
      %1738 = vmatprep.mubr.bf16.mxu0 0
      %1739 = vmatmul.mubr.bf16.gmra.mrb[0].mxu0 %v1637
      %v1740 = vpop.f32.mrb[0].mxu0
      %v1741 = vadd.f32 0.0, %v1740
      %v1742 = vpop.f32.mrb[0].mxu0
      %v1743 = vpop.f32.mrb[0].mxu0
      %v1744 = vadd.f32 0.0, %v1743
      %v1745 = vpop.f32.mrb[0].mxu0
      %1746 = vdwg.mxu0
      %v1747 = vadd.f32 %v1568, %v1677
      %v1748 = vadd.f32 %v1569, %v1680
      %v1749 = vadd.f32 %v1570, %v1685
      %v1750 = vadd.f32 %v1571, %v1688
      %v1751 = vadd.f32 %v1572, %v1693
      %v1752 = vadd.f32 %v1573, %v1696
      %v1753 = vadd.f32 %v1574, %v1701
      %v1754 = vadd.f32 %v1575, %v1704
      %v1755 = vadd.f32 %v1576, %v1709
      %v1756 = vadd.f32 %v1577, %v1712
      %v1757 = vadd.f32 %v1578, %v1717
      %v1758 = vadd.f32 %v1579, %v1720
      %v1759 = vadd.f32 %v1580, %v1725
      %v1760 = vadd.f32 %v1581, %v1728
      %v1761 = vadd.f32 %v1582, %v1733
      %v1762 = vadd.f32 %v1583, %v1736
      %v1763 = vadd.f32 %v1584, %v1741
      %v1764 = vadd.f32 %v1585, %v1744
      %v1765 = vld [vmem:[%s499 + $0x10] sm:$0xc]
      %v1766 = vld [vmem:[%s499 + $0x14] sm:$0xf]
      %v1767 = vld [vmem:[%s499 + $0x18] sm:$0xf]
      %v1768 = vld [vmem:[%s499 + $0x1c] sm:$0xf]
      %v1769 = vld [vmem:[%s499 + $0x20] sm:$0xf]
      %v1770 = vld [vmem:[%s499 + $0x24] sm:$0xf]
      %v1771 = vld [vmem:[%s499 + $0x28] sm:$0xf]
      %v1772 = vld [vmem:[%s499 + $0x2c] sm:$0xf]
      %v1773 = vld [vmem:[%s499 + $0x30] sm:$0xf]
      %v1774 = vld [vmem:[%s499 + $0x34] sm:$0xf]
      %v1775 = vld [vmem:[%s499 + $0x38] sm:$0xf]
      %v1776 = vld [vmem:[%s499 + $0x3c] sm:$0xf]
      %v1777 = vld [vmem:[%s499 + $0x40] sm:$0xf]
      %v1778 = vld [vmem:[%s499 + $0x44] sm:$0xf]
      %v1779 = vld [vmem:[%s499 + $0x48] sm:$0xf]
      %v1780 = vld [vmem:[%s499 + $0x4c] sm:$0xf]
      %v1781 = vld [vmem:[%s499 + $0x50] sm:$0xf]
      %v1782 = vld [vmem:[%s499 + $0x54] sm:$0xf]
      %v1783 = vld [vmem:[%s499 + $0x58] sm:$0x3]
      %s1784 = scalar_lea.vmem %s1, 12
      %v1785 = vld [vmem:[%s1784] sm:$0x3]
      %v1805 = vunpack.c.l.b16 %v1765
      %v1806 = vunpack.c.l.b16 %v1766
      %v1807 = vunpack.c.l.b16 %v1767
      %v1808 = vunpack.c.l.b16 %v1768
      %v1809 = vunpack.c.l.b16 %v1769
      %v1810 = vunpack.c.l.b16 %v1770
      %v1811 = vunpack.c.l.b16 %v1771
      %v1812 = vunpack.c.l.b16 %v1772
      %v1813 = vunpack.c.l.b16 %v1773
      %v1814 = vunpack.c.l.b16 %v1774
      %v1815 = vunpack.c.l.b16 %v1775
      %v1816 = vunpack.c.l.b16 %v1776
      %v1817 = vunpack.c.l.b16 %v1777
      %v1818 = vunpack.c.l.b16 %v1778
      %v1819 = vunpack.c.l.b16 %v1779
      %v1820 = vunpack.c.l.b16 %v1780
      %v1821 = vunpack.c.l.b16 %v1781
      %v1822 = vunpack.c.l.b16 %v1782
      %v1823 = vunpack.c.l.b16 %v1783
      %v1824 = vpack.c.b16 %v1806, %v1805
      %v1825 = vpack.c.b16 %v1808, %v1807
      %v1826 = vpack.c.b16 %v1810, %v1809
      %v1827 = vpack.c.b16 %v1812, %v1811
      %v1828 = vpack.c.b16 %v1814, %v1813
      %v1829 = vpack.c.b16 %v1816, %v1815
      %v1830 = vpack.c.b16 %v1818, %v1817
      %v1831 = vpack.c.b16 %v1820, %v1819
      %v1832 = vpack.c.b16 %v1822, %v1821
      %v1833 = vpack.c.b16 %v1823, %v1823
      %v1834 = vrot.slane %v1824, 2
      %v1835 = vrot.slane %v1825, 2
      %v1836 = vsel %vm1592, %v1834, %v1835
      %v1837 = vrot.slane %v1826, 2
      %v1838 = vsel %vm1592, %v1835, %v1837
      %v1839 = vrot.slane %v1827, 2
      %v1840 = vsel %vm1592, %v1837, %v1839
      %v1841 = vrot.slane %v1828, 2
      %v1842 = vsel %vm1592, %v1839, %v1841
      %v1843 = vrot.slane %v1829, 2
      %v1844 = vsel %vm1592, %v1841, %v1843
      %v1845 = vrot.slane %v1830, 2
      %v1846 = vsel %vm1592, %v1843, %v1845
      %v1847 = vrot.slane %v1831, 2
      %v1848 = vsel %vm1592, %v1845, %v1847
      %v1849 = vrot.slane %v1832, 2
      %v1850 = vsel %vm1592, %v1847, %v1849
      %v1851 = vrot.slane %v1833, 2
      %v1852 = vsel %vm1592, %v1849, %v1851
      %v1854 = vsel %vm654, %v1836, 0
      %v1857 = vsel %vm654, %v1838, 0
      %v1860 = vsel %vm654, %v1840, 0
      %v1863 = vsel %vm654, %v1842, 0
      %v1866 = vsel %vm654, %v1844, 0
      %v1869 = vsel %vm654, %v1846, 0
      %v1872 = vsel %vm654, %v1848, 0
      %v1875 = vsel %vm654, %v1850, 0
      %v1878 = vsel %vm654, %v1852, 0
      %v1881 = vsel %vm682, %v1785, 0
      %1883 = vmatprep.subr.bf16.mxu0 0
      %1884 = vmatpush1.bf16.msra.mxu0 %v1881
      %1885 = vmatprep.subr.bf16.mxu0 0
      %1886 = vmatpush1.bf16.msra.mxu0 0
      %1887 = vmatprep.subr.bf16.mxu0 0
      %1888 = vmatpush1.bf16.msra.mxu0 0
      %1889 = vmatprep.subr.bf16.mxu0 0
      %1890 = vmatpush1.bf16.msra.mxu0 0
      %1891 = vmatprep.subr.bf16.mxu0 0
      %1892 = vmatpush1.bf16.msra.mxu0 0
      %1893 = vmatprep.subr.bf16.mxu0 0
      %1894 = vmatpush1.bf16.msra.mxu0 0
      %1895 = vmatprep.subr.bf16.mxu0 0
      %1896 = vmatpush1.bf16.msra.mxu0 0
      %1897 = vmatprep.subr.bf16.mxu0 0
      %1898 = vmatpush1.bf16.msra.mxu0 0
      %1899 = vmatprep.subr.bf16.mxu0 0
      %1900 = vmatpush1.bf16.msra.mxu0 0
      %1901 = vmatprep.subr.bf16.mxu0 0
      %1902 = vmatpush1.bf16.msra.mxu0 0
      %1903 = vmatprep.subr.bf16.mxu0 0
      %1904 = vmatpush1.bf16.msra.mxu0 0
      %1905 = vmatprep.subr.bf16.mxu0 0
      %1906 = vmatpush1.bf16.msra.mxu0 0
      %1907 = vmatprep.subr.bf16.mxu0 0
      %1908 = vmatpush1.bf16.msra.mxu0 0
      %1909 = vmatprep.subr.bf16.mxu0 0
      %1910 = vmatpush1.bf16.msra.mxu0 0
      %1911 = vmatprep.subr.bf16.mxu0 0
      %1912 = vmatpush1.bf16.msra.mxu0 0
      %1913 = vmatprep.subr.bf16.mxu0 0
      %1914 = vmatpush1.bf16.msra.mxu0 0
      %1915 = vmatprep.mubr.bf16.mxu0 0
      %1916 = vmatmul.mubr.bf16.gmra.mrb[0].mxu0 %v1854
      %v1917 = vpop.f32.mrb[0].mxu0
      %v1918 = vadd.f32 0.0, %v1917
      %v1919 = vpop.f32.mrb[0].mxu0
      %v1920 = vpop.f32.mrb[0].mxu0
      %v1921 = vadd.f32 0.0, %v1920
      %v1922 = vpop.f32.mrb[0].mxu0
      %1923 = vmatprep.mubr.bf16.mxu0 0
      %1924 = vmatmul.mubr.bf16.gmra.mrb[0].mxu0 %v1857
      %v1925 = vpop.f32.mrb[0].mxu0
      %v1926 = vadd.f32 0.0, %v1925
      %v1927 = vpop.f32.mrb[0].mxu0
      %v1928 = vpop.f32.mrb[0].mxu0
      %v1929 = vadd.f32 0.0, %v1928
      %v1930 = vpop.f32.mrb[0].mxu0
      %1931 = vmatprep.mubr.bf16.mxu0 0
      %1932 = vmatmul.mubr.bf16.gmra.mrb[0].mxu0 %v1860
      %v1933 = vpop.f32.mrb[0].mxu0
      %v1934 = vadd.f32 0.0, %v1933
      %v1935 = vpop.f32.mrb[0].mxu0
      %v1936 = vpop.f32.mrb[0].mxu0
      %v1937 = vadd.f32 0.0, %v1936
      %v1938 = vpop.f32.mrb[0].mxu0
      %1939 = vmatprep.mubr.bf16.mxu0 0
      %1940 = vmatmul.mubr.bf16.gmra.mrb[0].mxu0 %v1863
      %v1941 = vpop.f32.mrb[0].mxu0
      %v1942 = vadd.f32 0.0, %v1941
      %v1943 = vpop.f32.mrb[0].mxu0
      %v1944 = vpop.f32.mrb[0].mxu0
      %v1945 = vadd.f32 0.0, %v1944
      %v1946 = vpop.f32.mrb[0].mxu0
      %1947 = vmatprep.mubr.bf16.mxu0 0
      %1948 = vmatmul.mubr.bf16.gmra.mrb[0].mxu0 %v1866
      %v1949 = vpop.f32.mrb[0].mxu0
      %v1950 = vadd.f32 0.0, %v1949
      %v1951 = vpop.f32.mrb[0].mxu0
      %v1952 = vpop.f32.mrb[0].mxu0
      %v1953 = vadd.f32 0.0, %v1952
      %v1954 = vpop.f32.mrb[0].mxu0
      %1955 = vmatprep.mubr.bf16.mxu0 0
      %1956 = vmatmul.mubr.bf16.gmra.mrb[0].mxu0 %v1869
      %v1957 = vpop.f32.mrb[0].mxu0
      %v1958 = vadd.f32 0.0, %v1957
      %v1959 = vpop.f32.mrb[0].mxu0
      %v1960 = vpop.f32.mrb[0].mxu0
      %v1961 = vadd.f32 0.0, %v1960
      %v1962 = vpop.f32.mrb[0].mxu0
      %1963 = vmatprep.mubr.bf16.mxu0 0
      %1964 = vmatmul.mubr.bf16.gmra.mrb[0].mxu0 %v1872
      %v1965 = vpop.f32.mrb[0].mxu0
      %v1966 = vadd.f32 0.0, %v1965
      %v1967 = vpop.f32.mrb[0].mxu0
      %v1968 = vpop.f32.mrb[0].mxu0
      %v1969 = vadd.f32 0.0, %v1968
      %v1970 = vpop.f32.mrb[0].mxu0
      %1971 = vmatprep.mubr.bf16.mxu0 0
      %1972 = vmatmul.mubr.bf16.gmra.mrb[0].mxu0 %v1875
      %v1973 = vpop.f32.mrb[0].mxu0
      %v1974 = vadd.f32 0.0, %v1973
      %v1975 = vpop.f32.mrb[0].mxu0
      %v1976 = vpop.f32.mrb[0].mxu0
      %v1977 = vadd.f32 0.0, %v1976
      %v1978 = vpop.f32.mrb[0].mxu0
      %1979 = vmatprep.mubr.bf16.mxu0 0
      %1980 = vmatmul.mubr.bf16.gmra.mrb[0].mxu0 %v1878
      %v1981 = vpop.f32.mrb[0].mxu0
      %v1982 = vadd.f32 0.0, %v1981
      %v1983 = vpop.f32.mrb[0].mxu0
      %v1984 = vpop.f32.mrb[0].mxu0
      %v1985 = vadd.f32 0.0, %v1984
      %v1986 = vpop.f32.mrb[0].mxu0
      %1987 = vdwg.mxu0
      %v1988 = vadd.f32 %v1747, %v1918
      %v1989 = vadd.f32 %v1748, %v1921
      %v1990 = vadd.f32 %v1749, %v1926
      %v1991 = vadd.f32 %v1750, %v1929
      %v1992 = vadd.f32 %v1751, %v1934
      %v1993 = vadd.f32 %v1752, %v1937
      %v1994 = vadd.f32 %v1753, %v1942
      %v1995 = vadd.f32 %v1754, %v1945
      %v1996 = vadd.f32 %v1755, %v1950
      %v1997 = vadd.f32 %v1756, %v1953
      %v1998 = vadd.f32 %v1757, %v1958
      %v1999 = vadd.f32 %v1758, %v1961
      %v2000 = vadd.f32 %v1759, %v1966
      %v2001 = vadd.f32 %v1760, %v1969
      %v2002 = vadd.f32 %v1761, %v1974
      %v2003 = vadd.f32 %v1762, %v1977
      %v2004 = vadd.f32 %v1763, %v1982
      %v2005 = vadd.f32 %v1764, %v1985
      %v2006 = vld [vmem:[%s499 + $0x58] sm:$0x7]
      %s2007 = scalar_lea.vmem %s1, 14
      %v2008 = vld [vmem:[%s2007] sm:$0x3]
      %v2010 = vunpack.c.l.b16 %v2006
      %v2011 = vpack.c.b16 %v2010, %v2010
      %vm2012 = vsmask.f32 5376
      %v2014 = vshrl.u32 %v1824, 16
      %v2016 = vrot.slane %v2014, 2
      %v2017 = vshll.u32 %v1824, 16
      %v2019 = vrot.slane %v2017, 3
      %v2020 = vor.u32 %v2016, %v2019
      %v2022 = vshrl.u32 %v1825, 16
      %v2024 = vrot.slane %v2022, 2
      %v2025 = vshll.u32 %v1825, 16
      %v2027 = vrot.slane %v2025, 3
      %v2028 = vor.u32 %v2024, %v2027
      %v2029 = vsel %vm2012, %v2020, %v2028
      %v2031 = vshrl.u32 %v1826, 16
      %v2033 = vrot.slane %v2031, 2
      %v2034 = vshll.u32 %v1826, 16
      %v2036 = vrot.slane %v2034, 3
      %v2037 = vor.u32 %v2033, %v2036
      %v2038 = vsel %vm2012, %v2028, %v2037
      %v2040 = vshrl.u32 %v1827, 16
      %v2042 = vrot.slane %v2040, 2
      %v2043 = vshll.u32 %v1827, 16
      %v2045 = vrot.slane %v2043, 3
      %v2046 = vor.u32 %v2042, %v2045
      %v2047 = vsel %vm2012, %v2037, %v2046
      %v2049 = vshrl.u32 %v1828, 16
      %v2051 = vrot.slane %v2049, 2
      %v2052 = vshll.u32 %v1828, 16
      %v2054 = vrot.slane %v2052, 3
      %v2055 = vor.u32 %v2051, %v2054
      %v2056 = vsel %vm2012, %v2046, %v2055
      %v2058 = vshrl.u32 %v1829, 16
      %v2060 = vrot.slane %v2058, 2
      %v2061 = vshll.u32 %v1829, 16
      %v2063 = vrot.slane %v2061, 3
      %v2064 = vor.u32 %v2060, %v2063
      %v2065 = vsel %vm2012, %v2055, %v2064
      %v2067 = vshrl.u32 %v1830, 16
      %v2069 = vrot.slane %v2067, 2
      %v2070 = vshll.u32 %v1830, 16
      %v2072 = vrot.slane %v2070, 3
      %v2073 = vor.u32 %v2069, %v2072
      %v2074 = vsel %vm2012, %v2064, %v2073
      %v2076 = vshrl.u32 %v1831, 16
      %v2078 = vrot.slane %v2076, 2
      %v2079 = vshll.u32 %v1831, 16
      %v2081 = vrot.slane %v2079, 3
      %v2082 = vor.u32 %v2078, %v2081
      %v2083 = vsel %vm2012, %v2073, %v2082
      %v2085 = vshrl.u32 %v1832, 16
      %v2087 = vrot.slane %v2085, 2
      %v2088 = vshll.u32 %v1832, 16
      %v2090 = vrot.slane %v2088, 3
      %v2091 = vor.u32 %v2087, %v2090
      %v2092 = vsel %vm2012, %v2082, %v2091
      %v2094 = vshrl.u32 %v2011, 16
      %v2096 = vrot.slane %v2094, 2
      %v2097 = vshll.u32 %v2011, 16
      %v2099 = vrot.slane %v2097, 3
      %v2100 = vor.u32 %v2096, %v2099
      %v2101 = vsel %vm2012, %v2091, %v2100
      %v2103 = vsel %vm654, %v2029, 0
      %v2106 = vsel %vm654, %v2038, 0
      %v2109 = vsel %vm654, %v2047, 0
      %v2112 = vsel %vm654, %v2056, 0
      %v2115 = vsel %vm654, %v2065, 0
      %v2118 = vsel %vm654, %v2074, 0
      %v2121 = vsel %vm654, %v2083, 0
      %v2124 = vsel %vm654, %v2092, 0
      %v2127 = vsel %vm654, %v2101, 0
      %v2130 = vsel %vm682, %v2008, 0
      %2132 = vmatprep.subr.bf16.mxu0 0
      %2133 = vmatpush1.bf16.msra.mxu0 %v2130
      %2134 = vmatprep.subr.bf16.mxu0 0
      %2135 = vmatpush1.bf16.msra.mxu0 0
      %2136 = vmatprep.subr.bf16.mxu0 0
      %2137 = vmatpush1.bf16.msra.mxu0 0
      %2138 = vmatprep.subr.bf16.mxu0 0
      %2139 = vmatpush1.bf16.msra.mxu0 0
      %2140 = vmatprep.subr.bf16.mxu0 0
      %2141 = vmatpush1.bf16.msra.mxu0 0
      %2142 = vmatprep.subr.bf16.mxu0 0
      %2143 = vmatpush1.bf16.msra.mxu0 0
      %2144 = vmatprep.subr.bf16.mxu0 0
      %2145 = vmatpush1.bf16.msra.mxu0 0
      %2146 = vmatprep.subr.bf16.mxu0 0
      %2147 = vmatpush1.bf16.msra.mxu0 0
      %2148 = vmatprep.subr.bf16.mxu0 0
      %2149 = vmatpush1.bf16.msra.mxu0 0
      %2150 = vmatprep.subr.bf16.mxu0 0
      %2151 = vmatpush1.bf16.msra.mxu0 0
      %2152 = vmatprep.subr.bf16.mxu0 0
      %2153 = vmatpush1.bf16.msra.mxu0 0
      %2154 = vmatprep.subr.bf16.mxu0 0
      %2155 = vmatpush1.bf16.msra.mxu0 0
      %2156 = vmatprep.subr.bf16.mxu0 0
      %2157 = vmatpush1.bf16.msra.mxu0 0
      %2158 = vmatprep.subr.bf16.mxu0 0
      %2159 = vmatpush1.bf16.msra.mxu0 0
      %2160 = vmatprep.subr.bf16.mxu0 0
      %2161 = vmatpush1.bf16.msra.mxu0 0
      %2162 = vmatprep.subr.bf16.mxu0 0
      %2163 = vmatpush1.bf16.msra.mxu0 0
      %2164 = vmatprep.mubr.bf16.mxu0 0
      %2165 = vmatmul.mubr.bf16.gmra.mrb[0].mxu0 %v2103
      %v2166 = vpop.f32.mrb[0].mxu0
      %v2167 = vadd.f32 0.0, %v2166
      %v2168 = vpop.f32.mrb[0].mxu0
      %v2169 = vpop.f32.mrb[0].mxu0
      %v2170 = vadd.f32 0.0, %v2169
      %v2171 = vpop.f32.mrb[0].mxu0
      %2172 = vmatprep.mubr.bf16.mxu0 0
      %2173 = vmatmul.mubr.bf16.gmra.mrb[0].mxu0 %v2106
      %v2174 = vpop.f32.mrb[0].mxu0
      %v2175 = vadd.f32 0.0, %v2174
      %v2176 = vpop.f32.mrb[0].mxu0
      %v2177 = vpop.f32.mrb[0].mxu0
      %v2178 = vadd.f32 0.0, %v2177
      %v2179 = vpop.f32.mrb[0].mxu0
      %2180 = vmatprep.mubr.bf16.mxu0 0
      %2181 = vmatmul.mubr.bf16.gmra.mrb[0].mxu0 %v2109
      %v2182 = vpop.f32.mrb[0].mxu0
      %v2183 = vadd.f32 0.0, %v2182
      %v2184 = vpop.f32.mrb[0].mxu0
      %v2185 = vpop.f32.mrb[0].mxu0
      %v2186 = vadd.f32 0.0, %v2185
      %v2187 = vpop.f32.mrb[0].mxu0
      %2188 = vmatprep.mubr.bf16.mxu0 0
      %2189 = vmatmul.mubr.bf16.gmra.mrb[0].mxu0 %v2112
      %v2190 = vpop.f32.mrb[0].mxu0
      %v2191 = vadd.f32 0.0, %v2190
      %v2192 = vpop.f32.mrb[0].mxu0
      %v2193 = vpop.f32.mrb[0].mxu0
      %v2194 = vadd.f32 0.0, %v2193
      %v2195 = vpop.f32.mrb[0].mxu0
      %2196 = vmatprep.mubr.bf16.mxu0 0
      %2197 = vmatmul.mubr.bf16.gmra.mrb[0].mxu0 %v2115
      %v2198 = vpop.f32.mrb[0].mxu0
      %v2199 = vadd.f32 0.0, %v2198
      %v2200 = vpop.f32.mrb[0].mxu0
      %v2201 = vpop.f32.mrb[0].mxu0
      %v2202 = vadd.f32 0.0, %v2201
      %v2203 = vpop.f32.mrb[0].mxu0
      %2204 = vmatprep.mubr.bf16.mxu0 0
      %2205 = vmatmul.mubr.bf16.gmra.mrb[0].mxu0 %v2118
      %v2206 = vpop.f32.mrb[0].mxu0
      %v2207 = vadd.f32 0.0, %v2206
      %v2208 = vpop.f32.mrb[0].mxu0
      %v2209 = vpop.f32.mrb[0].mxu0
      %v2210 = vadd.f32 0.0, %v2209
      %v2211 = vpop.f32.mrb[0].mxu0
      %2212 = vmatprep.mubr.bf16.mxu0 0
      %2213 = vmatmul.mubr.bf16.gmra.mrb[0].mxu0 %v2121
      %v2214 = vpop.f32.mrb[0].mxu0
      %v2215 = vadd.f32 0.0, %v2214
      %v2216 = vpop.f32.mrb[0].mxu0
      %v2217 = vpop.f32.mrb[0].mxu0
      %v2218 = vadd.f32 0.0, %v2217
      %v2219 = vpop.f32.mrb[0].mxu0
      %2220 = vmatprep.mubr.bf16.mxu0 0
      %2221 = vmatmul.mubr.bf16.gmra.mrb[0].mxu0 %v2124
      %v2222 = vpop.f32.mrb[0].mxu0
      %v2223 = vadd.f32 0.0, %v2222
      %v2224 = vpop.f32.mrb[0].mxu0
      %v2225 = vpop.f32.mrb[0].mxu0
      %v2226 = vadd.f32 0.0, %v2225
      %v2227 = vpop.f32.mrb[0].mxu0
      %2228 = vmatprep.mubr.bf16.mxu0 0
      %2229 = vmatmul.mubr.bf16.gmra.mrb[0].mxu0 %v2127
      %v2230 = vpop.f32.mrb[0].mxu0
      %v2231 = vadd.f32 0.0, %v2230
      %v2232 = vpop.f32.mrb[0].mxu0
      %v2233 = vpop.f32.mrb[0].mxu0
      %v2234 = vadd.f32 0.0, %v2233
      %v2235 = vpop.f32.mrb[0].mxu0
      %2236 = vdwg.mxu0
      %v2237 = vadd.f32 %v1988, %v2167
      %v2238 = vadd.f32 %v1989, %v2170
      %v2239 = vadd.f32 %v1990, %v2175
      %v2240 = vadd.f32 %v1991, %v2178
      %v2241 = vadd.f32 %v1992, %v2183
      %v2242 = vadd.f32 %v1993, %v2186
      %v2243 = vadd.f32 %v1994, %v2191
      %v2244 = vadd.f32 %v1995, %v2194
      %v2245 = vadd.f32 %v1996, %v2199
      %v2246 = vadd.f32 %v1997, %v2202
      %v2247 = vadd.f32 %v1998, %v2207
      %v2248 = vadd.f32 %v1999, %v2210
      %v2249 = vadd.f32 %v2000, %v2215
      %v2250 = vadd.f32 %v2001, %v2218
      %v2251 = vadd.f32 %v2002, %v2223
      %v2252 = vadd.f32 %v2003, %v2226
      %v2253 = vadd.f32 %v2004, %v2231
      %v2254 = vadd.f32 %v2005, %v2234
      %v2255 = vld [vmem:[%s499 + $0x10] sm:$0x8]
      %s2256 = scalar_lea.vmem %s1, 16
      %v2257 = vld [vmem:[%s2256] sm:$0x3]
      %v2259 = vunpack.c.l.b16 %v2255
      %v2260 = vpack.c.b16 %v1806, %v2259
      %vm2261 = vcmask 1044480
      %v2262 = vrot.slane %v2260, 3
      %v2263 = vrot.slane %v1825, 3
      %v2264 = vsel %vm2261, %v2262, %v2263
      %v2265 = vrot.slane %v1826, 3
      %v2266 = vsel %vm2261, %v2263, %v2265
      %v2267 = vrot.slane %v1827, 3
      %v2268 = vsel %vm2261, %v2265, %v2267
      %v2269 = vrot.slane %v1828, 3
      %v2270 = vsel %vm2261, %v2267, %v2269
      %v2271 = vrot.slane %v1829, 3
      %v2272 = vsel %vm2261, %v2269, %v2271
      %v2273 = vrot.slane %v1830, 3
      %v2274 = vsel %vm2261, %v2271, %v2273
      %v2275 = vrot.slane %v1831, 3
      %v2276 = vsel %vm2261, %v2273, %v2275
      %v2277 = vrot.slane %v1832, 3
      %v2278 = vsel %vm2261, %v2275, %v2277
      %v2279 = vrot.slane %v2011, 3
      %v2280 = vsel %vm2261, %v2277, %v2279
      %v2282 = vsel %vm654, %v2264, 0
      %v2285 = vsel %vm654, %v2266, 0
      %v2288 = vsel %vm654, %v2268, 0
      %v2291 = vsel %vm654, %v2270, 0
      %v2294 = vsel %vm654, %v2272, 0
      %v2297 = vsel %vm654, %v2274, 0
      %v2300 = vsel %vm654, %v2276, 0
      %v2303 = vsel %vm654, %v2278, 0
      %v2306 = vsel %vm654, %v2280, 0
      %v2309 = vsel %vm682, %v2257, 0
      %2311 = vmatprep.subr.bf16.mxu0 0
      %2312 = vmatpush1.bf16.msra.mxu0 %v2309
      %2313 = vmatprep.subr.bf16.mxu0 0
      %2314 = vmatpush1.bf16.msra.mxu0 0
      %2315 = vmatprep.subr.bf16.mxu0 0
      %2316 = vmatpush1.bf16.msra.mxu0 0
      %2317 = vmatprep.subr.bf16.mxu0 0
      %2318 = vmatpush1.bf16.msra.mxu0 0
      %2319 = vmatprep.subr.bf16.mxu0 0
      %2320 = vmatpush1.bf16.msra.mxu0 0
      %2321 = vmatprep.subr.bf16.mxu0 0
      %2322 = vmatpush1.bf16.msra.mxu0 0
      %2323 = vmatprep.subr.bf16.mxu0 0
      %2324 = vmatpush1.bf16.msra.mxu0 0
      %2325 = vmatprep.subr.bf16.mxu0 0
      %2326 = vmatpush1.bf16.msra.mxu0 0
      %2327 = vmatprep.subr.bf16.mxu0 0
      %2328 = vmatpush1.bf16.msra.mxu0 0
      %2329 = vmatprep.subr.bf16.mxu0 0
      %2330 = vmatpush1.bf16.msra.mxu0 0
      %2331 = vmatprep.subr.bf16.mxu0 0
      %2332 = vmatpush1.bf16.msra.mxu0 0
      %2333 = vmatprep.subr.bf16.mxu0 0
      %2334 = vmatpush1.bf16.msra.mxu0 0
      %2335 = vmatprep.subr.bf16.mxu0 0
      %2336 = vmatpush1.bf16.msra.mxu0 0
      %2337 = vmatprep.subr.bf16.mxu0 0
      %2338 = vmatpush1.bf16.msra.mxu0 0
      %2339 = vmatprep.subr.bf16.mxu0 0
      %2340 = vmatpush1.bf16.msra.mxu0 0
      %2341 = vmatprep.subr.bf16.mxu0 0
      %2342 = vmatpush1.bf16.msra.mxu0 0
      %2343 = vmatprep.mubr.bf16.mxu0 0
      %2344 = vmatmul.mubr.bf16.gmra.mrb[0].mxu0 %v2282
      %v2345 = vpop.f32.mrb[0].mxu0
      %v2346 = vadd.f32 0.0, %v2345
      %v2347 = vpop.f32.mrb[0].mxu0
      %v2348 = vpop.f32.mrb[0].mxu0
      %v2349 = vadd.f32 0.0, %v2348
      %v2350 = vpop.f32.mrb[0].mxu0
      %2351 = vmatprep.mubr.bf16.mxu0 0
      %2352 = vmatmul.mubr.bf16.gmra.mrb[0].mxu0 %v2285
      %v2353 = vpop.f32.mrb[0].mxu0
      %v2354 = vadd.f32 0.0, %v2353
      %v2355 = vpop.f32.mrb[0].mxu0
      %v2356 = vpop.f32.mrb[0].mxu0
      %v2357 = vadd.f32 0.0, %v2356
      %v2358 = vpop.f32.mrb[0].mxu0
      %2359 = vmatprep.mubr.bf16.mxu0 0
      %2360 = vmatmul.mubr.bf16.gmra.mrb[0].mxu0 %v2288
      %v2361 = vpop.f32.mrb[0].mxu0
      %v2362 = vadd.f32 0.0, %v2361
      %v2363 = vpop.f32.mrb[0].mxu0
      %v2364 = vpop.f32.mrb[0].mxu0
      %v2365 = vadd.f32 0.0, %v2364
      %v2366 = vpop.f32.mrb[0].mxu0
      %2367 = vmatprep.mubr.bf16.mxu0 0
      %2368 = vmatmul.mubr.bf16.gmra.mrb[0].mxu0 %v2291
      %v2369 = vpop.f32.mrb[0].mxu0
      %v2370 = vadd.f32 0.0, %v2369
      %v2371 = vpop.f32.mrb[0].mxu0
      %v2372 = vpop.f32.mrb[0].mxu0
      %v2373 = vadd.f32 0.0, %v2372
      %v2374 = vpop.f32.mrb[0].mxu0
      %2375 = vmatprep.mubr.bf16.mxu0 0
      %2376 = vmatmul.mubr.bf16.gmra.mrb[0].mxu0 %v2294
      %v2377 = vpop.f32.mrb[0].mxu0
      %v2378 = vadd.f32 0.0, %v2377
      %v2379 = vpop.f32.mrb[0].mxu0
      %v2380 = vpop.f32.mrb[0].mxu0
      %v2381 = vadd.f32 0.0, %v2380
      %v2382 = vpop.f32.mrb[0].mxu0
      %2383 = vmatprep.mubr.bf16.mxu0 0
      %2384 = vmatmul.mubr.bf16.gmra.mrb[0].mxu0 %v2297
      %v2385 = vpop.f32.mrb[0].mxu0
      %v2386 = vadd.f32 0.0, %v2385
      %v2387 = vpop.f32.mrb[0].mxu0
      %v2388 = vpop.f32.mrb[0].mxu0
      %v2389 = vadd.f32 0.0, %v2388
      %v2390 = vpop.f32.mrb[0].mxu0
      %2391 = vmatprep.mubr.bf16.mxu0 0
      %2392 = vmatmul.mubr.bf16.gmra.mrb[0].mxu0 %v2300
      %v2393 = vpop.f32.mrb[0].mxu0
      %v2394 = vadd.f32 0.0, %v2393
      %v2395 = vpop.f32.mrb[0].mxu0
      %v2396 = vpop.f32.mrb[0].mxu0
      %v2397 = vadd.f32 0.0, %v2396
      %v2398 = vpop.f32.mrb[0].mxu0
      %2399 = vmatprep.mubr.bf16.mxu0 0
      %2400 = vmatmul.mubr.bf16.gmra.mrb[0].mxu0 %v2303
      %v2401 = vpop.f32.mrb[0].mxu0
      %v2402 = vadd.f32 0.0, %v2401
      %v2403 = vpop.f32.mrb[0].mxu0
      %v2404 = vpop.f32.mrb[0].mxu0
      %v2405 = vadd.f32 0.0, %v2404
      %v2406 = vpop.f32.mrb[0].mxu0
      %2407 = vmatprep.mubr.bf16.mxu0 0
      %2408 = vmatmul.mubr.bf16.gmra.mrb[0].mxu0 %v2306
      %v2409 = vpop.f32.mrb[0].mxu0
      %v2410 = vadd.f32 0.0, %v2409
      %v2411 = vpop.f32.mrb[0].mxu0
      %v2412 = vpop.f32.mrb[0].mxu0
      %v2413 = vadd.f32 0.0, %v2412
      %v2414 = vpop.f32.mrb[0].mxu0
      %2415 = vdwg.mxu0
      %v2416 = vadd.f32 %v2237, %v2346
      %v2417 = vadd.f32 %v2238, %v2349
      %v2418 = vadd.f32 %v2239, %v2354
      %v2419 = vadd.f32 %v2240, %v2357
      %v2420 = vadd.f32 %v2241, %v2362
      %v2421 = vadd.f32 %v2242, %v2365
      %v2422 = vadd.f32 %v2243, %v2370
      %v2423 = vadd.f32 %v2244, %v2373
      %v2424 = vadd.f32 %v2245, %v2378
      %v2425 = vadd.f32 %v2246, %v2381
      %v2426 = vadd.f32 %v2247, %v2386
      %v2427 = vadd.f32 %v2248, %v2389
      %v2428 = vadd.f32 %v2249, %v2394
      %v2429 = vadd.f32 %v2250, %v2397
      %v2430 = vadd.f32 %v2251, %v2402
      %v2431 = vadd.f32 %v2252, %v2405
      %v2432 = vadd.f32 %v2253, %v2410
      %v2433 = vadd.f32 %v2254, %v2413
      %v2434 = vld [vmem:[%s2] sm:$0x1]
      %v2436 = vlaneseq
      %v2437 = vshrl.u32 %v2436, 7
      %v2438 = vsub.s32 0, %v2437
      %v2439 = vrot.slane %v2434, %v2438
      %v2441 = vadd.f32 %v2416, %v2439
      %v2442 = vadd.f32 %v2417, %v2439
      %v2443 = vadd.f32 %v2418, %v2439
      %v2444 = vadd.f32 %v2419, %v2439
      %v2445 = vadd.f32 %v2420, %v2439
      %v2446 = vadd.f32 %v2421, %v2439
      %v2447 = vadd.f32 %v2422, %v2439
      %v2448 = vadd.f32 %v2423, %v2439
      %v2449 = vadd.f32 %v2424, %v2439
      %v2450 = vadd.f32 %v2425, %v2439
      %v2451 = vadd.f32 %v2426, %v2439
      %v2452 = vadd.f32 %v2427, %v2439
      %v2453 = vadd.f32 %v2428, %v2439
      %v2454 = vadd.f32 %v2429, %v2439
      %v2455 = vadd.f32 %v2430, %v2439
      %v2456 = vadd.f32 %v2431, %v2439
      %v2457 = vadd.f32 %v2432, %v2439
      %v2458 = vadd.f32 %v2433, %v2439
      %v2459 = vmax.f32 %v2441, 0.0
      %v2460 = vmax.f32 %v2442, 0.0
      %v2461 = vmax.f32 %v2443, 0.0
      %v2462 = vmax.f32 %v2444, 0.0
      %v2463 = vmax.f32 %v2445, 0.0
      %v2464 = vmax.f32 %v2446, 0.0
      %v2465 = vmax.f32 %v2447, 0.0
      %v2466 = vmax.f32 %v2448, 0.0
      %v2467 = vmax.f32 %v2449, 0.0
      %v2468 = vmax.f32 %v2450, 0.0
      %v2469 = vmax.f32 %v2451, 0.0
      %v2470 = vmax.f32 %v2452, 0.0
      %v2471 = vmax.f32 %v2453, 0.0
      %v2472 = vmax.f32 %v2454, 0.0
      %v2473 = vmax.f32 %v2455, 0.0
      %v2474 = vmax.f32 %v2456, 0.0
      %v2475 = vmax.f32 %v2457, 0.0
      %v2476 = vmax.f32 %v2458, 0.0
      %v2477 = vld [vmem:[%s3] sm:$0xff]
      %v2478 = vld [vmem:[%s3 + $0x8] sm:$0xff]
      %v2479 = vld [vmem:[%s3 + $0x10] sm:$0xff]
      %v2480 = vld [vmem:[%s3 + $0x18] sm:$0xff]
      %v2481 = vld [vmem:[%s3 + $0x20] sm:$0xff]
      %v2482 = vld [vmem:[%s3 + $0x28] sm:$0xff]
      %v2483 = vld [vmem:[%s3 + $0x30] sm:$0xff]
      %v2484 = vld [vmem:[%s3 + $0x38] sm:$0xff]
      %v2485 = vld [vmem:[%s3 + $0x40] sm:$0xff]
      %v2486 = vld [vmem:[%s3 + $0x48] sm:$0xff]
      %v2487 = vld [vmem:[%s3 + $0x50] sm:$0xff]
      %v2488 = vld [vmem:[%s3 + $0x58] sm:$0xff]
      %v2489 = vld [vmem:[%s3 + $0x60] sm:$0xff]
      %v2490 = vld [vmem:[%s3 + $0x68] sm:$0xff]
      %v2491 = vld [vmem:[%s3 + $0x70] sm:$0xff]
      %v2492 = vld [vmem:[%s3 + $0x78] sm:$0xff]
      %v2493 = vld [vmem:[%s3 + $0x80] sm:$0xff]
      %v2494 = vld [vmem:[%s3 + $0x88] sm:$0xff]
      %2496 = vset.pattern.permute.xlu0 0
      %2497 = vperm.xlu0 %2496, %v2477
      %v2498 = vpop.permute.xlu0 %2497
      %2501 = vset.pattern.permute.xlu0 0
      %2502 = vperm.xlu0 %2501, %v2478
      %v2503 = vpop.permute.xlu0 %2502
      %2506 = vset.pattern.permute.xlu0 0
      %2507 = vperm.xlu0 %2506, %v2479
      %v2508 = vpop.permute.xlu0 %2507
      %2511 = vset.pattern.permute.xlu0 0
      %2512 = vperm.xlu0 %2511, %v2480
      %v2513 = vpop.permute.xlu0 %2512
      %2516 = vset.pattern.permute.xlu0 0
      %2517 = vperm.xlu0 %2516, %v2481
      %v2518 = vpop.permute.xlu0 %2517
      %2521 = vset.pattern.permute.xlu0 0
      %2522 = vperm.xlu0 %2521, %v2482
      %v2523 = vpop.permute.xlu0 %2522
      %2526 = vset.pattern.permute.xlu0 0
      %2527 = vperm.xlu0 %2526, %v2483
      %v2528 = vpop.permute.xlu0 %2527
      %2531 = vset.pattern.permute.xlu0 0
      %2532 = vperm.xlu0 %2531, %v2484
      %v2533 = vpop.permute.xlu0 %2532
      %2536 = vset.pattern.permute.xlu0 0
      %2537 = vperm.xlu0 %2536, %v2485
      %v2538 = vpop.permute.xlu0 %2537
      %2541 = vset.pattern.permute.xlu0 0
      %2542 = vperm.xlu0 %2541, %v2486
      %v2543 = vpop.permute.xlu0 %2542
      %2546 = vset.pattern.permute.xlu0 0
      %2547 = vperm.xlu0 %2546, %v2487
      %v2548 = vpop.permute.xlu0 %2547
      %2551 = vset.pattern.permute.xlu0 0
      %2552 = vperm.xlu0 %2551, %v2488
      %v2553 = vpop.permute.xlu0 %2552
      %2556 = vset.pattern.permute.xlu0 0
      %2557 = vperm.xlu0 %2556, %v2489
      %v2558 = vpop.permute.xlu0 %2557
      %2561 = vset.pattern.permute.xlu0 0
      %2562 = vperm.xlu0 %2561, %v2490
      %v2563 = vpop.permute.xlu0 %2562
      %2566 = vset.pattern.permute.xlu0 0
      %2567 = vperm.xlu0 %2566, %v2491
      %v2568 = vpop.permute.xlu0 %2567
      %2571 = vset.pattern.permute.xlu0 0
      %2572 = vperm.xlu0 %2571, %v2492
      %v2573 = vpop.permute.xlu0 %2572
      %2576 = vset.pattern.permute.xlu0 0
      %2577 = vperm.xlu0 %2576, %v2493
      %v2578 = vpop.permute.xlu0 %2577
      %2581 = vset.pattern.permute.xlu0 0
      %2582 = vperm.xlu0 %2581, %v2494
      %v2583 = vpop.permute.xlu0 %2582
      %v2585 = vmul.f32 %v2459, %v2498
      %v2586 = vmul.f32 %v2460, %v2503
      %v2587 = vmul.f32 %v2461, %v2508
      %v2588 = vmul.f32 %v2462, %v2513
      %v2589 = vmul.f32 %v2463, %v2518
      %v2590 = vmul.f32 %v2464, %v2523
      %v2591 = vmul.f32 %v2465, %v2528
      %v2592 = vmul.f32 %v2466, %v2533
      %v2593 = vmul.f32 %v2467, %v2538
      %v2594 = vmul.f32 %v2468, %v2543
      %v2595 = vmul.f32 %v2469, %v2548
      %v2596 = vmul.f32 %v2470, %v2553
      %v2597 = vmul.f32 %v2471, %v2558
      %v2598 = vmul.f32 %v2472, %v2563
      %v2599 = vmul.f32 %v2473, %v2568
      %v2600 = vmul.f32 %v2474, %v2573
      %v2601 = vmul.f32 %v2475, %v2578
      %v2602 = vmul.f32 %v2476, %v2583
      %vm2603 = vcmask 261120
      %v2604 = vsel %vm2603, %v2585, 0.0
      %v2605 = vsel %vm2603, %v2586, 0.0
      %v2606 = vadd.f32 %v2604, %v2605
      %v2607 = vsel %vm2603, %v2587, 0.0
      %v2608 = vadd.f32 %v2606, %v2607
      %v2609 = vsel %vm2603, %v2588, 0.0
      %v2610 = vadd.f32 %v2608, %v2609
      %v2611 = vsel %vm2603, %v2589, 0.0
      %v2612 = vadd.f32 %v2610, %v2611
      %v2613 = vsel %vm2603, %v2590, 0.0
      %v2614 = vadd.f32 %v2612, %v2613
      %v2615 = vsel %vm2603, %v2591, 0.0
      %v2616 = vadd.f32 %v2614, %v2615
      %v2617 = vsel %vm2603, %v2592, 0.0
      %v2618 = vadd.f32 %v2616, %v2617
      %v2619 = vsel %vm2603, %v2593, 0.0
      %v2620 = vadd.f32 %v2618, %v2619
      %v2621 = vsel %vm2603, %v2594, 0.0
      %v2622 = vadd.f32 %v2620, %v2621
      %v2623 = vsel %vm2603, %v2595, 0.0
      %v2624 = vadd.f32 %v2622, %v2623
      %v2625 = vsel %vm2603, %v2596, 0.0
      %v2626 = vadd.f32 %v2624, %v2625
      %v2627 = vsel %vm2603, %v2597, 0.0
      %v2628 = vadd.f32 %v2626, %v2627
      %v2629 = vsel %vm2603, %v2598, 0.0
      %v2630 = vadd.f32 %v2628, %v2629
      %v2631 = vsel %vm2603, %v2599, 0.0
      %v2632 = vadd.f32 %v2630, %v2631
      %v2633 = vsel %vm2603, %v2600, 0.0
      %v2634 = vadd.f32 %v2632, %v2633
      %v2635 = vsel %vm2603, %v2601, 0.0
      %v2636 = vadd.f32 %v2634, %v2635
      %v2637 = vsel %vm2603, %v2602, 0.0
      %v2638 = vadd.f32 %v2636, %v2637
      %v2639 = vrot.slane %v2638, 4
      %v2640 = vadd.f32 %v2638, %v2639
      %v2641 = vrot.slane %v2640, 2
      %v2642 = vadd.f32 %v2640, %v2641
      %v2643 = vrot.slane %v2642, 1
      %v2644 = vadd.f32 %v2642, %v2643
      %p2645 = scmp.eq.s32.totalorder %s32, 0
      // Predicated region
      $region77: #{tpu_custom_call.1} parent=75 // pred_check
        %p2646 = pneg %p2645
      $region78: #{tpu_custom_call.1} parent=75 // pred_check_branch
        %2648 = sbr.rel (%p2646) target = $region80
      $region79: #{tpu_custom_call.1} parent=75 // pred_region
        %vm2649 = vcmask 253952
        %2650 = vst.msk [vmem:[#allocation2] sm:$0x1] %vm2649, 0.0
      $region80: #{tpu_custom_call.1} parent=75 // pred_fallthru
        _
      %v2651 = vld [vmem:[#allocation2] sm:$0x1]
      %v2652 = vadd.f32 %v2651, %v2644
      %vm2653 = vcmask 253952
      %2654 = vst.msk [vmem:[#allocation2] sm:$0x1] %vm2653, %v2652
      %p2655 = scmp.eq.s32.totalorder %s32, 1
      // Predicated region
      $region81: #{tpu_custom_call.1} parent=75 // pred_check
        %p2656 = pneg %p2655
      $region82: #{tpu_custom_call.1} parent=75 // pred_check_branch
        %2658 = sbr.rel (%p2656) target = $region84
      $region83: #{tpu_custom_call.1} parent=75 // pred_region
        %v2659 = vld [vmem:[#allocation2] sm:$0x1]
        %v2660 = vmul.f32 %v2659, 0.00390625
        %v2661 = vld [vmem:[%s5] sm:$0xff]
        %v2662 = vld [vmem:[%s5 + $0x8] sm:$0xff]
        %v2663 = vld [vmem:[%s5 + $0x10] sm:$0xff]
        %v2664 = vld [vmem:[%s5 + $0x18] sm:$0xff]
        %v2665 = vld [vmem:[%s502] sm:$0x1]
        %v2666 = vld [vmem:[%s6] sm:$0xf]
        %v2668 = vsel %vm654, %v2665, 0
        %vm2670 = vcmask 1043456
        %v2672 = vsel %vm2670, %v2666, 0
        %2674 = vmatprep.subr.mxu0 0.0
        %2675 = vmatpush1.msra.mxu0 %v2672
        %2676 = vmatprep.subr.mxu0 0.0
        %2677 = vmatpush1.msra.mxu0 0.0
        %2678 = vmatprep.subr.mxu0 0.0
        %2679 = vmatpush1.msra.mxu0 0.0
        %2680 = vmatprep.subr.mxu0 0.0
        %2681 = vmatpush1.msra.mxu0 0.0
        %2682 = vmatprep.subr.mxu0 0.0
        %2683 = vmatpush1.msra.mxu0 0.0
        %2684 = vmatprep.subr.mxu0 0.0
        %2685 = vmatpush1.msra.mxu0 0.0
        %2686 = vmatprep.subr.mxu0 0.0
        %2687 = vmatpush1.msra.mxu0 0.0
        %2688 = vmatprep.subr.mxu0 0.0
        %2689 = vmatpush1.msra.mxu0 0.0
        %2690 = vmatprep.subr.mxu0 0.0
        %2691 = vmatpush1.msra.mxu0 0.0
        %2692 = vmatprep.subr.mxu0 0.0
        %2693 = vmatpush1.msra.mxu0 0.0
        %2694 = vmatprep.subr.mxu0 0.0
        %2695 = vmatpush1.msra.mxu0 0.0
        %2696 = vmatprep.subr.mxu0 0.0
        %2697 = vmatpush1.msra.mxu0 0.0
        %2698 = vmatprep.subr.mxu0 0.0
        %2699 = vmatpush1.msra.mxu0 0.0
        %2700 = vmatprep.subr.mxu0 0.0
        %2701 = vmatpush1.msra.mxu0 0.0
        %2702 = vmatprep.subr.mxu0 0.0
        %2703 = vmatpush1.msra.mxu0 0.0
        %2704 = vmatprep.subr.mxu0 0.0
        %2705 = vmatpush1.msra.mxu0 0.0
        %2706 = vmatprep.subr.mxu0 0.0
        %2707 = vmatpush1.msra.mxu0 0.0
        %2708 = vmatprep.subr.mxu0 0.0
        %2709 = vmatpush1.msra.mxu0 0.0
        %2710 = vmatprep.subr.mxu0 0.0
        %2711 = vmatpush1.msra.mxu0 0.0
        %2712 = vmatprep.subr.mxu0 0.0
        %2713 = vmatpush1.msra.mxu0 0.0
        %2714 = vmatprep.subr.mxu0 0.0
        %2715 = vmatpush1.msra.mxu0 0.0
        %2716 = vmatprep.subr.mxu0 0.0
        %2717 = vmatpush1.msra.mxu0 0.0
        %2718 = vmatprep.subr.mxu0 0.0
        %2719 = vmatpush1.msra.mxu0 0.0
        %2720 = vmatprep.subr.mxu0 0.0
        %2721 = vmatpush1.msra.mxu0 0.0
        %2722 = vmatprep.subr.mxu0 0.0
        %2723 = vmatpush1.msra.mxu0 0.0
        %2724 = vmatprep.subr.mxu0 0.0
        %2725 = vmatpush1.msra.mxu0 0.0
        %2726 = vmatprep.subr.mxu0 0.0
        %2727 = vmatpush1.msra.mxu0 0.0
        %2728 = vmatprep.subr.mxu0 0.0
        %2729 = vmatpush1.msra.mxu0 0.0
        %2730 = vmatprep.subr.mxu0 0.0
        %2731 = vmatpush1.msra.mxu0 0.0
        %2732 = vmatprep.subr.mxu0 0.0
        %2733 = vmatpush1.msra.mxu0 0.0
        %2734 = vmatprep.subr.mxu0 0.0
        %2735 = vmatpush1.msra.mxu0 0.0
        %2736 = vmatprep.subr.mxu0 0.0
        %2737 = vmatpush1.msra.mxu0 0.0
        %2738 = vmatprep.mubr.f32.mxu0 0.0
        %2739 = vmatmul.mubr.f32.gmra.mrb[0].mxu0 %v2668
        %v2740 = vpop.f32.mrb[0].mxu0
        %v2741 = vadd.f32 0.0, %v2740
        %v2742 = vpop.f32.mrb[0].mxu0
        %2743 = vdwg.mxu0
        %v2745 = vsel %vm2603, %v2660, 0
        %2747 = vmatprep.subr.mxu0 0.0
        %2748 = vmatpush1.msra.mxu0 %v2661
        %2749 = vmatprep.subr.mxu0 0.0
        %2750 = vmatpush1.msra.mxu0 %v2662
        %2751 = vmatprep.subr.mxu0 0.0
        %2752 = vmatpush1.msra.mxu0 %v2663
        %2753 = vmatprep.subr.mxu0 0.0
        %2754 = vmatpush1.msra.mxu0 %v2664
        %2755 = vmatprep.subr.mxu0 0.0
        %2756 = vmatpush1.msra.mxu0 0.0
        %2757 = vmatprep.subr.mxu0 0.0
        %2758 = vmatpush1.msra.mxu0 0.0
        %2759 = vmatprep.subr.mxu0 0.0
        %2760 = vmatpush1.msra.mxu0 0.0
        %2761 = vmatprep.subr.mxu0 0.0
        %2762 = vmatpush1.msra.mxu0 0.0
        %2763 = vmatprep.subr.mxu0 0.0
        %2764 = vmatpush1.msra.mxu0 0.0
        %2765 = vmatprep.subr.mxu0 0.0
        %2766 = vmatpush1.msra.mxu0 0.0
        %2767 = vmatprep.subr.mxu0 0.0
        %2768 = vmatpush1.msra.mxu0 0.0
        %2769 = vmatprep.subr.mxu0 0.0
        %2770 = vmatpush1.msra.mxu0 0.0
        %2771 = vmatprep.subr.mxu0 0.0
        %2772 = vmatpush1.msra.mxu0 0.0
        %2773 = vmatprep.subr.mxu0 0.0
        %2774 = vmatpush1.msra.mxu0 0.0
        %2775 = vmatprep.subr.mxu0 0.0
        %2776 = vmatpush1.msra.mxu0 0.0
        %2777 = vmatprep.subr.mxu0 0.0
        %2778 = vmatpush1.msra.mxu0 0.0
        %2779 = vmatprep.subr.mxu0 0.0
        %2780 = vmatpush1.msra.mxu0 0.0
        %2781 = vmatprep.subr.mxu0 0.0
        %2782 = vmatpush1.msra.mxu0 0.0
        %2783 = vmatprep.subr.mxu0 0.0
        %2784 = vmatpush1.msra.mxu0 0.0
        %2785 = vmatprep.subr.mxu0 0.0
        %2786 = vmatpush1.msra.mxu0 0.0
        %2787 = vmatprep.subr.mxu0 0.0
        %2788 = vmatpush1.msra.mxu0 0.0
        %2789 = vmatprep.subr.mxu0 0.0
        %2790 = vmatpush1.msra.mxu0 0.0
        %2791 = vmatprep.subr.mxu0 0.0
        %2792 = vmatpush1.msra.mxu0 0.0
        %2793 = vmatprep.subr.mxu0 0.0
        %2794 = vmatpush1.msra.mxu0 0.0
        %2795 = vmatprep.subr.mxu0 0.0
        %2796 = vmatpush1.msra.mxu0 0.0
        %2797 = vmatprep.subr.mxu0 0.0
        %2798 = vmatpush1.msra.mxu0 0.0
        %2799 = vmatprep.subr.mxu0 0.0
        %2800 = vmatpush1.msra.mxu0 0.0
        %2801 = vmatprep.subr.mxu0 0.0
        %2802 = vmatpush1.msra.mxu0 0.0
        %2803 = vmatprep.subr.mxu0 0.0
        %2804 = vmatpush1.msra.mxu0 0.0
        %2805 = vmatprep.subr.mxu0 0.0
        %2806 = vmatpush1.msra.mxu0 0.0
        %2807 = vmatprep.subr.mxu0 0.0
        %2808 = vmatpush1.msra.mxu0 0.0
        %2809 = vmatprep.subr.mxu0 0.0
        %2810 = vmatpush1.msra.mxu0 0.0
        %2811 = vmatprep.mubr.f32.mxu0 0.0
        %2812 = vmatmul.mubr.f32.gmra.mrb[0].mxu0 %v2745
        %v2813 = vpop.f32.mrb[0].mxu0
        %v2814 = vadd.f32 %v2741, %v2813
        %v2815 = vpop.f32.mrb[0].mxu0
        %2816 = vdwg.mxu0
        %v2817 = vld [vmem:[%s7] sm:$0x1]
        %v2818 = vadd.f32 %v2814, %v2817
        %v2819 = vmax.f32 %v2818, 0.0
        %v2820 = vld [vmem:[%s8] sm:$0xff]
        %v2821 = vld [vmem:[%s8 + $0x8] sm:$0xff]
        %v2822 = vld [vmem:[%s8 + $0x10] sm:$0xff]
        %v2823 = vld [vmem:[%s8 + $0x18] sm:$0xff]
        %v2824 = vld [vmem:[%s8 + $0x20] sm:$0xff]
        %v2825 = vld [vmem:[%s8 + $0x28] sm:$0xff]
        %v2826 = vld [vmem:[%s8 + $0x30] sm:$0xff]
        %v2827 = vld [vmem:[%s8 + $0x38] sm:$0xff]
        %v2828 = vld [vmem:[%s8 + $0x40] sm:$0xff]
        %v2829 = vld [vmem:[%s8 + $0x48] sm:$0xff]
        %v2830 = vld [vmem:[%s8 + $0x50] sm:$0xff]
        %v2831 = vld [vmem:[%s8 + $0x58] sm:$0xff]
        %v2832 = vld [vmem:[%s8 + $0x60] sm:$0xff]
        %v2833 = vld [vmem:[%s8 + $0x68] sm:$0xff]
        %v2834 = vld [vmem:[%s8 + $0x70] sm:$0xff]
        %v2835 = vld [vmem:[%s8 + $0x78] sm:$0xff]
        %v2836 = vld [vmem:[%s9] sm:$0x1]
        %2837 = vmatprep.subr.mxu0 0.0
        %2838 = vmatpush1.msra.mxu0 %v2820
        %2839 = vmatprep.subr.mxu0 0.0
        %2840 = vmatpush1.msra.mxu0 %v2821
        %2841 = vmatprep.subr.mxu0 0.0
        %2842 = vmatpush1.msra.mxu0 %v2822
        %2843 = vmatprep.subr.mxu0 0.0
        %2844 = vmatpush1.msra.mxu0 %v2823
        %2845 = vmatprep.subr.mxu0 0.0
        %2846 = vmatpush1.msra.mxu0 %v2824
        %2847 = vmatprep.subr.mxu0 0.0
        %2848 = vmatpush1.msra.mxu0 %v2825
        %2849 = vmatprep.subr.mxu0 0.0
        %2850 = vmatpush1.msra.mxu0 %v2826
        %2851 = vmatprep.subr.mxu0 0.0
        %2852 = vmatpush1.msra.mxu0 %v2827
        %2853 = vmatprep.subr.mxu0 0.0
        %2854 = vmatpush1.msra.mxu0 %v2828
        %2855 = vmatprep.subr.mxu0 0.0
        %2856 = vmatpush1.msra.mxu0 %v2829
        %2857 = vmatprep.subr.mxu0 0.0
        %2858 = vmatpush1.msra.mxu0 %v2830
        %2859 = vmatprep.subr.mxu0 0.0
        %2860 = vmatpush1.msra.mxu0 %v2831
        %2861 = vmatprep.subr.mxu0 0.0
        %2862 = vmatpush1.msra.mxu0 %v2832
        %2863 = vmatprep.subr.mxu0 0.0
        %2864 = vmatpush1.msra.mxu0 %v2833
        %2865 = vmatprep.subr.mxu0 0.0
        %2866 = vmatpush1.msra.mxu0 %v2834
        %2867 = vmatprep.subr.mxu0 0.0
        %2868 = vmatpush1.msra.mxu0 %v2835
        %2869 = vmatprep.subr.mxu0 0.0
        %2870 = vmatpush1.msra.mxu0 0.0
        %2871 = vmatprep.subr.mxu0 0.0
        %2872 = vmatpush1.msra.mxu0 0.0
        %2873 = vmatprep.subr.mxu0 0.0
        %2874 = vmatpush1.msra.mxu0 0.0
        %2875 = vmatprep.subr.mxu0 0.0
        %2876 = vmatpush1.msra.mxu0 0.0
        %2877 = vmatprep.subr.mxu0 0.0
        %2878 = vmatpush1.msra.mxu0 0.0
        %2879 = vmatprep.subr.mxu0 0.0
        %2880 = vmatpush1.msra.mxu0 0.0
        %2881 = vmatprep.subr.mxu0 0.0
        %2882 = vmatpush1.msra.mxu0 0.0
        %2883 = vmatprep.subr.mxu0 0.0
        %2884 = vmatpush1.msra.mxu0 0.0
        %2885 = vmatprep.subr.mxu0 0.0
        %2886 = vmatpush1.msra.mxu0 0.0
        %2887 = vmatprep.subr.mxu0 0.0
        %2888 = vmatpush1.msra.mxu0 0.0
        %2889 = vmatprep.subr.mxu0 0.0
        %2890 = vmatpush1.msra.mxu0 0.0
        %2891 = vmatprep.subr.mxu0 0.0
        %2892 = vmatpush1.msra.mxu0 0.0
        %2893 = vmatprep.subr.mxu0 0.0
        %2894 = vmatpush1.msra.mxu0 0.0
        %2895 = vmatprep.subr.mxu0 0.0
        %2896 = vmatpush1.msra.mxu0 0.0
        %2897 = vmatprep.subr.mxu0 0.0
        %2898 = vmatpush1.msra.mxu0 0.0
        %2899 = vmatprep.subr.mxu0 0.0
        %2900 = vmatpush1.msra.mxu0 0.0
        %2901 = vmatprep.mubr.f32.mxu0 0.0
        %2902 = vmatmul.mubr.f32.gmra.mrb[0].mxu0 %v2819
        %v2903 = vpop.f32.mrb[0].mxu0
        %v2904 = vadd.f32 %v2836, %v2903
        %v2905 = vpop.f32.mrb[0].mxu0
        %2906 = vdwg.mxu0
        %v2907 = vmax.f32 %v2904, 0.0
        %v2908 = vld [vmem:[%s10] sm:$0xff]
        %v2909 = vld [vmem:[%s10 + $0x8] sm:$0xff]
        %v2910 = vld [vmem:[%s10 + $0x10] sm:$0xff]
        %v2911 = vld [vmem:[%s10 + $0x18] sm:$0xff]
        %v2912 = vld [vmem:[%s10 + $0x20] sm:$0xff]
        %v2913 = vld [vmem:[%s10 + $0x28] sm:$0xff]
        %v2914 = vld [vmem:[%s10 + $0x30] sm:$0xff]
        %v2915 = vld [vmem:[%s10 + $0x38] sm:$0xff]
        %v2916 = vld [vmem:[%s11] sm:$0x1]
        %vm2917 = vcmask 523264
        %v2919 = vsel %vm2917, %v2907, 0
        %2921 = vmatprep.subr.mxu0 0.0
        %2922 = vmatpush1.msra.mxu0 %v2908
        %2923 = vmatprep.subr.mxu0 0.0
        %2924 = vmatpush1.msra.mxu0 %v2909
        %2925 = vmatprep.subr.mxu0 0.0
        %2926 = vmatpush1.msra.mxu0 %v2910
        %2927 = vmatprep.subr.mxu0 0.0
        %2928 = vmatpush1.msra.mxu0 %v2911
        %2929 = vmatprep.subr.mxu0 0.0
        %2930 = vmatpush1.msra.mxu0 %v2912
        %2931 = vmatprep.subr.mxu0 0.0
        %2932 = vmatpush1.msra.mxu0 %v2913
        %2933 = vmatprep.subr.mxu0 0.0
        %2934 = vmatpush1.msra.mxu0 %v2914
        %2935 = vmatprep.subr.mxu0 0.0
        %2936 = vmatpush1.msra.mxu0 %v2915
        %2937 = vmatprep.subr.mxu0 0.0
        %2938 = vmatpush1.msra.mxu0 0.0
        %2939 = vmatprep.subr.mxu0 0.0
        %2940 = vmatpush1.msra.mxu0 0.0
        %2941 = vmatprep.subr.mxu0 0.0
        %2942 = vmatpush1.msra.mxu0 0.0
        %2943 = vmatprep.subr.mxu0 0.0
        %2944 = vmatpush1.msra.mxu0 0.0
        %2945 = vmatprep.subr.mxu0 0.0
        %2946 = vmatpush1.msra.mxu0 0.0
        %2947 = vmatprep.subr.mxu0 0.0
        %2948 = vmatpush1.msra.mxu0 0.0
        %2949 = vmatprep.subr.mxu0 0.0
        %2950 = vmatpush1.msra.mxu0 0.0
        %2951 = vmatprep.subr.mxu0 0.0
        %2952 = vmatpush1.msra.mxu0 0.0
        %2953 = vmatprep.subr.mxu0 0.0
        %2954 = vmatpush1.msra.mxu0 0.0
        %2955 = vmatprep.subr.mxu0 0.0
        %2956 = vmatpush1.msra.mxu0 0.0
        %2957 = vmatprep.subr.mxu0 0.0
        %2958 = vmatpush1.msra.mxu0 0.0
        %2959 = vmatprep.subr.mxu0 0.0
        %2960 = vmatpush1.msra.mxu0 0.0
        %2961 = vmatprep.subr.mxu0 0.0
        %2962 = vmatpush1.msra.mxu0 0.0
        %2963 = vmatprep.subr.mxu0 0.0
        %2964 = vmatpush1.msra.mxu0 0.0
        %2965 = vmatprep.subr.mxu0 0.0
        %2966 = vmatpush1.msra.mxu0 0.0
        %2967 = vmatprep.subr.mxu0 0.0
        %2968 = vmatpush1.msra.mxu0 0.0
        %2969 = vmatprep.subr.mxu0 0.0
        %2970 = vmatpush1.msra.mxu0 0.0
        %2971 = vmatprep.subr.mxu0 0.0
        %2972 = vmatpush1.msra.mxu0 0.0
        %2973 = vmatprep.subr.mxu0 0.0
        %2974 = vmatpush1.msra.mxu0 0.0
        %2975 = vmatprep.subr.mxu0 0.0
        %2976 = vmatpush1.msra.mxu0 0.0
        %2977 = vmatprep.subr.mxu0 0.0
        %2978 = vmatpush1.msra.mxu0 0.0
        %2979 = vmatprep.subr.mxu0 0.0
        %2980 = vmatpush1.msra.mxu0 0.0
        %2981 = vmatprep.subr.mxu0 0.0
        %2982 = vmatpush1.msra.mxu0 0.0
        %2983 = vmatprep.subr.mxu0 0.0
        %2984 = vmatpush1.msra.mxu0 0.0
        %2985 = vmatprep.mubr.f32.mxu0 0.0
        %2986 = vmatmul.mubr.f32.gmra.mrb[0].mxu0 %v2919
        %v2987 = vpop.f32.mrb[0].mxu0
        %v2988 = vadd.f32 %v2916, %v2987
        %v2989 = vpop.f32.mrb[0].mxu0
        %2990 = vdwg.mxu0
        %v2991 = vmax.f32 %v2988, 0.0
        %v2992 = vld [vmem:[%s12] sm:$0xff]
        %v2993 = vld [vmem:[%s12 + $0x8] sm:$0xff]
        %v2994 = vld [vmem:[%s12 + $0x10] sm:$0xff]
        %v2995 = vld [vmem:[%s12 + $0x18] sm:$0xff]
        %v2996 = vld [vmem:[#allocation3] sm:$0x1]
        %v2998 = vsel %vm2603, %v2991, 0
        %3000 = vmatprep.subr.mxu0 0.0
        %3001 = vmatpush1.msra.mxu0 %v2992
        %3002 = vmatprep.subr.mxu0 0.0
        %3003 = vmatpush1.msra.mxu0 %v2993
        %3004 = vmatprep.subr.mxu0 0.0
        %3005 = vmatpush1.msra.mxu0 %v2994
        %3006 = vmatprep.subr.mxu0 0.0
        %3007 = vmatpush1.msra.mxu0 %v2995
        %3008 = vmatprep.subr.mxu0 0.0
        %3009 = vmatpush1.msra.mxu0 0.0
        %3010 = vmatprep.subr.mxu0 0.0
        %3011 = vmatpush1.msra.mxu0 0.0
        %3012 = vmatprep.subr.mxu0 0.0
        %3013 = vmatpush1.msra.mxu0 0.0
        %3014 = vmatprep.subr.mxu0 0.0
        %3015 = vmatpush1.msra.mxu0 0.0
        %3016 = vmatprep.subr.mxu0 0.0
        %3017 = vmatpush1.msra.mxu0 0.0
        %3018 = vmatprep.subr.mxu0 0.0
        %3019 = vmatpush1.msra.mxu0 0.0
        %3020 = vmatprep.subr.mxu0 0.0
        %3021 = vmatpush1.msra.mxu0 0.0
        %3022 = vmatprep.subr.mxu0 0.0
        %3023 = vmatpush1.msra.mxu0 0.0
        %3024 = vmatprep.subr.mxu0 0.0
        %3025 = vmatpush1.msra.mxu0 0.0
        %3026 = vmatprep.subr.mxu0 0.0
        %3027 = vmatpush1.msra.mxu0 0.0
        %3028 = vmatprep.subr.mxu0 0.0
        %3029 = vmatpush1.msra.mxu0 0.0
        %3030 = vmatprep.subr.mxu0 0.0
        %3031 = vmatpush1.msra.mxu0 0.0
        %3032 = vmatprep.subr.mxu0 0.0
        %3033 = vmatpush1.msra.mxu0 0.0
        %3034 = vmatprep.subr.mxu0 0.0
        %3035 = vmatpush1.msra.mxu0 0.0
        %3036 = vmatprep.subr.mxu0 0.0
        %3037 = vmatpush1.msra.mxu0 0.0
        %3038 = vmatprep.subr.mxu0 0.0
        %3039 = vmatpush1.msra.mxu0 0.0
        %3040 = vmatprep.subr.mxu0 0.0
        %3041 = vmatpush1.msra.mxu0 0.0
        %3042 = vmatprep.subr.mxu0 0.0
        %3043 = vmatpush1.msra.mxu0 0.0
        %3044 = vmatprep.subr.mxu0 0.0
        %3045 = vmatpush1.msra.mxu0 0.0
        %3046 = vmatprep.subr.mxu0 0.0
        %3047 = vmatpush1.msra.mxu0 0.0
        %3048 = vmatprep.subr.mxu0 0.0
        %3049 = vmatpush1.msra.mxu0 0.0
        %3050 = vmatprep.subr.mxu0 0.0
        %3051 = vmatpush1.msra.mxu0 0.0
        %3052 = vmatprep.subr.mxu0 0.0
        %3053 = vmatpush1.msra.mxu0 0.0
        %3054 = vmatprep.subr.mxu0 0.0
        %3055 = vmatpush1.msra.mxu0 0.0
        %3056 = vmatprep.subr.mxu0 0.0
        %3057 = vmatpush1.msra.mxu0 0.0
        %3058 = vmatprep.subr.mxu0 0.0
        %3059 = vmatpush1.msra.mxu0 0.0
        %3060 = vmatprep.subr.mxu0 0.0
        %3061 = vmatpush1.msra.mxu0 0.0
        %3062 = vmatprep.subr.mxu0 0.0
        %3063 = vmatpush1.msra.mxu0 0.0
        %3064 = vmatprep.mubr.f32.mxu0 0.0
        %3065 = vmatmul.mubr.f32.gmra.mrb[0].mxu0 %v2998
        %v3066 = vpop.f32.mrb[0].mxu0
        %v3067 = vadd.f32 %v2996, %v3066
        %v3068 = vpop.f32.mrb[0].mxu0
        %3069 = vdwg.mxu0
        %vm3070 = vcmask 0
        %3071 = vst.msk [vmem:[%s505] sm:$0x1] %vm3070, %v3067
      $region84: #{tpu_custom_call.1} parent=75 // pred_fallthru
        _
      %p3072 = scmp.lt.s32.totalorder %s31, 1
      %s3073 = scalar_select %p3072, %s31, 1
      %s3074 = scalar_lea.vmem %s14, %s3073
      // Predicated region
      $region85: #{tpu_custom_call.1} parent=75 // pred_check
        %p3075 = pneg %p363
      $region86: #{tpu_custom_call.1} parent=75 // pred_check_branch
        %3077 = sbr.rel (%p3075) target = $region88
      $region87: #{tpu_custom_call.1} parent=75 // pred_region
        _
      $region88: #{tpu_custom_call.1} parent=75 // pred_fallthru
        _
    $region76: #{tpu_custom_call.1} parent=5 // pred_fallthru
      _
    %p3078 = scmp.le.s32.totalorder 2, %s22
    // Predicated region
    $region89: #{tpu_custom_call.1} parent=5 // pred_check
      %p3079 = pneg %p3078
    $region90: #{tpu_custom_call.1} parent=5 // pred_check_branch
      %3081 = sbr.rel (%p3079) target = $region92
    $region91: #{tpu_custom_call.1} parent=5 // pred_region
      %s3082 = ssub.s32 %s22, 2
      // Predicated region
      $region93: #{tpu_custom_call.1} parent=91 // pred_check
        %p3083 = pneg %p369
      $region94: #{tpu_custom_call.1} parent=91 // pred_check_branch
        %3085 = sbr.rel (%p3083) target = $region96
      $region95: #{tpu_custom_call.1} parent=91 // pred_region
        %p3086 = scmp.lt.s32.totalorder %s33, 1
        %s3087 = scalar_select %p3086, %s33, 1
        %s3088 = scalar_lea.vmem %s14, %s3087
      $region96: #{tpu_custom_call.1} parent=91 // pred_fallthru
        _
    $region92: #{tpu_custom_call.1} parent=5 // pred_fallthru
      _
  $region6: #{tpu_custom_call.1} parent=0 // loop_footer
    %s26 = sadd.s32 1, %s22
  $region7: #{tpu_custom_call.1} parent=0 // loop_footer_branch
    %21 = sbr.rel target = $region3
  $region8: #{tpu_custom_call.1} parent=0 // loop_exit
    _

</llo_original>
